<compile_context>
chip_gen: v5e
topology: v5e:2x2
jax: 0.10.0
libtpu: 0.0.40
codegen_flags: <defaults>
</compile_context>

<pallas_src>
import jax
import jax.numpy as jnp
from jax import lax
from jax.experimental import pallas as pl
from jax.experimental.pallas import tpu as pltpu

_LANES = 128       # vreg lane width
_SUBLANES = 8      # vreg sublane count (f32)
_TM_MAX = 8192     # rows per grid step
_SMALL_N = 1 << 16 # below this, fused XLA beats pallas_call launch overhead


def _bce_with_logits(x, y):
    # Numerically stable elementwise BCE-with-logits, identical to
    # torch.nn.functional.binary_cross_entropy_with_logits(reduction='none'):
    #   max(x, 0) - x*y + log1p(exp(-|x|))
    return jnp.maximum(x, 0.0) - x * y + jnp.log1p(jnp.exp(-jnp.abs(x)))


def _fold(v, tm):
    # (tm, 128) -> (8, 128) partial sums with pure VPU adds (no cross-lane work).
    return v.reshape(tm // _SUBLANES, _SUBLANES, _LANES).sum(axis=0)


def _valid_mask(tm, n_full, rem_lanes):
    # Element-validity mask for a tail/overflow block.  Row-level comparisons
    # only (no element-index products -> no int32 overflow for huge inputs).
    row = lax.broadcasted_iota(jnp.int32, (tm, _LANES), 0)
    valid = row < n_full
    if rem_lanes:
        lane = lax.broadcasted_iota(jnp.int32, (tm, _LANES), 1)
        valid = jnp.logical_or(
            valid, jnp.logical_and(row == n_full, lane < rem_lanes))
    return valid


def _make_mean_kernel(tm, tin, full_rows, rem_lanes):
    def kernel(x_ref, y_ref, acc_ref):
        p = pl.program_id(0)
        t = pl.program_id(1)

        @pl.when(t == 0)
        def _():
            acc_ref[...] = jnp.zeros_like(acc_ref)

        x = x_ref[...].astype(jnp.float32)
        y = y_ref[...].astype(jnp.float32)
        loss = _bce_with_logits(x, y)

        gb = p * tin + t                 # global row-block index (unclamped)
        n_full = full_rows - gb * tm     # fully-valid rows inside this block

        @pl.when(n_full >= tm)           # interior block: no mask cost
        def _():
            acc_ref[...] += _fold(loss, tm)

        @pl.when(n_full < tm)            # tail / overflow block: masked
        def _():
            valid = _valid_mask(tm, n_full, rem_lanes)
            acc_ref[...] += _fold(jnp.where(valid, loss, 0.0), tm)

    return kernel


def _make_weighted_kernel(tm, tin, full_rows, rem_lanes):
    def kernel(x_ref, y_ref, pos_acc, posl_acc, loss_acc):
        p = pl.program_id(0)
        t = pl.program_id(1)

        @pl.when(t == 0)
        def _():
            pos_acc[...] = jnp.zeros_like(pos_acc)
            posl_acc[...] = jnp.zeros_like(posl_acc)
            loss_acc[...] = jnp.zeros_like(loss_acc)

        x = x_ref[...].astype(jnp.float32)
        y = y_ref[...].astype(jnp.float32)
        loss = _bce_with_logits(x, y)
        pos = jnp.where(y > 0.5, 1.0, 0.0)

        gb = p * tin + t
        n_full = full_rows - gb * tm

        @pl.when(n_full >= tm)
        def _():
            pos_acc[...] += _fold(pos, tm)
            posl_acc[...] += _fold(pos * loss, tm)
            loss_acc[...] += _fold(loss, tm)

        @pl.when(n_full < tm)
        def _():
            valid = _valid_mask(tm, n_full, rem_lanes)
            lm = jnp.where(valid, loss, 0.0)   # mask loss before any multiply
            pm = jnp.where(valid, pos, 0.0)
            pos_acc[...] += _fold(pm, tm)
            posl_acc[...] += _fold(pm * lm, tm)
            loss_acc[...] += _fold(lm, tm)

    return kernel


def _small_forward(logit, truth, weights):
    # Fused pure-XLA path for tiny inputs; exact module semantics.
    x = logit.astype(jnp.float32)
    y = truth.astype(jnp.float32)
    loss = _bce_with_logits(x, y)
    if weights is None:
        return jnp.mean(loss)
    pos = jnp.where(y > 0.5, 1.0, 0.0)
    neg = jnp.where(y < 0.5, 1.0, 0.0)
    pos_sum = jnp.sum(pos) + 1e-12
    neg_sum = jnp.sum(neg) + 1e-12
    return jnp.sum(weights[1] * pos * loss / pos_sum
                   + weights[0] * neg * loss / neg_sum)


def weighted_bce(logit, truth, weights=None):
    """Pallas implementation of WeightedBCE.forward(logit, truth)."""
    batch_size, num_class = truth.shape
    logit = jnp.reshape(logit, (batch_size, num_class))
    truth = jnp.reshape(truth, (batch_size, num_class))
    assert logit.shape == truth.shape
    n = batch_size * num_class

    if n < _SMALL_N:
        return _small_forward(logit, truth, weights)

    # Lane-dense (rows, 128) view.  Pure reshape (no HBM copy) when n % 128 == 0.
    flat_x = jnp.reshape(logit, (-1,))
    flat_y = jnp.reshape(truth, (-1,))
    rem_lanes = n % _LANES
    lane_pad = (_LANES - rem_lanes) % _LANES
    if lane_pad:
        # TODO(synk): this <=127-element tail pad still costs one XLA copy of
        # each input; unavoidable while keeping the lane-dense (rows,128) view.
        flat_x = jnp.pad(flat_x, (0, lane_pad))
        flat_y = jnp.pad(flat_y, (0, lane_pad))
    rows = (n + lane_pad) // _LANES
    x2 = jnp.reshape(flat_x, (rows, _LANES))
    y2 = jnp.reshape(flat_y, (rows, _LANES))

    full_rows = n // _LANES              # rows that are entirely real data

    # Row tile: multiple of 32 (clean bf16/int8 packing), as large as possible
    # to amortize per-step overhead, never exceeding the array row count.
    tm = min(_TM_MAX, max(32, (rows // 32) * 32))
    nb = pl.cdiv(rows, tm)               # number of real row-blocks
    num_par = 2 if nb >= 2 else 1        # leading "parallel" axis: 2 TCs on v7x
    tin = pl.cdiv(nb, num_par)

    def in_map(p, t):
        # Clamp so padded (p, t) steps re-read the last real block; their
        # contribution is masked to zero in-kernel.
        return (jnp.minimum(p * tin + t, nb - 1), 0)

    in_specs = [pl.BlockSpec((tm, _LANES), in_map),
                pl.BlockSpec((tm, _LANES), in_map)]
    # Per-partition (8,128) partial-sum output; accumulated directly in VMEM
    # across the "arbitrary" axis, combined in the wrapper.
    out_spec = pl.BlockSpec((None, _SUBLANES, _LANES), lambda p, t: (p, 0, 0))
    part_shape = jax.ShapeDtypeStruct((num_par, _SUBLANES, _LANES), jnp.float32)

    itemsize = (jnp.dtype(logit.dtype).itemsize
                + jnp.dtype(truth.dtype).itemsize)
    # 2x double-buffered input blocks + slack for outputs / internal temps.
    vmem_bytes = int(2 * tm * _LANES * itemsize + (4 << 20))
    n_out = 1 if weights is None else 3
    cost = pl.CostEstimate(
        flops=10 * n, transcendentals=2 * n,
        bytes_accessed=n * itemsize
        + n_out * num_par * _SUBLANES * _LANES * 4)
    cparams = pltpu.CompilerParams(
        dimension_semantics=("parallel", "arbitrary"),
        vmem_limit_bytes=vmem_bytes,
    )

    if weights is None:
        kernel = _make_mean_kernel(tm, tin, full_rows, rem_lanes)
        part = pl.pallas_call(
            kernel,
            out_shape=part_shape,
            grid=(num_par, tin),
            in_specs=in_specs,
            out_specs=out_spec,
            compiler_params=cparams,
            cost_estimate=cost,
        )(x2, y2)
        return jnp.sum(part) / n

    kernel = _make_weighted_kernel(tm, tin, full_rows, rem_lanes)
    pos_part, posl_part, loss_part = pl.pallas_call(
        kernel,
        out_shape=(part_shape, part_shape, part_shape),
        grid=(num_par, tin),
        in_specs=in_specs,
        out_specs=(out_spec, out_spec, out_spec),
        compiler_params=cparams,
        cost_estimate=cost,
    )(x2, y2)

    w0 = jnp.float32(weights[0])
    w1 = jnp.float32(weights[1])
    sp = jnp.sum(pos_part)
    spl = jnp.sum(posl_part)
    sl = jnp.sum(loss_part)
    # pos/neg partition all elements for the module's {0,1} targets (exact
    # whenever no target equals 0.5), so the negative-class sums follow from
    # the totals: 3 accumulators instead of 4.
    sn = jnp.float32(n) - sp
    snl = sl - spl
    return w1 * spl / (sp + 1e-12) + w0 * snl / (sn + 1e-12)


def _reference(logit, truth, weights=None):
    # Pure-JAX reference mirroring the PyTorch forward exactly.
    loss = _bce_with_logits(logit.astype(jnp.float32), truth.astype(jnp.float32))
    if weights is None:
        return jnp.mean(loss)
    pos = (truth > 0.5).astype(jnp.float32)
    neg = (truth < 0.5).astype(jnp.float32)
    pos_sum = jnp.sum(pos) + 1e-12
    neg_sum = jnp.sum(neg) + 1e-12
    return jnp.sum(weights[1] * pos * loss / pos_sum
                   + weights[0] * neg * loss / neg_sum)


if __name__ == "__main__":
    key = jax.random.PRNGKey(0)
    k1, k2, k3, k4, k5, k6 = jax.random.split(key, 6)
    weights = (0.25, 0.75)

    # Case 1/2: module-sized tiny input (batch=2, num_class=4) -> fused path.
    batch_size, num_class = 2, 4
    logit = jax.random.normal(k1, (batch_size, num_class), dtype=jnp.float32)
    truth = (jax.random.uniform(k2, (batch_size, num_class)) > 0.5).astype(
        jnp.float32)

    out_mean = weighted_bce(logit, truth, weights=None)
    jax.block_until_ready(out_mean)
    assert jnp.allclose(out_mean, _reference(logit, truth, None),
                        atol=1e-5, rtol=1e-5)

    out_w = weighted_bce(logit, truth, weights=weights)
    jax.block_until_ready(out_w)
    assert jnp.allclose(out_w, _reference(logit, truth, weights),
                        atol=1e-5, rtol=1e-5)

    # Case 3: kernel path, n % 128 == 0 -> zero-copy reshape, no masking.
    b2, c2 = 2048, 72
    logit_big = jax.random.normal(k3, (b2, c2), dtype=jnp.float32)
    truth_big = (jax.random.uniform(k4, (b2, c2)) > 0.5).astype(jnp.float32)

    out_mean_big = weighted_bce(logit_big, truth_big, weights=None)
    jax.block_until_ready(out_mean_big)
    assert jnp.allclose(out_mean_big, _reference(logit_big, truth_big, None),
                        atol=1e-5, rtol=1e-4)

    out_w_big = weighted_bce(logit_big, truth_big, weights=weights)
    jax.block_until_ready(out_w_big)
    assert jnp.allclose(out_w_big, _reference(logit_big, truth_big, weights),
                        atol=1e-5, rtol=1e-4)

    # Case 4: kernel path exercising the lane tail, the masked boundary block
    # and the 2-way parallel grid axis (rows=520, tm=512 -> 2 row blocks).
    b3, c3 = 1023, 65
    logit_odd = jax.random.normal(k5, (b3, c3), dtype=jnp.float32)
    truth_odd = (jax.random.uniform(k6, (b3, c3)) > 0.5).astype(jnp.float32)

    out_mean_odd = weighted_bce(logit_odd, truth_odd, weights=None)
    jax.block_until_ready(out_mean_odd)
    assert jnp.allclose(out_mean_odd, _reference(logit_odd, truth_odd, None),
                        atol=1e-5, rtol=1e-4)

    out_w_odd = weighted_bce(logit_odd, truth_odd, weights=weights)
    jax.block_until_ready(out_w_odd)
    assert jnp.allclose(out_w_odd, _reference(logit_odd, truth_odd, weights),
                        atol=1e-5, rtol=1e-4)

    print("KERNEL_OK")
</pallas_src>

<mosaic_0001>
module attributes {stable_mosaic.version = 11 : i64} {
  func.func @kernel(%arg0: i32, %arg1: i32, %arg2: memref<1152x128xf32, #tpu.memory_space<vmem>>, %arg3: memref<1152x128xf32, #tpu.memory_space<vmem>>, %arg4: memref<1x8x128xf32, #tpu.memory_space<vmem>>) attributes {dimension_semantics = [#tpu.dimension_semantics<parallel>, #tpu.dimension_semantics<arbitrary>], iteration_bounds = array<i64: 1, 1>, scalar_prefetch = 0 : i64, scratch_operands = 0 : i64, tpu.core_type = #tpu.core_type<tc>, window_params = [{transform_indices = @transform_0, window_bounds = array<i64: 1152, 128>}, {transform_indices = @transform_1, window_bounds = array<i64: 1152, 128>}, {transform_indices = @transform_2, window_bounds = array<i64: 1, 8, 128>}]} {
    %c0_i32 = arith.constant 0 : i32
    %0 = arith.cmpi eq, %arg1, %c0_i32 : i32
    %1 = arith.extui %0 : i1 to i32
    %c0_i32_0 = arith.constant 0 : i32
    %2 = arith.cmpi ne, %1, %c0_i32_0 : i32
    scf.if %2 {
      %cst_10 = arith.constant 0.000000e+00 : f32
      %25 = vector.broadcast %cst_10 : f32 to vector<8x128xf32>
      %c0_11 = arith.constant 0 : index
      %c0_12 = arith.constant 0 : index
      %c0_13 = arith.constant 0 : index
      %26 = vector.load %arg4[%c0_11, %c0_12, %c0_13] : memref<1x8x128xf32, #tpu.memory_space<vmem>>, vector<1x8x128xf32>
      %27 = vector.shape_cast %26 : vector<1x8x128xf32> to vector<8x128xf32>
      %28 = vector.shape_cast %25 : vector<8x128xf32> to vector<1x8x128xf32>
      tpu.vector_store %arg4[%c0_11, %c0_12, %c0_13], %28 {strides = array<i32>} : memref<1x8x128xf32, #tpu.memory_space<vmem>>, vector<1x8x128xf32>,
    } else {
    }
    %c0 = arith.constant 0 : index
    %c0_1 = arith.constant 0 : index
    %3 = vector.load %arg2[%c0, %c0_1] : memref<1152x128xf32, #tpu.memory_space<vmem>>, vector<1152x128xf32>
    %c0_2 = arith.constant 0 : index
    %c0_3 = arith.constant 0 : index
    %4 = vector.load %arg3[%c0_2, %c0_3] : memref<1152x128xf32, #tpu.memory_space<vmem>>, vector<1152x128xf32>
    %cst = arith.constant 0.000000e+00 : f32
    %5 = vector.broadcast %cst : f32 to vector<1152x128xf32>
    %6 = arith.maximumf %3, %5 : vector<1152x128xf32>
    %7 = arith.mulf %3, %4 : vector<1152x128xf32>
    %8 = arith.subf %6, %7 : vector<1152x128xf32>
    %9 = math.absf %3 : vector<1152x128xf32>
    %cst_4 = arith.constant 0.000000e+00 : f32
    %10 = vector.broadcast %cst_4 : f32 to vector<1152x128xf32>
    %11 = arith.subf %10, %9 : vector<1152x128xf32>
    %12 = math.exp %11 : vector<1152x128xf32>
    %13 = math.log1p %12 : vector<1152x128xf32>
    %14 = arith.addf %8, %13 : vector<1152x128xf32>
    %c1_i32 = arith.constant 1 : i32
    %15 = arith.muli %arg0, %c1_i32 : i32
    %16 = arith.addi %15, %arg1 : i32
    %c1152_i32 = arith.constant 1152 : i32
    %17 = arith.muli %16, %c1152_i32 : i32
    %c1152_i32_5 = arith.constant 1152 : i32
    %18 = arith.subi %c1152_i32_5, %17 : i32
    %c1152_i32_6 = arith.constant 1152 : i32
    %19 = arith.cmpi sge, %18, %c1152_i32_6 : i32
    %20 = arith.extui %19 : i1 to i32
    %c0_i32_7 = arith.constant 0 : i32
    %21 = arith.cmpi ne, %20, %c0_i32_7 : i32
    scf.if %21 {
      %c0_10 = arith.constant 0 : index
      %c0_11 = arith.constant 0 : index
      %c0_12 = arith.constant 0 : index
      %25 = vector.load %arg4[%c0_10, %c0_11, %c0_12] : memref<1x8x128xf32, #tpu.memory_space<vmem>>, vector<1x8x128xf32>
      %26 = vector.shape_cast %25 : vector<1x8x128xf32> to vector<8x128xf32>
      %27 = vector.shape_cast %14 : vector<1152x128xf32> to vector<144x8x128xf32>
      %cst_13 = arith.constant dense<0.000000e+00> : vector<8x128xf32>
      %28 = vector.multi_reduction <add>, %27, %cst_13 [0] : vector<144x8x128xf32> to vector<8x128xf32>
      %29 = arith.addf %26, %28 : vector<8x128xf32>
      %c0_14 = arith.constant 0 : index
      %c0_15 = arith.constant 0 : index
      %c0_16 = arith.constant 0 : index
      %30 = vector.load %arg4[%c0_14, %c0_15, %c0_16] : memref<1x8x128xf32, #tpu.memory_space<vmem>>, vector<1x8x128xf32>
      %31 = vector.shape_cast %30 : vector<1x8x128xf32> to vector<8x128xf32>
      %32 = vector.shape_cast %29 : vector<8x128xf32> to vector<1x8x128xf32>
      tpu.vector_store %arg4[%c0_14, %c0_15, %c0_16], %32 {strides = array<i32>} : memref<1x8x128xf32, #tpu.memory_space<vmem>>, vector<1x8x128xf32>,
    } else {
    }
    %c1152_i32_8 = arith.constant 1152 : i32
    %22 = arith.cmpi slt, %18, %c1152_i32_8 : i32
    %23 = arith.extui %22 : i1 to i32
    %c0_i32_9 = arith.constant 0 : i32
    %24 = arith.cmpi ne, %23, %c0_i32_9 : i32
    scf.if %24 {
      %25 = tpu.iota {dimensions = array<i32: 0>} : vector<1152x128xi32>
      %26 = vector.broadcast %18 : i32 to vector<1152x128xi32>
      %27 = arith.cmpi slt, %25, %26 : vector<1152x128xi32>
      %c0_10 = arith.constant 0 : index
      %c0_11 = arith.constant 0 : index
      %c0_12 = arith.constant 0 : index
      %28 = vector.load %arg4[%c0_10, %c0_11, %c0_12] : memref<1x8x128xf32, #tpu.memory_space<vmem>>, vector<1x8x128xf32>
      %29 = vector.shape_cast %28 : vector<1x8x128xf32> to vector<8x128xf32>
      %cst_13 = arith.constant 0.000000e+00 : f32
      %30 = vector.broadcast %cst_13 : f32 to vector<1152x128xf32>
      %31 = arith.select %27, %14, %30 : vector<1152x128xi1>, vector<1152x128xf32>
      %32 = vector.shape_cast %31 : vector<1152x128xf32> to vector<144x8x128xf32>
      %cst_14 = arith.constant dense<0.000000e+00> : vector<8x128xf32>
      %33 = vector.multi_reduction <add>, %32, %cst_14 [0] : vector<144x8x128xf32> to vector<8x128xf32>
      %34 = arith.addf %29, %33 : vector<8x128xf32>
      %c0_15 = arith.constant 0 : index
      %c0_16 = arith.constant 0 : index
      %c0_17 = arith.constant 0 : index
      %35 = vector.load %arg4[%c0_15, %c0_16, %c0_17] : memref<1x8x128xf32, #tpu.memory_space<vmem>>, vector<1x8x128xf32>
      %36 = vector.shape_cast %35 : vector<1x8x128xf32> to vector<8x128xf32>
      %37 = vector.shape_cast %34 : vector<8x128xf32> to vector<1x8x128xf32>
      tpu.vector_store %arg4[%c0_15, %c0_16, %c0_17], %37 {strides = array<i32>} : memref<1x8x128xf32, #tpu.memory_space<vmem>>, vector<1x8x128xf32>,
    } else {
    }
    return
  }
  func.func @transform_0(%arg0: i32, %arg1: i32) -> (i32, i32) {
    %c1_i32 = arith.constant 1 : i32
    %0 = arith.muli %arg0, %c1_i32 : i32
    %1 = arith.addi %0, %arg1 : i32
    %c0_i32 = arith.constant 0 : i32
    %2 = arith.minsi %1, %c0_i32 : i32
    %c0_i32_0 = arith.constant 0 : i32
    %c0_i32_1 = arith.constant 0 : i32
    return %2, %c0_i32_0 : i32, i32
  }
  func.func @transform_1(%arg0: i32, %arg1: i32) -> (i32, i32) {
    %c1_i32 = arith.constant 1 : i32
    %0 = arith.muli %arg0, %c1_i32 : i32
    %1 = arith.addi %0, %arg1 : i32
    %c0_i32 = arith.constant 0 : i32
    %2 = arith.minsi %1, %c0_i32 : i32
    %c0_i32_0 = arith.constant 0 : i32
    %c0_i32_1 = arith.constant 0 : i32
    return %2, %c0_i32_0 : i32, i32
  }
  func.func @transform_2(%arg0: i32, %arg1: i32) -> (i32, i32, i32) {
    %c0_i32 = arith.constant 0 : i32
    %c0_i32_0 = arith.constant 0 : i32
    %c0_i32_1 = arith.constant 0 : i32
    return %arg0, %c0_i32, %c0_i32_0 : i32, i32, i32
  }
}

</mosaic_0001>

<llo_original>
// kernel: tpu_custom_call.1
$region0: #{tpu_custom_call.1}
  #allocation0 [shape = 'u32[]', space=smem, size = 0x4, offset = 0x4, fixed_abs, tag = 'smem constant byte address 0x4 - core index']
  #allocation1 [shape = 'u32[72,128]{1,0:T(1,128)}', space=vmem, size = 0x9000, scoped, tag = 'internal scratch']
  %s0 = inlined_call_operand.hbm [shape: f32[1152,128], index: 0, kind: input, shape index: {}]
  %s1 = inlined_call_operand.hbm [shape: f32[1152,128], index: 1, kind: input, shape index: {}]
  %s2 = inlined_call_operand.hbm [shape: f32[1,8,128], index: 2, kind: output, shape index: {}]
  %s3 = sld [smem:[#allocation0]]
  $region38: #{tpu_custom_call.1} parent=0
    _
  %s5 = ssub.s32 1, %s3
  %s6 = scalar_select 0, %s5, %s3
  $region1: #{tpu_custom_call.1} parent=0
    #allocation2 [shape = 'u8[589824]{0}', space=vmem, size = 0x90000, scoped, tag = 'input window, operand 0, single buffered']
    #allocation3 [shape = 's32[1]{0}', space=sflag, size = 0x4, scoped, tag = 'scoped memory for tpu_custom_call.1']
    #allocation4 [shape = 's32[1]{0}', space=sflag, size = 0x4, scoped, tag = 'scoped memory for tpu_custom_call.1']
    #allocation5 [shape = 'u8[589824]{0}', space=vmem, size = 0x90000, scoped, tag = 'input window, operand 1, single buffered']
    #allocation6 [shape = 's32[1]{0}', space=sflag, size = 0x4, scoped, tag = 'scoped memory for tpu_custom_call.1']
    #allocation7 [shape = 'u8[4096]{0}', space=vmem, size = 0x1000, scoped, tag = 'output window, operand 0, single buffered']
    %7 = vsyncpa [#allocation3], 0
    %8 = vsyncpa [#allocation6], 0
    %9 = vsyncpa [#allocation4], 0
    // Predicated region
    $region2: #{tpu_custom_call.1} parent=1 // pred_check
      _
    $region3: #{tpu_custom_call.1} parent=1 // pred_check_branch
      %11 = sbr.rel (0) target = $region5
    $region4: #{tpu_custom_call.1} parent=1 // pred_region
      %s12 = sadd.s32 0, 0
      %p13 = scmp.lt.s32.totalorder %s12, 0
      %s14 = scalar_select %p13, %s12, 0
      %s15 = smul.u32 144, %s14
      %17 = vsyncadd [#allocation3], 0
      %s18 = smul.addr %s15, 8
      %s19 = scalar_lea.hbm %s0, %s18
      %s20 = sshll.u32 %s19, 4
      %s21 = int_to_ptr.hbm [resolvable:$true] %s20
      %s22 = sshll.u32 [#allocation2], 4
      %s23 = int_to_ptr.vmem [resolvable:$true] %s22
      %28 = dma.hbm_to_vmem [thread:$0]  %s21, 18432, %s23, [#allocation3], 128, 128, 8
    $region5: #{tpu_custom_call.1} parent=1 // pred_fallthru
      _
    // Predicated region
    $region6: #{tpu_custom_call.1} parent=1 // pred_check
      _
    $region7: #{tpu_custom_call.1} parent=1 // pred_check_branch
      %30 = sbr.rel (0) target = $region9
    $region8: #{tpu_custom_call.1} parent=1 // pred_region
      %s31 = sadd.s32 0, 0
      %p32 = scmp.lt.s32.totalorder %s31, 0
      %s33 = scalar_select %p32, %s31, 0
      %s34 = smul.u32 144, %s33
      %36 = vsyncadd [#allocation6], 0
      %s37 = smul.addr %s34, 8
      %s38 = scalar_lea.hbm %s1, %s37
      %s39 = sshll.u32 %s38, 4
      %s40 = int_to_ptr.hbm [resolvable:$true] %s39
      %s41 = sshll.u32 [#allocation5], 4
      %s42 = int_to_ptr.vmem [resolvable:$true] %s41
      %47 = dma.hbm_to_vmem [thread:$0]  %s40, 18432, %s42, [#allocation6], 128, 128, 8
    $region9: #{tpu_custom_call.1} parent=1 // pred_fallthru
      _
    // Predicated region
    $region10: #{tpu_custom_call.1} parent=1 // pred_check
      _
    $region11: #{tpu_custom_call.1} parent=1 // pred_check_branch
      %49 = sbr.rel (0) target = $region13
    $region12: #{tpu_custom_call.1} parent=1 // pred_region
      %51 = dma.done [#allocation3], 18432
    $region13: #{tpu_custom_call.1} parent=1 // pred_fallthru
      _
    // Predicated region
    $region14: #{tpu_custom_call.1} parent=1 // pred_check
      _
    $region15: #{tpu_custom_call.1} parent=1 // pred_check_branch
      %53 = sbr.rel (0) target = $region17
    $region16: #{tpu_custom_call.1} parent=1 // pred_region
      %55 = dma.done [#allocation6], 18432
    $region17: #{tpu_custom_call.1} parent=1 // pred_fallthru
      _
    %s56 = sadd.s32 0, 0
    %p57 = scmp.lt.s32.totalorder %s56, 0
    %s58 = scalar_select %p57, %s56, 0
    %s59 = smul.u32 144, %s58
    %s60 = sadd.s32 0, 0
    %p61 = scmp.lt.s32.totalorder %s60, 0
    %s62 = scalar_select %p61, %s60, 0
    %s63 = smul.u32 144, %s62
    %p64 = scmp.eq.s32.totalorder 0, 0
    // Predicated region
    $region18: #{tpu_custom_call.1} parent=1 // pred_check
      %p65 = pneg %p64
    $region19: #{tpu_custom_call.1} parent=1 // pred_check_branch
      %67 = sbr.rel (%p65) target = $region21
    $region20: #{tpu_custom_call.1} parent=1 // pred_region
      %68 = vst [vmem:[#allocation7] sm:$0xff] 0.0
    $region21: #{tpu_custom_call.1} parent=1 // pred_fallthru
      _
    %v69 = vld [vmem:[#allocation2] sm:$0xff]
    %v70 = vld [vmem:[#allocation2 + $0x8] sm:$0xff]
    %v71 = vld [vmem:[#allocation2 + $0x10] sm:$0xff]
    %v72 = vld [vmem:[#allocation2 + $0x18] sm:$0xff]
    %v73 = vld [vmem:[#allocation2 + $0x20] sm:$0xff]
    %v74 = vld [vmem:[#allocation2 + $0x28] sm:$0xff]
    %v75 = vld [vmem:[#allocation2 + $0x30] sm:$0xff]
    %v76 = vld [vmem:[#allocation2 + $0x38] sm:$0xff]
    %v77 = vld [vmem:[#allocation2 + $0x40] sm:$0xff]
    %v78 = vld [vmem:[#allocation2 + $0x48] sm:$0xff]
    %v79 = vld [vmem:[#allocation2 + $0x50] sm:$0xff]
    %v80 = vld [vmem:[#allocation2 + $0x58] sm:$0xff]
    %v81 = vld [vmem:[#allocation2 + $0x60] sm:$0xff]
    %v82 = vld [vmem:[#allocation2 + $0x68] sm:$0xff]
    %v83 = vld [vmem:[#allocation2 + $0x70] sm:$0xff]
    %v84 = vld [vmem:[#allocation2 + $0x78] sm:$0xff]
    %v85 = vld [vmem:[#allocation2 + $0x80] sm:$0xff]
    %v86 = vld [vmem:[#allocation2 + $0x88] sm:$0xff]
    %v87 = vld [vmem:[#allocation2 + $0x90] sm:$0xff]
    %v88 = vld [vmem:[#allocation2 + $0x98] sm:$0xff]
    %v89 = vld [vmem:[#allocation2 + $0xa0] sm:$0xff]
    %v90 = vld [vmem:[#allocation2 + $0xa8] sm:$0xff]
    %v91 = vld [vmem:[#allocation2 + $0xb0] sm:$0xff]
    %v92 = vld [vmem:[#allocation2 + $0xb8] sm:$0xff]
    %v93 = vld [vmem:[#allocation2 + $0xc0] sm:$0xff]
    %v94 = vld [vmem:[#allocation2 + $0xc8] sm:$0xff]
    %v95 = vld [vmem:[#allocation2 + $0xd0] sm:$0xff]
    %v96 = vld [vmem:[#allocation2 + $0xd8] sm:$0xff]
    %v97 = vld [vmem:[#allocation2 + $0xe0] sm:$0xff]
    %v98 = vld [vmem:[#allocation2 + $0xe8] sm:$0xff]
    %v99 = vld [vmem:[#allocation2 + $0xf0] sm:$0xff]
    %v100 = vld [vmem:[#allocation2 + $0xf8] sm:$0xff]
    %v101 = vld [vmem:[#allocation2 + $0x100] sm:$0xff]
    %v102 = vld [vmem:[#allocation2 + $0x108] sm:$0xff]
    %v103 = vld [vmem:[#allocation2 + $0x110] sm:$0xff]
    %v104 = vld [vmem:[#allocation2 + $0x118] sm:$0xff]
    %v105 = vld [vmem:[#allocation2 + $0x120] sm:$0xff]
    %v106 = vld [vmem:[#allocation2 + $0x128] sm:$0xff]
    %v107 = vld [vmem:[#allocation2 + $0x130] sm:$0xff]
    %v108 = vld [vmem:[#allocation2 + $0x138] sm:$0xff]
    %v109 = vld [vmem:[#allocation2 + $0x140] sm:$0xff]
    %v110 = vld [vmem:[#allocation2 + $0x148] sm:$0xff]
    %v111 = vld [vmem:[#allocation2 + $0x150] sm:$0xff]
    %v112 = vld [vmem:[#allocation2 + $0x158] sm:$0xff]
    %v113 = vld [vmem:[#allocation2 + $0x160] sm:$0xff]
    %v114 = vld [vmem:[#allocation2 + $0x168] sm:$0xff]
    %v115 = vld [vmem:[#allocation2 + $0x170] sm:$0xff]
    %v116 = vld [vmem:[#allocation2 + $0x178] sm:$0xff]
    %v117 = vld [vmem:[#allocation2 + $0x180] sm:$0xff]
    %v118 = vld [vmem:[#allocation2 + $0x188] sm:$0xff]
    %v119 = vld [vmem:[#allocation2 + $0x190] sm:$0xff]
    %v120 = vld [vmem:[#allocation2 + $0x198] sm:$0xff]
    %v121 = vld [vmem:[#allocation2 + $0x1a0] sm:$0xff]
    %v122 = vld [vmem:[#allocation2 + $0x1a8] sm:$0xff]
    %v123 = vld [vmem:[#allocation2 + $0x1b0] sm:$0xff]
    %v124 = vld [vmem:[#allocation2 + $0x1b8] sm:$0xff]
    %v125 = vld [vmem:[#allocation2 + $0x1c0] sm:$0xff]
    %v126 = vld [vmem:[#allocation2 + $0x1c8] sm:$0xff]
    %v127 = vld [vmem:[#allocation2 + $0x1d0] sm:$0xff]
    %v128 = vld [vmem:[#allocation2 + $0x1d8] sm:$0xff]
    %v129 = vld [vmem:[#allocation2 + $0x1e0] sm:$0xff]
    %v130 = vld [vmem:[#allocation2 + $0x1e8] sm:$0xff]
    %v131 = vld [vmem:[#allocation2 + $0x1f0] sm:$0xff]
    %v132 = vld [vmem:[#allocation2 + $0x1f8] sm:$0xff]
    %v133 = vld [vmem:[#allocation2 + $0x200] sm:$0xff]
    %v134 = vld [vmem:[#allocation2 + $0x208] sm:$0xff]
    %v135 = vld [vmem:[#allocation2 + $0x210] sm:$0xff]
    %v136 = vld [vmem:[#allocation2 + $0x218] sm:$0xff]
    %v137 = vld [vmem:[#allocation2 + $0x220] sm:$0xff]
    %v138 = vld [vmem:[#allocation2 + $0x228] sm:$0xff]
    %v139 = vld [vmem:[#allocation2 + $0x230] sm:$0xff]
    %v140 = vld [vmem:[#allocation2 + $0x238] sm:$0xff]
    %v141 = vld [vmem:[#allocation2 + $0x240] sm:$0xff]
    %v142 = vld [vmem:[#allocation2 + $0x248] sm:$0xff]
    %v143 = vld [vmem:[#allocation2 + $0x250] sm:$0xff]
    %v144 = vld [vmem:[#allocation2 + $0x258] sm:$0xff]
    %v145 = vld [vmem:[#allocation2 + $0x260] sm:$0xff]
    %v146 = vld [vmem:[#allocation2 + $0x268] sm:$0xff]
    %v147 = vld [vmem:[#allocation2 + $0x270] sm:$0xff]
    %v148 = vld [vmem:[#allocation2 + $0x278] sm:$0xff]
    %v149 = vld [vmem:[#allocation2 + $0x280] sm:$0xff]
    %v150 = vld [vmem:[#allocation2 + $0x288] sm:$0xff]
    %v151 = vld [vmem:[#allocation2 + $0x290] sm:$0xff]
    %v152 = vld [vmem:[#allocation2 + $0x298] sm:$0xff]
    %v153 = vld [vmem:[#allocation2 + $0x2a0] sm:$0xff]
    %v154 = vld [vmem:[#allocation2 + $0x2a8] sm:$0xff]
    %v155 = vld [vmem:[#allocation2 + $0x2b0] sm:$0xff]
    %v156 = vld [vmem:[#allocation2 + $0x2b8] sm:$0xff]
    %v157 = vld [vmem:[#allocation2 + $0x2c0] sm:$0xff]
    %v158 = vld [vmem:[#allocation2 + $0x2c8] sm:$0xff]
    %v159 = vld [vmem:[#allocation2 + $0x2d0] sm:$0xff]
    %v160 = vld [vmem:[#allocation2 + $0x2d8] sm:$0xff]
    %v161 = vld [vmem:[#allocation2 + $0x2e0] sm:$0xff]
    %v162 = vld [vmem:[#allocation2 + $0x2e8] sm:$0xff]
    %v163 = vld [vmem:[#allocation2 + $0x2f0] sm:$0xff]
    %v164 = vld [vmem:[#allocation2 + $0x2f8] sm:$0xff]
    %v165 = vld [vmem:[#allocation2 + $0x300] sm:$0xff]
    %v166 = vld [vmem:[#allocation2 + $0x308] sm:$0xff]
    %v167 = vld [vmem:[#allocation2 + $0x310] sm:$0xff]
    %v168 = vld [vmem:[#allocation2 + $0x318] sm:$0xff]
    %v169 = vld [vmem:[#allocation2 + $0x320] sm:$0xff]
    %v170 = vld [vmem:[#allocation2 + $0x328] sm:$0xff]
    %v171 = vld [vmem:[#allocation2 + $0x330] sm:$0xff]
    %v172 = vld [vmem:[#allocation2 + $0x338] sm:$0xff]
    %v173 = vld [vmem:[#allocation2 + $0x340] sm:$0xff]
    %v174 = vld [vmem:[#allocation2 + $0x348] sm:$0xff]
    %v175 = vld [vmem:[#allocation2 + $0x350] sm:$0xff]
    %v176 = vld [vmem:[#allocation2 + $0x358] sm:$0xff]
    %v177 = vld [vmem:[#allocation2 + $0x360] sm:$0xff]
    %v178 = vld [vmem:[#allocation2 + $0x368] sm:$0xff]
    %v179 = vld [vmem:[#allocation2 + $0x370] sm:$0xff]
    %v180 = vld [vmem:[#allocation2 + $0x378] sm:$0xff]
    %v181 = vld [vmem:[#allocation2 + $0x380] sm:$0xff]
    %v182 = vld [vmem:[#allocation2 + $0x388] sm:$0xff]
    %v183 = vld [vmem:[#allocation2 + $0x390] sm:$0xff]
    %v184 = vld [vmem:[#allocation2 + $0x398] sm:$0xff]
    %v185 = vld [vmem:[#allocation2 + $0x3a0] sm:$0xff]
    %v186 = vld [vmem:[#allocation2 + $0x3a8] sm:$0xff]
    %v187 = vld [vmem:[#allocation2 + $0x3b0] sm:$0xff]
    %v188 = vld [vmem:[#allocation2 + $0x3b8] sm:$0xff]
    %v189 = vld [vmem:[#allocation2 + $0x3c0] sm:$0xff]
    %v190 = vld [vmem:[#allocation2 + $0x3c8] sm:$0xff]
    %v191 = vld [vmem:[#allocation2 + $0x3d0] sm:$0xff]
    %v192 = vld [vmem:[#allocation2 + $0x3d8] sm:$0xff]
    %v193 = vld [vmem:[#allocation2 + $0x3e0] sm:$0xff]
    %v194 = vld [vmem:[#allocation2 + $0x3e8] sm:$0xff]
    %v195 = vld [vmem:[#allocation2 + $0x3f0] sm:$0xff]
    %v196 = vld [vmem:[#allocation2 + $0x3f8] sm:$0xff]
    %v197 = vld [vmem:[#allocation2 + $0x400] sm:$0xff]
    %v198 = vld [vmem:[#allocation2 + $0x408] sm:$0xff]
    %v199 = vld [vmem:[#allocation2 + $0x410] sm:$0xff]
    %v200 = vld [vmem:[#allocation2 + $0x418] sm:$0xff]
    %v201 = vld [vmem:[#allocation2 + $0x420] sm:$0xff]
    %v202 = vld [vmem:[#allocation2 + $0x428] sm:$0xff]
    %v203 = vld [vmem:[#allocation2 + $0x430] sm:$0xff]
    %v204 = vld [vmem:[#allocation2 + $0x438] sm:$0xff]
    %v205 = vld [vmem:[#allocation2 + $0x440] sm:$0xff]
    %v206 = vld [vmem:[#allocation2 + $0x448] sm:$0xff]
    %v207 = vld [vmem:[#allocation2 + $0x450] sm:$0xff]
    %v208 = vld [vmem:[#allocation2 + $0x458] sm:$0xff]
    %v209 = vld [vmem:[#allocation2 + $0x460] sm:$0xff]
    %v210 = vld [vmem:[#allocation2 + $0x468] sm:$0xff]
    %v211 = vld [vmem:[#allocation2 + $0x470] sm:$0xff]
    %v212 = vld [vmem:[#allocation2 + $0x478] sm:$0xff]
    %v213 = vld [vmem:[#allocation5] sm:$0xff]
    %v214 = vld [vmem:[#allocation5 + $0x8] sm:$0xff]
    %v215 = vld [vmem:[#allocation5 + $0x10] sm:$0xff]
    %v216 = vld [vmem:[#allocation5 + $0x18] sm:$0xff]
    %v217 = vld [vmem:[#allocation5 + $0x20] sm:$0xff]
    %v218 = vld [vmem:[#allocation5 + $0x28] sm:$0xff]
    %v219 = vld [vmem:[#allocation5 + $0x30] sm:$0xff]
    %v220 = vld [vmem:[#allocation5 + $0x38] sm:$0xff]
    %v221 = vld [vmem:[#allocation5 + $0x40] sm:$0xff]
    %v222 = vld [vmem:[#allocation5 + $0x48] sm:$0xff]
    %v223 = vld [vmem:[#allocation5 + $0x50] sm:$0xff]
    %v224 = vld [vmem:[#allocation5 + $0x58] sm:$0xff]
    %v225 = vld [vmem:[#allocation5 + $0x60] sm:$0xff]
    %v226 = vld [vmem:[#allocation5 + $0x68] sm:$0xff]
    %v227 = vld [vmem:[#allocation5 + $0x70] sm:$0xff]
    %v228 = vld [vmem:[#allocation5 + $0x78] sm:$0xff]
    %v229 = vld [vmem:[#allocation5 + $0x80] sm:$0xff]
    %v230 = vld [vmem:[#allocation5 + $0x88] sm:$0xff]
    %v231 = vld [vmem:[#allocation5 + $0x90] sm:$0xff]
    %v232 = vld [vmem:[#allocation5 + $0x98] sm:$0xff]
    %v233 = vld [vmem:[#allocation5 + $0xa0] sm:$0xff]
    %v234 = vld [vmem:[#allocation5 + $0xa8] sm:$0xff]
    %v235 = vld [vmem:[#allocation5 + $0xb0] sm:$0xff]
    %v236 = vld [vmem:[#allocation5 + $0xb8] sm:$0xff]
    %v237 = vld [vmem:[#allocation5 + $0xc0] sm:$0xff]
    %v238 = vld [vmem:[#allocation5 + $0xc8] sm:$0xff]
    %v239 = vld [vmem:[#allocation5 + $0xd0] sm:$0xff]
    %v240 = vld [vmem:[#allocation5 + $0xd8] sm:$0xff]
    %v241 = vld [vmem:[#allocation5 + $0xe0] sm:$0xff]
    %v242 = vld [vmem:[#allocation5 + $0xe8] sm:$0xff]
    %v243 = vld [vmem:[#allocation5 + $0xf0] sm:$0xff]
    %v244 = vld [vmem:[#allocation5 + $0xf8] sm:$0xff]
    %v245 = vld [vmem:[#allocation5 + $0x100] sm:$0xff]
    %v246 = vld [vmem:[#allocation5 + $0x108] sm:$0xff]
    %v247 = vld [vmem:[#allocation5 + $0x110] sm:$0xff]
    %v248 = vld [vmem:[#allocation5 + $0x118] sm:$0xff]
    %v249 = vld [vmem:[#allocation5 + $0x120] sm:$0xff]
    %v250 = vld [vmem:[#allocation5 + $0x128] sm:$0xff]
    %v251 = vld [vmem:[#allocation5 + $0x130] sm:$0xff]
    %v252 = vld [vmem:[#allocation5 + $0x138] sm:$0xff]
    %v253 = vld [vmem:[#allocation5 + $0x140] sm:$0xff]
    %v254 = vld [vmem:[#allocation5 + $0x148] sm:$0xff]
    %v255 = vld [vmem:[#allocation5 + $0x150] sm:$0xff]
    %v256 = vld [vmem:[#allocation5 + $0x158] sm:$0xff]
    %v257 = vld [vmem:[#allocation5 + $0x160] sm:$0xff]
    %v258 = vld [vmem:[#allocation5 + $0x168] sm:$0xff]
    %v259 = vld [vmem:[#allocation5 + $0x170] sm:$0xff]
    %v260 = vld [vmem:[#allocation5 + $0x178] sm:$0xff]
    %v261 = vld [vmem:[#allocation5 + $0x180] sm:$0xff]
    %v262 = vld [vmem:[#allocation5 + $0x188] sm:$0xff]
    %v263 = vld [vmem:[#allocation5 + $0x190] sm:$0xff]
    %v264 = vld [vmem:[#allocation5 + $0x198] sm:$0xff]
    %v265 = vld [vmem:[#allocation5 + $0x1a0] sm:$0xff]
    %v266 = vld [vmem:[#allocation5 + $0x1a8] sm:$0xff]
    %v267 = vld [vmem:[#allocation5 + $0x1b0] sm:$0xff]
    %v268 = vld [vmem:[#allocation5 + $0x1b8] sm:$0xff]
    %v269 = vld [vmem:[#allocation5 + $0x1c0] sm:$0xff]
    %v270 = vld [vmem:[#allocation5 + $0x1c8] sm:$0xff]
    %v271 = vld [vmem:[#allocation5 + $0x1d0] sm:$0xff]
    %v272 = vld [vmem:[#allocation5 + $0x1d8] sm:$0xff]
    %v273 = vld [vmem:[#allocation5 + $0x1e0] sm:$0xff]
    %v274 = vld [vmem:[#allocation5 + $0x1e8] sm:$0xff]
    %v275 = vld [vmem:[#allocation5 + $0x1f0] sm:$0xff]
    %v276 = vld [vmem:[#allocation5 + $0x1f8] sm:$0xff]
    %v277 = vld [vmem:[#allocation5 + $0x200] sm:$0xff]
    %v278 = vld [vmem:[#allocation5 + $0x208] sm:$0xff]
    %v279 = vld [vmem:[#allocation5 + $0x210] sm:$0xff]
    %v280 = vld [vmem:[#allocation5 + $0x218] sm:$0xff]
    %v281 = vld [vmem:[#allocation5 + $0x220] sm:$0xff]
    %v282 = vld [vmem:[#allocation5 + $0x228] sm:$0xff]
    %v283 = vld [vmem:[#allocation5 + $0x230] sm:$0xff]
    %v284 = vld [vmem:[#allocation5 + $0x238] sm:$0xff]
    %v285 = vld [vmem:[#allocation5 + $0x240] sm:$0xff]
    %v286 = vld [vmem:[#allocation5 + $0x248] sm:$0xff]
    %v287 = vld [vmem:[#allocation5 + $0x250] sm:$0xff]
    %v288 = vld [vmem:[#allocation5 + $0x258] sm:$0xff]
    %v289 = vld [vmem:[#allocation5 + $0x260] sm:$0xff]
    %v290 = vld [vmem:[#allocation5 + $0x268] sm:$0xff]
    %v291 = vld [vmem:[#allocation5 + $0x270] sm:$0xff]
    %v292 = vld [vmem:[#allocation5 + $0x278] sm:$0xff]
    %v293 = vld [vmem:[#allocation5 + $0x280] sm:$0xff]
    %v294 = vld [vmem:[#allocation5 + $0x288] sm:$0xff]
    %v295 = vld [vmem:[#allocation5 + $0x290] sm:$0xff]
    %v296 = vld [vmem:[#allocation5 + $0x298] sm:$0xff]
    %v297 = vld [vmem:[#allocation5 + $0x2a0] sm:$0xff]
    %v298 = vld [vmem:[#allocation5 + $0x2a8] sm:$0xff]
    %v299 = vld [vmem:[#allocation5 + $0x2b0] sm:$0xff]
    %v300 = vld [vmem:[#allocation5 + $0x2b8] sm:$0xff]
    %v301 = vld [vmem:[#allocation5 + $0x2c0] sm:$0xff]
    %v302 = vld [vmem:[#allocation5 + $0x2c8] sm:$0xff]
    %v303 = vld [vmem:[#allocation5 + $0x2d0] sm:$0xff]
    %v304 = vld [vmem:[#allocation5 + $0x2d8] sm:$0xff]
    %v305 = vld [vmem:[#allocation5 + $0x2e0] sm:$0xff]
    %v306 = vld [vmem:[#allocation5 + $0x2e8] sm:$0xff]
    %v307 = vld [vmem:[#allocation5 + $0x2f0] sm:$0xff]
    %v308 = vld [vmem:[#allocation5 + $0x2f8] sm:$0xff]
    %v309 = vld [vmem:[#allocation5 + $0x300] sm:$0xff]
    %v310 = vld [vmem:[#allocation5 + $0x308] sm:$0xff]
    %v311 = vld [vmem:[#allocation5 + $0x310] sm:$0xff]
    %v312 = vld [vmem:[#allocation5 + $0x318] sm:$0xff]
    %v313 = vld [vmem:[#allocation5 + $0x320] sm:$0xff]
    %v314 = vld [vmem:[#allocation5 + $0x328] sm:$0xff]
    %v315 = vld [vmem:[#allocation5 + $0x330] sm:$0xff]
    %v316 = vld [vmem:[#allocation5 + $0x338] sm:$0xff]
    %v317 = vld [vmem:[#allocation5 + $0x340] sm:$0xff]
    %v318 = vld [vmem:[#allocation5 + $0x348] sm:$0xff]
    %v319 = vld [vmem:[#allocation5 + $0x350] sm:$0xff]
    %v320 = vld [vmem:[#allocation5 + $0x358] sm:$0xff]
    %v321 = vld [vmem:[#allocation5 + $0x360] sm:$0xff]
    %v322 = vld [vmem:[#allocation5 + $0x368] sm:$0xff]
    %v323 = vld [vmem:[#allocation5 + $0x370] sm:$0xff]
    %v324 = vld [vmem:[#allocation5 + $0x378] sm:$0xff]
    %v325 = vld [vmem:[#allocation5 + $0x380] sm:$0xff]
    %v326 = vld [vmem:[#allocation5 + $0x388] sm:$0xff]
    %v327 = vld [vmem:[#allocation5 + $0x390] sm:$0xff]
    %v328 = vld [vmem:[#allocation5 + $0x398] sm:$0xff]
    %v329 = vld [vmem:[#allocation5 + $0x3a0] sm:$0xff]
    %v330 = vld [vmem:[#allocation5 + $0x3a8] sm:$0xff]
    %v331 = vld [vmem:[#allocation5 + $0x3b0] sm:$0xff]
    %v332 = vld [vmem:[#allocation5 + $0x3b8] sm:$0xff]
    %v333 = vld [vmem:[#allocation5 + $0x3c0] sm:$0xff]
    %v334 = vld [vmem:[#allocation5 + $0x3c8] sm:$0xff]
    %v335 = vld [vmem:[#allocation5 + $0x3d0] sm:$0xff]
    %v336 = vld [vmem:[#allocation5 + $0x3d8] sm:$0xff]
    %v337 = vld [vmem:[#allocation5 + $0x3e0] sm:$0xff]
    %v338 = vld [vmem:[#allocation5 + $0x3e8] sm:$0xff]
    %v339 = vld [vmem:[#allocation5 + $0x3f0] sm:$0xff]
    %v340 = vld [vmem:[#allocation5 + $0x3f8] sm:$0xff]
    %v341 = vld [vmem:[#allocation5 + $0x400] sm:$0xff]
    %v342 = vld [vmem:[#allocation5 + $0x408] sm:$0xff]
    %v343 = vld [vmem:[#allocation5 + $0x410] sm:$0xff]
    %v344 = vld [vmem:[#allocation5 + $0x418] sm:$0xff]
    %v345 = vld [vmem:[#allocation5 + $0x420] sm:$0xff]
    %v346 = vld [vmem:[#allocation5 + $0x428] sm:$0xff]
    %v347 = vld [vmem:[#allocation5 + $0x430] sm:$0xff]
    %v348 = vld [vmem:[#allocation5 + $0x438] sm:$0xff]
    %v349 = vld [vmem:[#allocation5 + $0x440] sm:$0xff]
    %v350 = vld [vmem:[#allocation5 + $0x448] sm:$0xff]
    %v351 = vld [vmem:[#allocation5 + $0x450] sm:$0xff]
    %v352 = vld [vmem:[#allocation5 + $0x458] sm:$0xff]
    %v353 = vld [vmem:[#allocation5 + $0x460] sm:$0xff]
    %v354 = vld [vmem:[#allocation5 + $0x468] sm:$0xff]
    %v355 = vld [vmem:[#allocation5 + $0x470] sm:$0xff]
    %v356 = vld [vmem:[#allocation5 + $0x478] sm:$0xff]
    %v357 = vmax.f32 %v69, 0.0
    %v358 = vmax.f32 %v70, 0.0
    %v359 = vmax.f32 %v71, 0.0
    %v360 = vmax.f32 %v72, 0.0
    %v361 = vmax.f32 %v73, 0.0
    %v362 = vmax.f32 %v74, 0.0
    %v363 = vmax.f32 %v75, 0.0
    %v364 = vmax.f32 %v76, 0.0
    %v365 = vmax.f32 %v77, 0.0
    %v366 = vmax.f32 %v78, 0.0
    %v367 = vmax.f32 %v79, 0.0
    %v368 = vmax.f32 %v80, 0.0
    %v369 = vmax.f32 %v81, 0.0
    %v370 = vmax.f32 %v82, 0.0
    %v371 = vmax.f32 %v83, 0.0
    %v372 = vmax.f32 %v84, 0.0
    %v373 = vmax.f32 %v85, 0.0
    %v374 = vmax.f32 %v86, 0.0
    %v375 = vmax.f32 %v87, 0.0
    %v376 = vmax.f32 %v88, 0.0
    %v377 = vmax.f32 %v89, 0.0
    %v378 = vmax.f32 %v90, 0.0
    %v379 = vmax.f32 %v91, 0.0
    %v380 = vmax.f32 %v92, 0.0
    %v381 = vmax.f32 %v93, 0.0
    %v382 = vmax.f32 %v94, 0.0
    %v383 = vmax.f32 %v95, 0.0
    %v384 = vmax.f32 %v96, 0.0
    %v385 = vmax.f32 %v97, 0.0
    %v386 = vmax.f32 %v98, 0.0
    %v387 = vmax.f32 %v99, 0.0
    %v388 = vmax.f32 %v100, 0.0
    %v389 = vmax.f32 %v101, 0.0
    %v390 = vmax.f32 %v102, 0.0
    %v391 = vmax.f32 %v103, 0.0
    %v392 = vmax.f32 %v104, 0.0
    %v393 = vmax.f32 %v105, 0.0
    %v394 = vmax.f32 %v106, 0.0
    %v395 = vmax.f32 %v107, 0.0
    %v396 = vmax.f32 %v108, 0.0
    %v397 = vmax.f32 %v109, 0.0
    %v398 = vmax.f32 %v110, 0.0
    %v399 = vmax.f32 %v111, 0.0
    %v400 = vmax.f32 %v112, 0.0
    %v401 = vmax.f32 %v113, 0.0
    %v402 = vmax.f32 %v114, 0.0
    %v403 = vmax.f32 %v115, 0.0
    %v404 = vmax.f32 %v116, 0.0
    %v405 = vmax.f32 %v117, 0.0
    %v406 = vmax.f32 %v118, 0.0
    %v407 = vmax.f32 %v119, 0.0
    %v408 = vmax.f32 %v120, 0.0
    %v409 = vmax.f32 %v121, 0.0
    %v410 = vmax.f32 %v122, 0.0
    %v411 = vmax.f32 %v123, 0.0
    %v412 = vmax.f32 %v124, 0.0
    %v413 = vmax.f32 %v125, 0.0
    %v414 = vmax.f32 %v126, 0.0
    %v415 = vmax.f32 %v127, 0.0
    %v416 = vmax.f32 %v128, 0.0
    %v417 = vmax.f32 %v129, 0.0
    %v418 = vmax.f32 %v130, 0.0
    %v419 = vmax.f32 %v131, 0.0
    %v420 = vmax.f32 %v132, 0.0
    %v421 = vmax.f32 %v133, 0.0
    %v422 = vmax.f32 %v134, 0.0
    %v423 = vmax.f32 %v135, 0.0
    %v424 = vmax.f32 %v136, 0.0
    %v425 = vmax.f32 %v137, 0.0
    %v426 = vmax.f32 %v138, 0.0
    %v427 = vmax.f32 %v139, 0.0
    %v428 = vmax.f32 %v140, 0.0
    %v429 = vmax.f32 %v141, 0.0
    %v430 = vmax.f32 %v142, 0.0
    %v431 = vmax.f32 %v143, 0.0
    %v432 = vmax.f32 %v144, 0.0
    %v433 = vmax.f32 %v145, 0.0
    %v434 = vmax.f32 %v146, 0.0
    %v435 = vmax.f32 %v147, 0.0
    %v436 = vmax.f32 %v148, 0.0
    %v437 = vmax.f32 %v149, 0.0
    %v438 = vmax.f32 %v150, 0.0
    %v439 = vmax.f32 %v151, 0.0
    %v440 = vmax.f32 %v152, 0.0
    %v441 = vmax.f32 %v153, 0.0
    %v442 = vmax.f32 %v154, 0.0
    %v443 = vmax.f32 %v155, 0.0
    %v444 = vmax.f32 %v156, 0.0
    %v445 = vmax.f32 %v157, 0.0
    %v446 = vmax.f32 %v158, 0.0
    %v447 = vmax.f32 %v159, 0.0
    %v448 = vmax.f32 %v160, 0.0
    %v449 = vmax.f32 %v161, 0.0
    %v450 = vmax.f32 %v162, 0.0
    %v451 = vmax.f32 %v163, 0.0
    %v452 = vmax.f32 %v164, 0.0
    %v453 = vmax.f32 %v165, 0.0
    %v454 = vmax.f32 %v166, 0.0
    %v455 = vmax.f32 %v167, 0.0
    %v456 = vmax.f32 %v168, 0.0
    %v457 = vmax.f32 %v169, 0.0
    %v458 = vmax.f32 %v170, 0.0
    %v459 = vmax.f32 %v171, 0.0
    %v460 = vmax.f32 %v172, 0.0
    %v461 = vmax.f32 %v173, 0.0
    %v462 = vmax.f32 %v174, 0.0
    %v463 = vmax.f32 %v175, 0.0
    %v464 = vmax.f32 %v176, 0.0
    %v465 = vmax.f32 %v177, 0.0
    %v466 = vmax.f32 %v178, 0.0
    %v467 = vmax.f32 %v179, 0.0
    %v468 = vmax.f32 %v180, 0.0
    %v469 = vmax.f32 %v181, 0.0
    %v470 = vmax.f32 %v182, 0.0
    %v471 = vmax.f32 %v183, 0.0
    %v472 = vmax.f32 %v184, 0.0
    %v473 = vmax.f32 %v185, 0.0
    %v474 = vmax.f32 %v186, 0.0
    %v475 = vmax.f32 %v187, 0.0
    %v476 = vmax.f32 %v188, 0.0
    %v477 = vmax.f32 %v189, 0.0
    %v478 = vmax.f32 %v190, 0.0
    %v479 = vmax.f32 %v191, 0.0
    %v480 = vmax.f32 %v192, 0.0
    %v481 = vmax.f32 %v193, 0.0
    %v482 = vmax.f32 %v194, 0.0
    %v483 = vmax.f32 %v195, 0.0
    %v484 = vmax.f32 %v196, 0.0
    %v485 = vmax.f32 %v197, 0.0
    %v486 = vmax.f32 %v198, 0.0
    %v487 = vmax.f32 %v199, 0.0
    %v488 = vmax.f32 %v200, 0.0
    %v489 = vmax.f32 %v201, 0.0
    %v490 = vmax.f32 %v202, 0.0
    %v491 = vmax.f32 %v203, 0.0
    %v492 = vmax.f32 %v204, 0.0
    %v493 = vmax.f32 %v205, 0.0
    %v494 = vmax.f32 %v206, 0.0
    %v495 = vmax.f32 %v207, 0.0
    %v496 = vmax.f32 %v208, 0.0
    %v497 = vmax.f32 %v209, 0.0
    %v498 = vmax.f32 %v210, 0.0
    %v499 = vmax.f32 %v211, 0.0
    %v500 = vmax.f32 %v212, 0.0
    %v501 = vmul.f32 %v69, %v213
    %v502 = vmul.f32 %v70, %v214
    %v503 = vmul.f32 %v71, %v215
    %v504 = vmul.f32 %v72, %v216
    %v505 = vmul.f32 %v73, %v217
    %v506 = vmul.f32 %v74, %v218
    %v507 = vmul.f32 %v75, %v219
    %v508 = vmul.f32 %v76, %v220
    %v509 = vmul.f32 %v77, %v221
    %v510 = vmul.f32 %v78, %v222
    %v511 = vmul.f32 %v79, %v223
    %v512 = vmul.f32 %v80, %v224
    %v513 = vmul.f32 %v81, %v225
    %v514 = vmul.f32 %v82, %v226
    %v515 = vmul.f32 %v83, %v227
    %v516 = vmul.f32 %v84, %v228
    %v517 = vmul.f32 %v85, %v229
    %v518 = vmul.f32 %v86, %v230
    %v519 = vmul.f32 %v87, %v231
    %v520 = vmul.f32 %v88, %v232
    %v521 = vmul.f32 %v89, %v233
    %v522 = vmul.f32 %v90, %v234
    %v523 = vmul.f32 %v91, %v235
    %v524 = vmul.f32 %v92, %v236
    %v525 = vmul.f32 %v93, %v237
    %v526 = vmul.f32 %v94, %v238
    %v527 = vmul.f32 %v95, %v239
    %v528 = vmul.f32 %v96, %v240
    %v529 = vmul.f32 %v97, %v241
    %v530 = vmul.f32 %v98, %v242
    %v531 = vmul.f32 %v99, %v243
    %v532 = vmul.f32 %v100, %v244
    %v533 = vmul.f32 %v101, %v245
    %v534 = vmul.f32 %v102, %v246
    %v535 = vmul.f32 %v103, %v247
    %v536 = vmul.f32 %v104, %v248
    %v537 = vmul.f32 %v105, %v249
    %v538 = vmul.f32 %v106, %v250
    %v539 = vmul.f32 %v107, %v251
    %v540 = vmul.f32 %v108, %v252
    %v541 = vmul.f32 %v109, %v253
    %v542 = vmul.f32 %v110, %v254
    %v543 = vmul.f32 %v111, %v255
    %v544 = vmul.f32 %v112, %v256
    %v545 = vmul.f32 %v113, %v257
    %v546 = vmul.f32 %v114, %v258
    %v547 = vmul.f32 %v115, %v259
    %v548 = vmul.f32 %v116, %v260
    %v549 = vmul.f32 %v117, %v261
    %v550 = vmul.f32 %v118, %v262
    %v551 = vmul.f32 %v119, %v263
    %v552 = vmul.f32 %v120, %v264
    %v553 = vmul.f32 %v121, %v265
    %v554 = vmul.f32 %v122, %v266
    %v555 = vmul.f32 %v123, %v267
    %v556 = vmul.f32 %v124, %v268
    %v557 = vmul.f32 %v125, %v269
    %v558 = vmul.f32 %v126, %v270
    %v559 = vmul.f32 %v127, %v271
    %v560 = vmul.f32 %v128, %v272
    %v561 = vmul.f32 %v129, %v273
    %v562 = vmul.f32 %v130, %v274
    %v563 = vmul.f32 %v131, %v275
    %v564 = vmul.f32 %v132, %v276
    %v565 = vmul.f32 %v133, %v277
    %v566 = vmul.f32 %v134, %v278
    %v567 = vmul.f32 %v135, %v279
    %v568 = vmul.f32 %v136, %v280
    %v569 = vmul.f32 %v137, %v281
    %v570 = vmul.f32 %v138, %v282
    %v571 = vmul.f32 %v139, %v283
    %v572 = vmul.f32 %v140, %v284
    %v573 = vmul.f32 %v141, %v285
    %v574 = vmul.f32 %v142, %v286
    %v575 = vmul.f32 %v143, %v287
    %v576 = vmul.f32 %v144, %v288
    %v577 = vmul.f32 %v145, %v289
    %v578 = vmul.f32 %v146, %v290
    %v579 = vmul.f32 %v147, %v291
    %v580 = vmul.f32 %v148, %v292
    %v581 = vmul.f32 %v149, %v293
    %v582 = vmul.f32 %v150, %v294
    %v583 = vmul.f32 %v151, %v295
    %v584 = vmul.f32 %v152, %v296
    %v585 = vmul.f32 %v153, %v297
    %v586 = vmul.f32 %v154, %v298
    %v587 = vmul.f32 %v155, %v299
    %v588 = vmul.f32 %v156, %v300
    %v589 = vmul.f32 %v157, %v301
    %v590 = vmul.f32 %v158, %v302
    %v591 = vmul.f32 %v159, %v303
    %v592 = vmul.f32 %v160, %v304
    %v593 = vmul.f32 %v161, %v305
    %v594 = vmul.f32 %v162, %v306
    %v595 = vmul.f32 %v163, %v307
    %v596 = vmul.f32 %v164, %v308
    %v597 = vmul.f32 %v165, %v309
    %v598 = vmul.f32 %v166, %v310
    %v599 = vmul.f32 %v167, %v311
    %v600 = vmul.f32 %v168, %v312
    %v601 = vmul.f32 %v169, %v313
    %v602 = vmul.f32 %v170, %v314
    %v603 = vmul.f32 %v171, %v315
    %v604 = vmul.f32 %v172, %v316
    %v605 = vmul.f32 %v173, %v317
    %v606 = vmul.f32 %v174, %v318
    %v607 = vmul.f32 %v175, %v319
    %v608 = vmul.f32 %v176, %v320
    %v609 = vmul.f32 %v177, %v321
    %v610 = vmul.f32 %v178, %v322
    %v611 = vmul.f32 %v179, %v323
    %v612 = vmul.f32 %v180, %v324
    %v613 = vmul.f32 %v181, %v325
    %v614 = vmul.f32 %v182, %v326
    %v615 = vmul.f32 %v183, %v327
    %v616 = vmul.f32 %v184, %v328
    %v617 = vmul.f32 %v185, %v329
    %v618 = vmul.f32 %v186, %v330
    %v619 = vmul.f32 %v187, %v331
    %v620 = vmul.f32 %v188, %v332
    %v621 = vmul.f32 %v189, %v333
    %v622 = vmul.f32 %v190, %v334
    %v623 = vmul.f32 %v191, %v335
    %v624 = vmul.f32 %v192, %v336
    %v625 = vmul.f32 %v193, %v337
    %v626 = vmul.f32 %v194, %v338
    %v627 = vmul.f32 %v195, %v339
    %v628 = vmul.f32 %v196, %v340
    %v629 = vmul.f32 %v197, %v341
    %v630 = vmul.f32 %v198, %v342
    %v631 = vmul.f32 %v199, %v343
    %v632 = vmul.f32 %v200, %v344
    %v633 = vmul.f32 %v201, %v345
    %v634 = vmul.f32 %v202, %v346
    %v635 = vmul.f32 %v203, %v347
    %v636 = vmul.f32 %v204, %v348
    %v637 = vmul.f32 %v205, %v349
    %v638 = vmul.f32 %v206, %v350
    %v639 = vmul.f32 %v207, %v351
    %v640 = vmul.f32 %v208, %v352
    %v641 = vmul.f32 %v209, %v353
    %v642 = vmul.f32 %v210, %v354
    %v643 = vmul.f32 %v211, %v355
    %v644 = vmul.f32 %v212, %v356
    %v645 = vsub.f32 %v357, %v501
    %v646 = vsub.f32 %v358, %v502
    %v647 = vsub.f32 %v359, %v503
    %v648 = vsub.f32 %v360, %v504
    %v649 = vsub.f32 %v361, %v505
    %v650 = vsub.f32 %v362, %v506
    %v651 = vsub.f32 %v363, %v507
    %v652 = vsub.f32 %v364, %v508
    %v653 = vsub.f32 %v365, %v509
    %v654 = vsub.f32 %v366, %v510
    %v655 = vsub.f32 %v367, %v511
    %v656 = vsub.f32 %v368, %v512
    %v657 = vsub.f32 %v369, %v513
    %v658 = vsub.f32 %v370, %v514
    %v659 = vsub.f32 %v371, %v515
    %v660 = vsub.f32 %v372, %v516
    %v661 = vsub.f32 %v373, %v517
    %v662 = vsub.f32 %v374, %v518
    %v663 = vsub.f32 %v375, %v519
    %v664 = vsub.f32 %v376, %v520
    %v665 = vsub.f32 %v377, %v521
    %v666 = vsub.f32 %v378, %v522
    %v667 = vsub.f32 %v379, %v523
    %v668 = vsub.f32 %v380, %v524
    %v669 = vsub.f32 %v381, %v525
    %v670 = vsub.f32 %v382, %v526
    %v671 = vsub.f32 %v383, %v527
    %v672 = vsub.f32 %v384, %v528
    %v673 = vsub.f32 %v385, %v529
    %v674 = vsub.f32 %v386, %v530
    %v675 = vsub.f32 %v387, %v531
    %v676 = vsub.f32 %v388, %v532
    %v677 = vsub.f32 %v389, %v533
    %v678 = vsub.f32 %v390, %v534
    %v679 = vsub.f32 %v391, %v535
    %v680 = vsub.f32 %v392, %v536
    %v681 = vsub.f32 %v393, %v537
    %v682 = vsub.f32 %v394, %v538
    %v683 = vsub.f32 %v395, %v539
    %v684 = vsub.f32 %v396, %v540
    %v685 = vsub.f32 %v397, %v541
    %v686 = vsub.f32 %v398, %v542
    %v687 = vsub.f32 %v399, %v543
    %v688 = vsub.f32 %v400, %v544
    %v689 = vsub.f32 %v401, %v545
    %v690 = vsub.f32 %v402, %v546
    %v691 = vsub.f32 %v403, %v547
    %v692 = vsub.f32 %v404, %v548
    %v693 = vsub.f32 %v405, %v549
    %v694 = vsub.f32 %v406, %v550
    %v695 = vsub.f32 %v407, %v551
    %v696 = vsub.f32 %v408, %v552
    %v697 = vsub.f32 %v409, %v553
    %v698 = vsub.f32 %v410, %v554
    %v699 = vsub.f32 %v411, %v555
    %v700 = vsub.f32 %v412, %v556
    %v701 = vsub.f32 %v413, %v557
    %v702 = vsub.f32 %v414, %v558
    %v703 = vsub.f32 %v415, %v559
    %v704 = vsub.f32 %v416, %v560
    %v705 = vsub.f32 %v417, %v561
    %v706 = vsub.f32 %v418, %v562
    %v707 = vsub.f32 %v419, %v563
    %v708 = vsub.f32 %v420, %v564
    %v709 = vsub.f32 %v421, %v565
    %v710 = vsub.f32 %v422, %v566
    %v711 = vsub.f32 %v423, %v567
    %v712 = vsub.f32 %v424, %v568
    %v713 = vsub.f32 %v425, %v569
    %v714 = vsub.f32 %v426, %v570
    %v715 = vsub.f32 %v427, %v571
    %v716 = vsub.f32 %v428, %v572
    %v717 = vsub.f32 %v429, %v573
    %v718 = vsub.f32 %v430, %v574
    %v719 = vsub.f32 %v431, %v575
    %v720 = vsub.f32 %v432, %v576
    %v721 = vsub.f32 %v433, %v577
    %v722 = vsub.f32 %v434, %v578
    %v723 = vsub.f32 %v435, %v579
    %v724 = vsub.f32 %v436, %v580
    %v725 = vsub.f32 %v437, %v581
    %v726 = vsub.f32 %v438, %v582
    %v727 = vsub.f32 %v439, %v583
    %v728 = vsub.f32 %v440, %v584
    %v729 = vsub.f32 %v441, %v585
    %v730 = vsub.f32 %v442, %v586
    %v731 = vsub.f32 %v443, %v587
    %v732 = vsub.f32 %v444, %v588
    %v733 = vsub.f32 %v445, %v589
    %v734 = vsub.f32 %v446, %v590
    %v735 = vsub.f32 %v447, %v591
    %v736 = vsub.f32 %v448, %v592
    %v737 = vsub.f32 %v449, %v593
    %v738 = vsub.f32 %v450, %v594
    %v739 = vsub.f32 %v451, %v595
    %v740 = vsub.f32 %v452, %v596
    %v741 = vsub.f32 %v453, %v597
    %v742 = vsub.f32 %v454, %v598
    %v743 = vsub.f32 %v455, %v599
    %v744 = vsub.f32 %v456, %v600
    %v745 = vsub.f32 %v457, %v601
    %v746 = vsub.f32 %v458, %v602
    %v747 = vsub.f32 %v459, %v603
    %v748 = vsub.f32 %v460, %v604
    %v749 = vsub.f32 %v461, %v605
    %v750 = vsub.f32 %v462, %v606
    %v751 = vsub.f32 %v463, %v607
    %v752 = vsub.f32 %v464, %v608
    %v753 = vsub.f32 %v465, %v609
    %v754 = vsub.f32 %v466, %v610
    %v755 = vsub.f32 %v467, %v611
    %v756 = vsub.f32 %v468, %v612
    %v757 = vsub.f32 %v469, %v613
    %v758 = vsub.f32 %v470, %v614
    %v759 = vsub.f32 %v471, %v615
    %v760 = vsub.f32 %v472, %v616
    %v761 = vsub.f32 %v473, %v617
    %v762 = vsub.f32 %v474, %v618
    %v763 = vsub.f32 %v475, %v619
    %v764 = vsub.f32 %v476, %v620
    %v765 = vsub.f32 %v477, %v621
    %v766 = vsub.f32 %v478, %v622
    %v767 = vsub.f32 %v479, %v623
    %v768 = vsub.f32 %v480, %v624
    %v769 = vsub.f32 %v481, %v625
    %v770 = vsub.f32 %v482, %v626
    %v771 = vsub.f32 %v483, %v627
    %v772 = vsub.f32 %v484, %v628
    %v773 = vsub.f32 %v485, %v629
    %v774 = vsub.f32 %v486, %v630
    %v775 = vsub.f32 %v487, %v631
    %v776 = vsub.f32 %v488, %v632
    %v777 = vsub.f32 %v489, %v633
    %v778 = vsub.f32 %v490, %v634
    %v779 = vsub.f32 %v491, %v635
    %v780 = vsub.f32 %v492, %v636
    %v781 = vsub.f32 %v493, %v637
    %v782 = vsub.f32 %v494, %v638
    %v783 = vsub.f32 %v495, %v639
    %v784 = vsub.f32 %v496, %v640
    %v785 = vsub.f32 %v497, %v641
    %v786 = vsub.f32 %v498, %v642
    %v787 = vsub.f32 %v499, %v643
    %v788 = vsub.f32 %v500, %v644
    %v789 = vand.u32 2147483647, %v69
    %v790 = vand.u32 2147483647, %v70
    %v791 = vand.u32 2147483647, %v71
    %v792 = vand.u32 2147483647, %v72
    %v793 = vand.u32 2147483647, %v73
    %v794 = vand.u32 2147483647, %v74
    %v795 = vand.u32 2147483647, %v75
    %v796 = vand.u32 2147483647, %v76
    %v797 = vand.u32 2147483647, %v77
    %v798 = vand.u32 2147483647, %v78
    %v799 = vand.u32 2147483647, %v79
    %v800 = vand.u32 2147483647, %v80
    %v801 = vand.u32 2147483647, %v81
    %v802 = vand.u32 2147483647, %v82
    %v803 = vand.u32 2147483647, %v83
    %v804 = vand.u32 2147483647, %v84
    %v805 = vand.u32 2147483647, %v85
    %v806 = vand.u32 2147483647, %v86
    %v807 = vand.u32 2147483647, %v87
    %v808 = vand.u32 2147483647, %v88
    %v809 = vand.u32 2147483647, %v89
    %v810 = vand.u32 2147483647, %v90
    %v811 = vand.u32 2147483647, %v91
    %v812 = vand.u32 2147483647, %v92
    %v813 = vand.u32 2147483647, %v93
    %v814 = vand.u32 2147483647, %v94
    %v815 = vand.u32 2147483647, %v95
    %v816 = vand.u32 2147483647, %v96
    %v817 = vand.u32 2147483647, %v97
    %v818 = vand.u32 2147483647, %v98
    %v819 = vand.u32 2147483647, %v99
    %v820 = vand.u32 2147483647, %v100
    %v821 = vand.u32 2147483647, %v101
    %v822 = vand.u32 2147483647, %v102
    %v823 = vand.u32 2147483647, %v103
    %v824 = vand.u32 2147483647, %v104
    %v825 = vand.u32 2147483647, %v105
    %v826 = vand.u32 2147483647, %v106
    %v827 = vand.u32 2147483647, %v107
    %v828 = vand.u32 2147483647, %v108
    %v829 = vand.u32 2147483647, %v109
    %v830 = vand.u32 2147483647, %v110
    %v831 = vand.u32 2147483647, %v111
    %v832 = vand.u32 2147483647, %v112
    %v833 = vand.u32 2147483647, %v113
    %v834 = vand.u32 2147483647, %v114
    %v835 = vand.u32 2147483647, %v115
    %v836 = vand.u32 2147483647, %v116
    %v837 = vand.u32 2147483647, %v117
    %v838 = vand.u32 2147483647, %v118
    %v839 = vand.u32 2147483647, %v119
    %v840 = vand.u32 2147483647, %v120
    %v841 = vand.u32 2147483647, %v121
    %v842 = vand.u32 2147483647, %v122
    %v843 = vand.u32 2147483647, %v123
    %v844 = vand.u32 2147483647, %v124
    %v845 = vand.u32 2147483647, %v125
    %v846 = vand.u32 2147483647, %v126
    %v847 = vand.u32 2147483647, %v127
    %v848 = vand.u32 2147483647, %v128
    %v849 = vand.u32 2147483647, %v129
    %v850 = vand.u32 2147483647, %v130
    %v851 = vand.u32 2147483647, %v131
    %v852 = vand.u32 2147483647, %v132
    %v853 = vand.u32 2147483647, %v133
    %v854 = vand.u32 2147483647, %v134
    %v855 = vand.u32 2147483647, %v135
    %v856 = vand.u32 2147483647, %v136
    %v857 = vand.u32 2147483647, %v137
    %v858 = vand.u32 2147483647, %v138
    %v859 = vand.u32 2147483647, %v139
    %v860 = vand.u32 2147483647, %v140
    %v861 = vand.u32 2147483647, %v141
    %v862 = vand.u32 2147483647, %v142
    %v863 = vand.u32 2147483647, %v143
    %v864 = vand.u32 2147483647, %v144
    %v865 = vand.u32 2147483647, %v145
    %v866 = vand.u32 2147483647, %v146
    %v867 = vand.u32 2147483647, %v147
    %v868 = vand.u32 2147483647, %v148
    %v869 = vand.u32 2147483647, %v149
    %v870 = vand.u32 2147483647, %v150
    %v871 = vand.u32 2147483647, %v151
    %v872 = vand.u32 2147483647, %v152
    %v873 = vand.u32 2147483647, %v153
    %v874 = vand.u32 2147483647, %v154
    %v875 = vand.u32 2147483647, %v155
    %v876 = vand.u32 2147483647, %v156
    %v877 = vand.u32 2147483647, %v157
    %v878 = vand.u32 2147483647, %v158
    %v879 = vand.u32 2147483647, %v159
    %v880 = vand.u32 2147483647, %v160
    %v881 = vand.u32 2147483647, %v161
    %v882 = vand.u32 2147483647, %v162
    %v883 = vand.u32 2147483647, %v163
    %v884 = vand.u32 2147483647, %v164
    %v885 = vand.u32 2147483647, %v165
    %v886 = vand.u32 2147483647, %v166
    %v887 = vand.u32 2147483647, %v167
    %v888 = vand.u32 2147483647, %v168
    %v889 = vand.u32 2147483647, %v169
    %v890 = vand.u32 2147483647, %v170
    %v891 = vand.u32 2147483647, %v171
    %v892 = vand.u32 2147483647, %v172
    %v893 = vand.u32 2147483647, %v173
    %v894 = vand.u32 2147483647, %v174
    %v895 = vand.u32 2147483647, %v175
    %v896 = vand.u32 2147483647, %v176
    %v897 = vand.u32 2147483647, %v177
    %v898 = vand.u32 2147483647, %v178
    %v899 = vand.u32 2147483647, %v179
    %v900 = vand.u32 2147483647, %v180
    %v901 = vand.u32 2147483647, %v181
    %v902 = vand.u32 2147483647, %v182
    %v903 = vand.u32 2147483647, %v183
    %v904 = vand.u32 2147483647, %v184
    %v905 = vand.u32 2147483647, %v185
    %v906 = vand.u32 2147483647, %v186
    %v907 = vand.u32 2147483647, %v187
    %v908 = vand.u32 2147483647, %v188
    %v909 = vand.u32 2147483647, %v189
    %v910 = vand.u32 2147483647, %v190
    %v911 = vand.u32 2147483647, %v191
    %v912 = vand.u32 2147483647, %v192
    %v913 = vand.u32 2147483647, %v193
    %v914 = vand.u32 2147483647, %v194
    %v915 = vand.u32 2147483647, %v195
    %v916 = vand.u32 2147483647, %v196
    %v917 = vand.u32 2147483647, %v197
    %v918 = vand.u32 2147483647, %v198
    %v919 = vand.u32 2147483647, %v199
    %v920 = vand.u32 2147483647, %v200
    %v921 = vand.u32 2147483647, %v201
    %v922 = vand.u32 2147483647, %v202
    %v923 = vand.u32 2147483647, %v203
    %v924 = vand.u32 2147483647, %v204
    %v925 = vand.u32 2147483647, %v205
    %v926 = vand.u32 2147483647, %v206
    %v927 = vand.u32 2147483647, %v207
    %v928 = vand.u32 2147483647, %v208
    %v929 = vand.u32 2147483647, %v209
    %v930 = vand.u32 2147483647, %v210
    %v931 = vand.u32 2147483647, %v211
    %v932 = vand.u32 2147483647, %v212
    %v933 = vsub.f32 0.0, %v789
    %v934 = vsub.f32 0.0, %v790
    %v935 = vsub.f32 0.0, %v791
    %v936 = vsub.f32 0.0, %v792
    %v937 = vsub.f32 0.0, %v793
    %v938 = vsub.f32 0.0, %v794
    %v939 = vsub.f32 0.0, %v795
    %v940 = vsub.f32 0.0, %v796
    %v941 = vsub.f32 0.0, %v797
    %v942 = vsub.f32 0.0, %v798
    %v943 = vsub.f32 0.0, %v799
    %v944 = vsub.f32 0.0, %v800
    %v945 = vsub.f32 0.0, %v801
    %v946 = vsub.f32 0.0, %v802
    %v947 = vsub.f32 0.0, %v803
    %v948 = vsub.f32 0.0, %v804
    %v949 = vsub.f32 0.0, %v805
    %v950 = vsub.f32 0.0, %v806
    %v951 = vsub.f32 0.0, %v807
    %v952 = vsub.f32 0.0, %v808
    %v953 = vsub.f32 0.0, %v809
    %v954 = vsub.f32 0.0, %v810
    %v955 = vsub.f32 0.0, %v811
    %v956 = vsub.f32 0.0, %v812
    %v957 = vsub.f32 0.0, %v813
    %v958 = vsub.f32 0.0, %v814
    %v959 = vsub.f32 0.0, %v815
    %v960 = vsub.f32 0.0, %v816
    %v961 = vsub.f32 0.0, %v817
    %v962 = vsub.f32 0.0, %v818
    %v963 = vsub.f32 0.0, %v819
    %v964 = vsub.f32 0.0, %v820
    %v965 = vsub.f32 0.0, %v821
    %v966 = vsub.f32 0.0, %v822
    %v967 = vsub.f32 0.0, %v823
    %v968 = vsub.f32 0.0, %v824
    %v969 = vsub.f32 0.0, %v825
    %v970 = vsub.f32 0.0, %v826
    %v971 = vsub.f32 0.0, %v827
    %v972 = vsub.f32 0.0, %v828
    %v973 = vsub.f32 0.0, %v829
    %v974 = vsub.f32 0.0, %v830
    %v975 = vsub.f32 0.0, %v831
    %v976 = vsub.f32 0.0, %v832
    %v977 = vsub.f32 0.0, %v833
    %v978 = vsub.f32 0.0, %v834
    %v979 = vsub.f32 0.0, %v835
    %v980 = vsub.f32 0.0, %v836
    %v981 = vsub.f32 0.0, %v837
    %v982 = vsub.f32 0.0, %v838
    %v983 = vsub.f32 0.0, %v839
    %v984 = vsub.f32 0.0, %v840
    %v985 = vsub.f32 0.0, %v841
    %v986 = vsub.f32 0.0, %v842
    %v987 = vsub.f32 0.0, %v843
    %v988 = vsub.f32 0.0, %v844
    %v989 = vsub.f32 0.0, %v845
    %v990 = vsub.f32 0.0, %v846
    %v991 = vsub.f32 0.0, %v847
    %v992 = vsub.f32 0.0, %v848
    %v993 = vsub.f32 0.0, %v849
    %v994 = vsub.f32 0.0, %v850
    %v995 = vsub.f32 0.0, %v851
    %v996 = vsub.f32 0.0, %v852
    %v997 = vsub.f32 0.0, %v853
    %v998 = vsub.f32 0.0, %v854
    %v999 = vsub.f32 0.0, %v855
    %v1000 = vsub.f32 0.0, %v856
    %v1001 = vsub.f32 0.0, %v857
    %v1002 = vsub.f32 0.0, %v858
    %v1003 = vsub.f32 0.0, %v859
    %v1004 = vsub.f32 0.0, %v860
    %v1005 = vsub.f32 0.0, %v861
    %v1006 = vsub.f32 0.0, %v862
    %v1007 = vsub.f32 0.0, %v863
    %v1008 = vsub.f32 0.0, %v864
    %v1009 = vsub.f32 0.0, %v865
    %v1010 = vsub.f32 0.0, %v866
    %v1011 = vsub.f32 0.0, %v867
    %v1012 = vsub.f32 0.0, %v868
    %v1013 = vsub.f32 0.0, %v869
    %v1014 = vsub.f32 0.0, %v870
    %v1015 = vsub.f32 0.0, %v871
    %v1016 = vsub.f32 0.0, %v872
    %v1017 = vsub.f32 0.0, %v873
    %v1018 = vsub.f32 0.0, %v874
    %v1019 = vsub.f32 0.0, %v875
    %v1020 = vsub.f32 0.0, %v876
    %v1021 = vsub.f32 0.0, %v877
    %v1022 = vsub.f32 0.0, %v878
    %v1023 = vsub.f32 0.0, %v879
    %v1024 = vsub.f32 0.0, %v880
    %v1025 = vsub.f32 0.0, %v881
    %v1026 = vsub.f32 0.0, %v882
    %v1027 = vsub.f32 0.0, %v883
    %v1028 = vsub.f32 0.0, %v884
    %v1029 = vsub.f32 0.0, %v885
    %v1030 = vsub.f32 0.0, %v886
    %v1031 = vsub.f32 0.0, %v887
    %v1032 = vsub.f32 0.0, %v888
    %v1033 = vsub.f32 0.0, %v889
    %v1034 = vsub.f32 0.0, %v890
    %v1035 = vsub.f32 0.0, %v891
    %v1036 = vsub.f32 0.0, %v892
    %v1037 = vsub.f32 0.0, %v893
    %v1038 = vsub.f32 0.0, %v894
    %v1039 = vsub.f32 0.0, %v895
    %v1040 = vsub.f32 0.0, %v896
    %v1041 = vsub.f32 0.0, %v897
    %v1042 = vsub.f32 0.0, %v898
    %v1043 = vsub.f32 0.0, %v899
    %v1044 = vsub.f32 0.0, %v900
    %v1045 = vsub.f32 0.0, %v901
    %v1046 = vsub.f32 0.0, %v902
    %v1047 = vsub.f32 0.0, %v903
    %v1048 = vsub.f32 0.0, %v904
    %v1049 = vsub.f32 0.0, %v905
    %v1050 = vsub.f32 0.0, %v906
    %v1051 = vsub.f32 0.0, %v907
    %v1052 = vsub.f32 0.0, %v908
    %v1053 = vsub.f32 0.0, %v909
    %v1054 = vsub.f32 0.0, %v910
    %v1055 = vsub.f32 0.0, %v911
    %v1056 = vsub.f32 0.0, %v912
    %v1057 = vsub.f32 0.0, %v913
    %v1058 = vsub.f32 0.0, %v914
    %v1059 = vsub.f32 0.0, %v915
    %v1060 = vsub.f32 0.0, %v916
    %v1061 = vsub.f32 0.0, %v917
    %v1062 = vsub.f32 0.0, %v918
    %v1063 = vsub.f32 0.0, %v919
    %v1064 = vsub.f32 0.0, %v920
    %v1065 = vsub.f32 0.0, %v921
    %v1066 = vsub.f32 0.0, %v922
    %v1067 = vsub.f32 0.0, %v923
    %v1068 = vsub.f32 0.0, %v924
    %v1069 = vsub.f32 0.0, %v925
    %v1070 = vsub.f32 0.0, %v926
    %v1071 = vsub.f32 0.0, %v927
    %v1072 = vsub.f32 0.0, %v928
    %v1073 = vsub.f32 0.0, %v929
    %v1074 = vsub.f32 0.0, %v930
    %v1075 = vsub.f32 0.0, %v931
    %v1076 = vsub.f32 0.0, %v932
    %v1077 = vmul.f32 %v933, 1.442695
    %v1078 = vpow.pop %v1077
    %v1079 = vmul.f32 %v934, 1.442695
    %v1080 = vpow.pop %v1079
    %v1081 = vmul.f32 %v935, 1.442695
    %v1082 = vpow.pop %v1081
    %v1083 = vmul.f32 %v936, 1.442695
    %v1084 = vpow.pop %v1083
    %v1085 = vmul.f32 %v937, 1.442695
    %v1086 = vpow.pop %v1085
    %v1087 = vmul.f32 %v938, 1.442695
    %v1088 = vpow.pop %v1087
    %v1089 = vmul.f32 %v939, 1.442695
    %v1090 = vpow.pop %v1089
    %v1091 = vmul.f32 %v940, 1.442695
    %v1092 = vpow.pop %v1091
    %v1093 = vmul.f32 %v941, 1.442695
    %v1094 = vpow.pop %v1093
    %v1095 = vmul.f32 %v942, 1.442695
    %v1096 = vpow.pop %v1095
    %v1097 = vmul.f32 %v943, 1.442695
    %v1098 = vpow.pop %v1097
    %v1099 = vmul.f32 %v944, 1.442695
    %v1100 = vpow.pop %v1099
    %v1101 = vmul.f32 %v945, 1.442695
    %v1102 = vpow.pop %v1101
    %v1103 = vmul.f32 %v946, 1.442695
    %v1104 = vpow.pop %v1103
    %v1105 = vmul.f32 %v947, 1.442695
    %v1106 = vpow.pop %v1105
    %v1107 = vmul.f32 %v948, 1.442695
    %v1108 = vpow.pop %v1107
    %v1109 = vmul.f32 %v949, 1.442695
    %v1110 = vpow.pop %v1109
    %v1111 = vmul.f32 %v950, 1.442695
    %v1112 = vpow.pop %v1111
    %v1113 = vmul.f32 %v951, 1.442695
    %v1114 = vpow.pop %v1113
    %v1115 = vmul.f32 %v952, 1.442695
    %v1116 = vpow.pop %v1115
    %v1117 = vmul.f32 %v953, 1.442695
    %v1118 = vpow.pop %v1117
    %v1119 = vmul.f32 %v954, 1.442695
    %v1120 = vpow.pop %v1119
    %v1121 = vmul.f32 %v955, 1.442695
    %v1122 = vpow.pop %v1121
    %v1123 = vmul.f32 %v956, 1.442695
    %v1124 = vpow.pop %v1123
    %v1125 = vmul.f32 %v957, 1.442695
    %v1126 = vpow.pop %v1125
    %v1127 = vmul.f32 %v958, 1.442695
    %v1128 = vpow.pop %v1127
    %v1129 = vmul.f32 %v959, 1.442695
    %v1130 = vpow.pop %v1129
    %v1131 = vmul.f32 %v960, 1.442695
    %v1132 = vpow.pop %v1131
    %v1133 = vmul.f32 %v961, 1.442695
    %v1134 = vpow.pop %v1133
    %v1135 = vmul.f32 %v962, 1.442695
    %v1136 = vpow.pop %v1135
    %v1137 = vmul.f32 %v963, 1.442695
    %v1138 = vpow.pop %v1137
    %v1139 = vmul.f32 %v964, 1.442695
    %v1140 = vpow.pop %v1139
    %v1141 = vmul.f32 %v965, 1.442695
    %v1142 = vpow.pop %v1141
    %v1143 = vmul.f32 %v966, 1.442695
    %v1144 = vpow.pop %v1143
    %v1145 = vmul.f32 %v967, 1.442695
    %v1146 = vpow.pop %v1145
    %v1147 = vmul.f32 %v968, 1.442695
    %v1148 = vpow.pop %v1147
    %v1149 = vmul.f32 %v969, 1.442695
    %v1150 = vpow.pop %v1149
    %v1151 = vmul.f32 %v970, 1.442695
    %v1152 = vpow.pop %v1151
    %v1153 = vmul.f32 %v971, 1.442695
    %v1154 = vpow.pop %v1153
    %v1155 = vmul.f32 %v972, 1.442695
    %v1156 = vpow.pop %v1155
    %v1157 = vmul.f32 %v973, 1.442695
    %v1158 = vpow.pop %v1157
    %v1159 = vmul.f32 %v974, 1.442695
    %v1160 = vpow.pop %v1159
    %v1161 = vmul.f32 %v975, 1.442695
    %v1162 = vpow.pop %v1161
    %v1163 = vmul.f32 %v976, 1.442695
    %v1164 = vpow.pop %v1163
    %v1165 = vmul.f32 %v977, 1.442695
    %v1166 = vpow.pop %v1165
    %v1167 = vmul.f32 %v978, 1.442695
    %v1168 = vpow.pop %v1167
    %v1169 = vmul.f32 %v979, 1.442695
    %v1170 = vpow.pop %v1169
    %v1171 = vmul.f32 %v980, 1.442695
    %v1172 = vpow.pop %v1171
    %v1173 = vmul.f32 %v981, 1.442695
    %v1174 = vpow.pop %v1173
    %v1175 = vmul.f32 %v982, 1.442695
    %v1176 = vpow.pop %v1175
    %v1177 = vmul.f32 %v983, 1.442695
    %v1178 = vpow.pop %v1177
    %v1179 = vmul.f32 %v984, 1.442695
    %v1180 = vpow.pop %v1179
    %v1181 = vmul.f32 %v985, 1.442695
    %v1182 = vpow.pop %v1181
    %v1183 = vmul.f32 %v986, 1.442695
    %v1184 = vpow.pop %v1183
    %v1185 = vmul.f32 %v987, 1.442695
    %v1186 = vpow.pop %v1185
    %v1187 = vmul.f32 %v988, 1.442695
    %v1188 = vpow.pop %v1187
    %v1189 = vmul.f32 %v989, 1.442695
    %v1190 = vpow.pop %v1189
    %v1191 = vmul.f32 %v990, 1.442695
    %v1192 = vpow.pop %v1191
    %v1193 = vmul.f32 %v991, 1.442695
    %v1194 = vpow.pop %v1193
    %v1195 = vmul.f32 %v992, 1.442695
    %v1196 = vpow.pop %v1195
    %v1197 = vmul.f32 %v993, 1.442695
    %v1198 = vpow.pop %v1197
    %v1199 = vmul.f32 %v994, 1.442695
    %v1200 = vpow.pop %v1199
    %v1201 = vmul.f32 %v995, 1.442695
    %v1202 = vpow.pop %v1201
    %v1203 = vmul.f32 %v996, 1.442695
    %v1204 = vpow.pop %v1203
    %v1205 = vmul.f32 %v997, 1.442695
    %v1206 = vpow.pop %v1205
    %v1207 = vmul.f32 %v998, 1.442695
    %v1208 = vpow.pop %v1207
    %v1209 = vmul.f32 %v999, 1.442695
    %v1210 = vpow.pop %v1209
    %v1211 = vmul.f32 %v1000, 1.442695
    %v1212 = vpow.pop %v1211
    %v1213 = vmul.f32 %v1001, 1.442695
    %v1214 = vpow.pop %v1213
    %v1215 = vmul.f32 %v1002, 1.442695
    %v1216 = vpow.pop %v1215
    %v1217 = vmul.f32 %v1003, 1.442695
    %v1218 = vpow.pop %v1217
    %v1219 = vmul.f32 %v1004, 1.442695
    %v1220 = vpow.pop %v1219
    %v1221 = vmul.f32 %v1005, 1.442695
    %v1222 = vpow.pop %v1221
    %v1223 = vmul.f32 %v1006, 1.442695
    %v1224 = vpow.pop %v1223
    %v1225 = vmul.f32 %v1007, 1.442695
    %v1226 = vpow.pop %v1225
    %v1227 = vmul.f32 %v1008, 1.442695
    %v1228 = vpow.pop %v1227
    %v1229 = vmul.f32 %v1009, 1.442695
    %v1230 = vpow.pop %v1229
    %v1231 = vmul.f32 %v1010, 1.442695
    %v1232 = vpow.pop %v1231
    %v1233 = vmul.f32 %v1011, 1.442695
    %v1234 = vpow.pop %v1233
    %v1235 = vmul.f32 %v1012, 1.442695
    %v1236 = vpow.pop %v1235
    %v1237 = vmul.f32 %v1013, 1.442695
    %v1238 = vpow.pop %v1237
    %v1239 = vmul.f32 %v1014, 1.442695
    %v1240 = vpow.pop %v1239
    %v1241 = vmul.f32 %v1015, 1.442695
    %v1242 = vpow.pop %v1241
    %v1243 = vmul.f32 %v1016, 1.442695
    %v1244 = vpow.pop %v1243
    %v1245 = vmul.f32 %v1017, 1.442695
    %v1246 = vpow.pop %v1245
    %v1247 = vmul.f32 %v1018, 1.442695
    %v1248 = vpow.pop %v1247
    %v1249 = vmul.f32 %v1019, 1.442695
    %v1250 = vpow.pop %v1249
    %v1251 = vmul.f32 %v1020, 1.442695
    %v1252 = vpow.pop %v1251
    %v1253 = vmul.f32 %v1021, 1.442695
    %v1254 = vpow.pop %v1253
    %v1255 = vmul.f32 %v1022, 1.442695
    %v1256 = vpow.pop %v1255
    %v1257 = vmul.f32 %v1023, 1.442695
    %v1258 = vpow.pop %v1257
    %v1259 = vmul.f32 %v1024, 1.442695
    %v1260 = vpow.pop %v1259
    %v1261 = vmul.f32 %v1025, 1.442695
    %v1262 = vpow.pop %v1261
    %v1263 = vmul.f32 %v1026, 1.442695
    %v1264 = vpow.pop %v1263
    %v1265 = vmul.f32 %v1027, 1.442695
    %v1266 = vpow.pop %v1265
    %v1267 = vmul.f32 %v1028, 1.442695
    %v1268 = vpow.pop %v1267
    %v1269 = vmul.f32 %v1029, 1.442695
    %v1270 = vpow.pop %v1269
    %v1271 = vmul.f32 %v1030, 1.442695
    %v1272 = vpow.pop %v1271
    %v1273 = vmul.f32 %v1031, 1.442695
    %v1274 = vpow.pop %v1273
    %v1275 = vmul.f32 %v1032, 1.442695
    %v1276 = vpow.pop %v1275
    %v1277 = vmul.f32 %v1033, 1.442695
    %v1278 = vpow.pop %v1277
    %v1279 = vmul.f32 %v1034, 1.442695
    %v1280 = vpow.pop %v1279
    %v1281 = vmul.f32 %v1035, 1.442695
    %v1282 = vpow.pop %v1281
    %v1283 = vmul.f32 %v1036, 1.442695
    %v1284 = vpow.pop %v1283
    %v1285 = vmul.f32 %v1037, 1.442695
    %v1286 = vpow.pop %v1285
    %v1287 = vmul.f32 %v1038, 1.442695
    %v1288 = vpow.pop %v1287
    %v1289 = vmul.f32 %v1039, 1.442695
    %v1290 = vpow.pop %v1289
    %v1291 = vmul.f32 %v1040, 1.442695
    %v1292 = vpow.pop %v1291
    %v1293 = vmul.f32 %v1041, 1.442695
    %v1294 = vpow.pop %v1293
    %v1295 = vmul.f32 %v1042, 1.442695
    %v1296 = vpow.pop %v1295
    %v1297 = vmul.f32 %v1043, 1.442695
    %v1298 = vpow.pop %v1297
    %v1299 = vmul.f32 %v1044, 1.442695
    %v1300 = vpow.pop %v1299
    %v1301 = vmul.f32 %v1045, 1.442695
    %v1302 = vpow.pop %v1301
    %v1303 = vmul.f32 %v1046, 1.442695
    %v1304 = vpow.pop %v1303
    %v1305 = vmul.f32 %v1047, 1.442695
    %v1306 = vpow.pop %v1305
    %v1307 = vmul.f32 %v1048, 1.442695
    %v1308 = vpow.pop %v1307
    %v1309 = vmul.f32 %v1049, 1.442695
    %v1310 = vpow.pop %v1309
    %v1311 = vmul.f32 %v1050, 1.442695
    %v1312 = vpow.pop %v1311
    %v1313 = vmul.f32 %v1051, 1.442695
    %v1314 = vpow.pop %v1313
    %v1315 = vmul.f32 %v1052, 1.442695
    %v1316 = vpow.pop %v1315
    %v1317 = vmul.f32 %v1053, 1.442695
    %v1318 = vpow.pop %v1317
    %v1319 = vmul.f32 %v1054, 1.442695
    %v1320 = vpow.pop %v1319
    %v1321 = vmul.f32 %v1055, 1.442695
    %v1322 = vpow.pop %v1321
    %v1323 = vmul.f32 %v1056, 1.442695
    %v1324 = vpow.pop %v1323
    %v1325 = vmul.f32 %v1057, 1.442695
    %v1326 = vpow.pop %v1325
    %v1327 = vmul.f32 %v1058, 1.442695
    %v1328 = vpow.pop %v1327
    %v1329 = vmul.f32 %v1059, 1.442695
    %v1330 = vpow.pop %v1329
    %v1331 = vmul.f32 %v1060, 1.442695
    %v1332 = vpow.pop %v1331
    %v1333 = vmul.f32 %v1061, 1.442695
    %v1334 = vpow.pop %v1333
    %v1335 = vmul.f32 %v1062, 1.442695
    %v1336 = vpow.pop %v1335
    %v1337 = vmul.f32 %v1063, 1.442695
    %v1338 = vpow.pop %v1337
    %v1339 = vmul.f32 %v1064, 1.442695
    %v1340 = vpow.pop %v1339
    %v1341 = vmul.f32 %v1065, 1.442695
    %v1342 = vpow.pop %v1341
    %v1343 = vmul.f32 %v1066, 1.442695
    %v1344 = vpow.pop %v1343
    %v1345 = vmul.f32 %v1067, 1.442695
    %v1346 = vpow.pop %v1345
    %v1347 = vmul.f32 %v1068, 1.442695
    %v1348 = vpow.pop %v1347
    %v1349 = vmul.f32 %v1069, 1.442695
    %v1350 = vpow.pop %v1349
    %v1351 = vmul.f32 %v1070, 1.442695
    %v1352 = vpow.pop %v1351
    %v1353 = vmul.f32 %v1071, 1.442695
    %v1354 = vpow.pop %v1353
    %v1355 = vmul.f32 %v1072, 1.442695
    %v1356 = vpow.pop %v1355
    %v1357 = vmul.f32 %v1073, 1.442695
    %v1358 = vpow.pop %v1357
    %v1359 = vmul.f32 %v1074, 1.442695
    %v1360 = vpow.pop %v1359
    %v1361 = vmul.f32 %v1075, 1.442695
    %v1362 = vpow.pop %v1361
    %v1363 = vmul.f32 %v1076, 1.442695
    %v1364 = vpow.pop %v1363
    %v1365 = vadd.f32 %v1078, 1.0
    %v1366 = vlog2.pop %v1365
    %v1367 = vmul.f32 %v1366, 0.6931472
    %v1368 = vmul.f32 -0.5, %v1078
    %v1369 = vadd.f32 %v1368, 1.0
    %v1370 = vmul.f32 %v1369, %v1078
    %v1371 = vand.u32 2147483647, %v1078
    %vm1372 = vcmp.lt.f32.partialorder %v1371, 0.0004427343
    %v1373 = vsel %vm1372, %v1370, %v1367
    %v1374 = vadd.f32 %v1080, 1.0
    %v1375 = vlog2.pop %v1374
    %v1376 = vmul.f32 %v1375, 0.6931472
    %v1377 = vmul.f32 -0.5, %v1080
    %v1378 = vadd.f32 %v1377, 1.0
    %v1379 = vmul.f32 %v1378, %v1080
    %v1380 = vand.u32 2147483647, %v1080
    %vm1381 = vcmp.lt.f32.partialorder %v1380, 0.0004427343
    %v1382 = vsel %vm1381, %v1379, %v1376
    %v1383 = vadd.f32 %v1082, 1.0
    %v1384 = vlog2.pop %v1383
    %v1385 = vmul.f32 %v1384, 0.6931472
    %v1386 = vmul.f32 -0.5, %v1082
    %v1387 = vadd.f32 %v1386, 1.0
    %v1388 = vmul.f32 %v1387, %v1082
    %v1389 = vand.u32 2147483647, %v1082
    %vm1390 = vcmp.lt.f32.partialorder %v1389, 0.0004427343
    %v1391 = vsel %vm1390, %v1388, %v1385
    %v1392 = vadd.f32 %v1084, 1.0
    %v1393 = vlog2.pop %v1392
    %v1394 = vmul.f32 %v1393, 0.6931472
    %v1395 = vmul.f32 -0.5, %v1084
    %v1396 = vadd.f32 %v1395, 1.0
    %v1397 = vmul.f32 %v1396, %v1084
    %v1398 = vand.u32 2147483647, %v1084
    %vm1399 = vcmp.lt.f32.partialorder %v1398, 0.0004427343
    %v1400 = vsel %vm1399, %v1397, %v1394
    %v1401 = vadd.f32 %v1086, 1.0
    %v1402 = vlog2.pop %v1401
    %v1403 = vmul.f32 %v1402, 0.6931472
    %v1404 = vmul.f32 -0.5, %v1086
    %v1405 = vadd.f32 %v1404, 1.0
    %v1406 = vmul.f32 %v1405, %v1086
    %v1407 = vand.u32 2147483647, %v1086
    %vm1408 = vcmp.lt.f32.partialorder %v1407, 0.0004427343
    %v1409 = vsel %vm1408, %v1406, %v1403
    %v1410 = vadd.f32 %v1088, 1.0
    %v1411 = vlog2.pop %v1410
    %v1412 = vmul.f32 %v1411, 0.6931472
    %v1413 = vmul.f32 -0.5, %v1088
    %v1414 = vadd.f32 %v1413, 1.0
    %v1415 = vmul.f32 %v1414, %v1088
    %v1416 = vand.u32 2147483647, %v1088
    %vm1417 = vcmp.lt.f32.partialorder %v1416, 0.0004427343
    %v1418 = vsel %vm1417, %v1415, %v1412
    %v1419 = vadd.f32 %v1090, 1.0
    %v1420 = vlog2.pop %v1419
    %v1421 = vmul.f32 %v1420, 0.6931472
    %v1422 = vmul.f32 -0.5, %v1090
    %v1423 = vadd.f32 %v1422, 1.0
    %v1424 = vmul.f32 %v1423, %v1090
    %v1425 = vand.u32 2147483647, %v1090
    %vm1426 = vcmp.lt.f32.partialorder %v1425, 0.0004427343
    %v1427 = vsel %vm1426, %v1424, %v1421
    %v1428 = vadd.f32 %v1092, 1.0
    %v1429 = vlog2.pop %v1428
    %v1430 = vmul.f32 %v1429, 0.6931472
    %v1431 = vmul.f32 -0.5, %v1092
    %v1432 = vadd.f32 %v1431, 1.0
    %v1433 = vmul.f32 %v1432, %v1092
    %v1434 = vand.u32 2147483647, %v1092
    %vm1435 = vcmp.lt.f32.partialorder %v1434, 0.0004427343
    %v1436 = vsel %vm1435, %v1433, %v1430
    %v1437 = vadd.f32 %v1094, 1.0
    %v1438 = vlog2.pop %v1437
    %v1439 = vmul.f32 %v1438, 0.6931472
    %v1440 = vmul.f32 -0.5, %v1094
    %v1441 = vadd.f32 %v1440, 1.0
    %v1442 = vmul.f32 %v1441, %v1094
    %v1443 = vand.u32 2147483647, %v1094
    %vm1444 = vcmp.lt.f32.partialorder %v1443, 0.0004427343
    %v1445 = vsel %vm1444, %v1442, %v1439
    %v1446 = vadd.f32 %v1096, 1.0
    %v1447 = vlog2.pop %v1446
    %v1448 = vmul.f32 %v1447, 0.6931472
    %v1449 = vmul.f32 -0.5, %v1096
    %v1450 = vadd.f32 %v1449, 1.0
    %v1451 = vmul.f32 %v1450, %v1096
    %v1452 = vand.u32 2147483647, %v1096
    %vm1453 = vcmp.lt.f32.partialorder %v1452, 0.0004427343
    %v1454 = vsel %vm1453, %v1451, %v1448
    %v1455 = vadd.f32 %v1098, 1.0
    %v1456 = vlog2.pop %v1455
    %v1457 = vmul.f32 %v1456, 0.6931472
    %v1458 = vmul.f32 -0.5, %v1098
    %v1459 = vadd.f32 %v1458, 1.0
    %v1460 = vmul.f32 %v1459, %v1098
    %v1461 = vand.u32 2147483647, %v1098
    %vm1462 = vcmp.lt.f32.partialorder %v1461, 0.0004427343
    %v1463 = vsel %vm1462, %v1460, %v1457
    %v1464 = vadd.f32 %v1100, 1.0
    %v1465 = vlog2.pop %v1464
    %v1466 = vmul.f32 %v1465, 0.6931472
    %v1467 = vmul.f32 -0.5, %v1100
    %v1468 = vadd.f32 %v1467, 1.0
    %v1469 = vmul.f32 %v1468, %v1100
    %v1470 = vand.u32 2147483647, %v1100
    %vm1471 = vcmp.lt.f32.partialorder %v1470, 0.0004427343
    %v1472 = vsel %vm1471, %v1469, %v1466
    %v1473 = vadd.f32 %v1102, 1.0
    %v1474 = vlog2.pop %v1473
    %v1475 = vmul.f32 %v1474, 0.6931472
    %v1476 = vmul.f32 -0.5, %v1102
    %v1477 = vadd.f32 %v1476, 1.0
    %v1478 = vmul.f32 %v1477, %v1102
    %v1479 = vand.u32 2147483647, %v1102
    %vm1480 = vcmp.lt.f32.partialorder %v1479, 0.0004427343
    %v1481 = vsel %vm1480, %v1478, %v1475
    %v1482 = vadd.f32 %v1104, 1.0
    %v1483 = vlog2.pop %v1482
    %v1484 = vmul.f32 %v1483, 0.6931472
    %v1485 = vmul.f32 -0.5, %v1104
    %v1486 = vadd.f32 %v1485, 1.0
    %v1487 = vmul.f32 %v1486, %v1104
    %v1488 = vand.u32 2147483647, %v1104
    %vm1489 = vcmp.lt.f32.partialorder %v1488, 0.0004427343
    %v1490 = vsel %vm1489, %v1487, %v1484
    %v1491 = vadd.f32 %v1106, 1.0
    %v1492 = vlog2.pop %v1491
    %v1493 = vmul.f32 %v1492, 0.6931472
    %v1494 = vmul.f32 -0.5, %v1106
    %v1495 = vadd.f32 %v1494, 1.0
    %v1496 = vmul.f32 %v1495, %v1106
    %v1497 = vand.u32 2147483647, %v1106
    %vm1498 = vcmp.lt.f32.partialorder %v1497, 0.0004427343
    %v1499 = vsel %vm1498, %v1496, %v1493
    %v1500 = vadd.f32 %v1108, 1.0
    %v1501 = vlog2.pop %v1500
    %v1502 = vmul.f32 %v1501, 0.6931472
    %v1503 = vmul.f32 -0.5, %v1108
    %v1504 = vadd.f32 %v1503, 1.0
    %v1505 = vmul.f32 %v1504, %v1108
    %v1506 = vand.u32 2147483647, %v1108
    %vm1507 = vcmp.lt.f32.partialorder %v1506, 0.0004427343
    %v1508 = vsel %vm1507, %v1505, %v1502
    %v1509 = vadd.f32 %v1110, 1.0
    %v1510 = vlog2.pop %v1509
    %v1511 = vmul.f32 %v1510, 0.6931472
    %v1512 = vmul.f32 -0.5, %v1110
    %v1513 = vadd.f32 %v1512, 1.0
    %v1514 = vmul.f32 %v1513, %v1110
    %v1515 = vand.u32 2147483647, %v1110
    %vm1516 = vcmp.lt.f32.partialorder %v1515, 0.0004427343
    %v1517 = vsel %vm1516, %v1514, %v1511
    %v1518 = vadd.f32 %v1112, 1.0
    %v1519 = vlog2.pop %v1518
    %v1520 = vmul.f32 %v1519, 0.6931472
    %v1521 = vmul.f32 -0.5, %v1112
    %v1522 = vadd.f32 %v1521, 1.0
    %v1523 = vmul.f32 %v1522, %v1112
    %v1524 = vand.u32 2147483647, %v1112
    %vm1525 = vcmp.lt.f32.partialorder %v1524, 0.0004427343
    %v1526 = vsel %vm1525, %v1523, %v1520
    %v1527 = vadd.f32 %v1114, 1.0
    %v1528 = vlog2.pop %v1527
    %v1529 = vmul.f32 %v1528, 0.6931472
    %v1530 = vmul.f32 -0.5, %v1114
    %v1531 = vadd.f32 %v1530, 1.0
    %v1532 = vmul.f32 %v1531, %v1114
    %v1533 = vand.u32 2147483647, %v1114
    %vm1534 = vcmp.lt.f32.partialorder %v1533, 0.0004427343
    %v1535 = vsel %vm1534, %v1532, %v1529
    %v1536 = vadd.f32 %v1116, 1.0
    %v1537 = vlog2.pop %v1536
    %v1538 = vmul.f32 %v1537, 0.6931472
    %v1539 = vmul.f32 -0.5, %v1116
    %v1540 = vadd.f32 %v1539, 1.0
    %v1541 = vmul.f32 %v1540, %v1116
    %v1542 = vand.u32 2147483647, %v1116
    %vm1543 = vcmp.lt.f32.partialorder %v1542, 0.0004427343
    %v1544 = vsel %vm1543, %v1541, %v1538
    %v1545 = vadd.f32 %v1118, 1.0
    %v1546 = vlog2.pop %v1545
    %v1547 = vmul.f32 %v1546, 0.6931472
    %v1548 = vmul.f32 -0.5, %v1118
    %v1549 = vadd.f32 %v1548, 1.0
    %v1550 = vmul.f32 %v1549, %v1118
    %v1551 = vand.u32 2147483647, %v1118
    %vm1552 = vcmp.lt.f32.partialorder %v1551, 0.0004427343
    %v1553 = vsel %vm1552, %v1550, %v1547
    %v1554 = vadd.f32 %v1120, 1.0
    %v1555 = vlog2.pop %v1554
    %v1556 = vmul.f32 %v1555, 0.6931472
    %v1557 = vmul.f32 -0.5, %v1120
    %v1558 = vadd.f32 %v1557, 1.0
    %v1559 = vmul.f32 %v1558, %v1120
    %v1560 = vand.u32 2147483647, %v1120
    %vm1561 = vcmp.lt.f32.partialorder %v1560, 0.0004427343
    %v1562 = vsel %vm1561, %v1559, %v1556
    %v1563 = vadd.f32 %v1122, 1.0
    %v1564 = vlog2.pop %v1563
    %v1565 = vmul.f32 %v1564, 0.6931472
    %v1566 = vmul.f32 -0.5, %v1122
    %v1567 = vadd.f32 %v1566, 1.0
    %v1568 = vmul.f32 %v1567, %v1122
    %v1569 = vand.u32 2147483647, %v1122
    %vm1570 = vcmp.lt.f32.partialorder %v1569, 0.0004427343
    %v1571 = vsel %vm1570, %v1568, %v1565
    %v1572 = vadd.f32 %v1124, 1.0
    %v1573 = vlog2.pop %v1572
    %v1574 = vmul.f32 %v1573, 0.6931472
    %v1575 = vmul.f32 -0.5, %v1124
    %v1576 = vadd.f32 %v1575, 1.0
    %v1577 = vmul.f32 %v1576, %v1124
    %v1578 = vand.u32 2147483647, %v1124
    %vm1579 = vcmp.lt.f32.partialorder %v1578, 0.0004427343
    %v1580 = vsel %vm1579, %v1577, %v1574
    %v1581 = vadd.f32 %v1126, 1.0
    %v1582 = vlog2.pop %v1581
    %v1583 = vmul.f32 %v1582, 0.6931472
    %v1584 = vmul.f32 -0.5, %v1126
    %v1585 = vadd.f32 %v1584, 1.0
    %v1586 = vmul.f32 %v1585, %v1126
    %v1587 = vand.u32 2147483647, %v1126
    %vm1588 = vcmp.lt.f32.partialorder %v1587, 0.0004427343
    %v1589 = vsel %vm1588, %v1586, %v1583
    %v1590 = vadd.f32 %v1128, 1.0
    %v1591 = vlog2.pop %v1590
    %v1592 = vmul.f32 %v1591, 0.6931472
    %v1593 = vmul.f32 -0.5, %v1128
    %v1594 = vadd.f32 %v1593, 1.0
    %v1595 = vmul.f32 %v1594, %v1128
    %v1596 = vand.u32 2147483647, %v1128
    %vm1597 = vcmp.lt.f32.partialorder %v1596, 0.0004427343
    %v1598 = vsel %vm1597, %v1595, %v1592
    %v1599 = vadd.f32 %v1130, 1.0
    %v1600 = vlog2.pop %v1599
    %v1601 = vmul.f32 %v1600, 0.6931472
    %v1602 = vmul.f32 -0.5, %v1130
    %v1603 = vadd.f32 %v1602, 1.0
    %v1604 = vmul.f32 %v1603, %v1130
    %v1605 = vand.u32 2147483647, %v1130
    %vm1606 = vcmp.lt.f32.partialorder %v1605, 0.0004427343
    %v1607 = vsel %vm1606, %v1604, %v1601
    %v1608 = vadd.f32 %v1132, 1.0
    %v1609 = vlog2.pop %v1608
    %v1610 = vmul.f32 %v1609, 0.6931472
    %v1611 = vmul.f32 -0.5, %v1132
    %v1612 = vadd.f32 %v1611, 1.0
    %v1613 = vmul.f32 %v1612, %v1132
    %v1614 = vand.u32 2147483647, %v1132
    %vm1615 = vcmp.lt.f32.partialorder %v1614, 0.0004427343
    %v1616 = vsel %vm1615, %v1613, %v1610
    %v1617 = vadd.f32 %v1134, 1.0
    %v1618 = vlog2.pop %v1617
    %v1619 = vmul.f32 %v1618, 0.6931472
    %v1620 = vmul.f32 -0.5, %v1134
    %v1621 = vadd.f32 %v1620, 1.0
    %v1622 = vmul.f32 %v1621, %v1134
    %v1623 = vand.u32 2147483647, %v1134
    %vm1624 = vcmp.lt.f32.partialorder %v1623, 0.0004427343
    %v1625 = vsel %vm1624, %v1622, %v1619
    %v1626 = vadd.f32 %v1136, 1.0
    %v1627 = vlog2.pop %v1626
    %v1628 = vmul.f32 %v1627, 0.6931472
    %v1629 = vmul.f32 -0.5, %v1136
    %v1630 = vadd.f32 %v1629, 1.0
    %v1631 = vmul.f32 %v1630, %v1136
    %v1632 = vand.u32 2147483647, %v1136
    %vm1633 = vcmp.lt.f32.partialorder %v1632, 0.0004427343
    %v1634 = vsel %vm1633, %v1631, %v1628
    %v1635 = vadd.f32 %v1138, 1.0
    %v1636 = vlog2.pop %v1635
    %v1637 = vmul.f32 %v1636, 0.6931472
    %v1638 = vmul.f32 -0.5, %v1138
    %v1639 = vadd.f32 %v1638, 1.0
    %v1640 = vmul.f32 %v1639, %v1138
    %v1641 = vand.u32 2147483647, %v1138
    %vm1642 = vcmp.lt.f32.partialorder %v1641, 0.0004427343
    %v1643 = vsel %vm1642, %v1640, %v1637
    %v1644 = vadd.f32 %v1140, 1.0
    %v1645 = vlog2.pop %v1644
    %v1646 = vmul.f32 %v1645, 0.6931472
    %v1647 = vmul.f32 -0.5, %v1140
    %v1648 = vadd.f32 %v1647, 1.0
    %v1649 = vmul.f32 %v1648, %v1140
    %v1650 = vand.u32 2147483647, %v1140
    %vm1651 = vcmp.lt.f32.partialorder %v1650, 0.0004427343
    %v1652 = vsel %vm1651, %v1649, %v1646
    %v1653 = vadd.f32 %v1142, 1.0
    %v1654 = vlog2.pop %v1653
    %v1655 = vmul.f32 %v1654, 0.6931472
    %v1656 = vmul.f32 -0.5, %v1142
    %v1657 = vadd.f32 %v1656, 1.0
    %v1658 = vmul.f32 %v1657, %v1142
    %v1659 = vand.u32 2147483647, %v1142
    %vm1660 = vcmp.lt.f32.partialorder %v1659, 0.0004427343
    %v1661 = vsel %vm1660, %v1658, %v1655
    %v1662 = vadd.f32 %v1144, 1.0
    %v1663 = vlog2.pop %v1662
    %v1664 = vmul.f32 %v1663, 0.6931472
    %v1665 = vmul.f32 -0.5, %v1144
    %v1666 = vadd.f32 %v1665, 1.0
    %v1667 = vmul.f32 %v1666, %v1144
    %v1668 = vand.u32 2147483647, %v1144
    %vm1669 = vcmp.lt.f32.partialorder %v1668, 0.0004427343
    %v1670 = vsel %vm1669, %v1667, %v1664
    %v1671 = vadd.f32 %v1146, 1.0
    %v1672 = vlog2.pop %v1671
    %v1673 = vmul.f32 %v1672, 0.6931472
    %v1674 = vmul.f32 -0.5, %v1146
    %v1675 = vadd.f32 %v1674, 1.0
    %v1676 = vmul.f32 %v1675, %v1146
    %v1677 = vand.u32 2147483647, %v1146
    %vm1678 = vcmp.lt.f32.partialorder %v1677, 0.0004427343
    %v1679 = vsel %vm1678, %v1676, %v1673
    %v1680 = vadd.f32 %v1148, 1.0
    %v1681 = vlog2.pop %v1680
    %v1682 = vmul.f32 %v1681, 0.6931472
    %v1683 = vmul.f32 -0.5, %v1148
    %v1684 = vadd.f32 %v1683, 1.0
    %v1685 = vmul.f32 %v1684, %v1148
    %v1686 = vand.u32 2147483647, %v1148
    %vm1687 = vcmp.lt.f32.partialorder %v1686, 0.0004427343
    %v1688 = vsel %vm1687, %v1685, %v1682
    %v1689 = vadd.f32 %v1150, 1.0
    %v1690 = vlog2.pop %v1689
    %v1691 = vmul.f32 %v1690, 0.6931472
    %v1692 = vmul.f32 -0.5, %v1150
    %v1693 = vadd.f32 %v1692, 1.0
    %v1694 = vmul.f32 %v1693, %v1150
    %v1695 = vand.u32 2147483647, %v1150
    %vm1696 = vcmp.lt.f32.partialorder %v1695, 0.0004427343
    %v1697 = vsel %vm1696, %v1694, %v1691
    %v1698 = vadd.f32 %v1152, 1.0
    %v1699 = vlog2.pop %v1698
    %v1700 = vmul.f32 %v1699, 0.6931472
    %v1701 = vmul.f32 -0.5, %v1152
    %v1702 = vadd.f32 %v1701, 1.0
    %v1703 = vmul.f32 %v1702, %v1152
    %v1704 = vand.u32 2147483647, %v1152
    %vm1705 = vcmp.lt.f32.partialorder %v1704, 0.0004427343
    %v1706 = vsel %vm1705, %v1703, %v1700
    %v1707 = vadd.f32 %v1154, 1.0
    %v1708 = vlog2.pop %v1707
    %v1709 = vmul.f32 %v1708, 0.6931472
    %v1710 = vmul.f32 -0.5, %v1154
    %v1711 = vadd.f32 %v1710, 1.0
    %v1712 = vmul.f32 %v1711, %v1154
    %v1713 = vand.u32 2147483647, %v1154
    %vm1714 = vcmp.lt.f32.partialorder %v1713, 0.0004427343
    %v1715 = vsel %vm1714, %v1712, %v1709
    %v1716 = vadd.f32 %v1156, 1.0
    %v1717 = vlog2.pop %v1716
    %v1718 = vmul.f32 %v1717, 0.6931472
    %v1719 = vmul.f32 -0.5, %v1156
    %v1720 = vadd.f32 %v1719, 1.0
    %v1721 = vmul.f32 %v1720, %v1156
    %v1722 = vand.u32 2147483647, %v1156
    %vm1723 = vcmp.lt.f32.partialorder %v1722, 0.0004427343
    %v1724 = vsel %vm1723, %v1721, %v1718
    %v1725 = vadd.f32 %v1158, 1.0
    %v1726 = vlog2.pop %v1725
    %v1727 = vmul.f32 %v1726, 0.6931472
    %v1728 = vmul.f32 -0.5, %v1158
    %v1729 = vadd.f32 %v1728, 1.0
    %v1730 = vmul.f32 %v1729, %v1158
    %v1731 = vand.u32 2147483647, %v1158
    %vm1732 = vcmp.lt.f32.partialorder %v1731, 0.0004427343
    %v1733 = vsel %vm1732, %v1730, %v1727
    %v1734 = vadd.f32 %v1160, 1.0
    %v1735 = vlog2.pop %v1734
    %v1736 = vmul.f32 %v1735, 0.6931472
    %v1737 = vmul.f32 -0.5, %v1160
    %v1738 = vadd.f32 %v1737, 1.0
    %v1739 = vmul.f32 %v1738, %v1160
    %v1740 = vand.u32 2147483647, %v1160
    %vm1741 = vcmp.lt.f32.partialorder %v1740, 0.0004427343
    %v1742 = vsel %vm1741, %v1739, %v1736
    %v1743 = vadd.f32 %v1162, 1.0
    %v1744 = vlog2.pop %v1743
    %v1745 = vmul.f32 %v1744, 0.6931472
    %v1746 = vmul.f32 -0.5, %v1162
    %v1747 = vadd.f32 %v1746, 1.0
    %v1748 = vmul.f32 %v1747, %v1162
    %v1749 = vand.u32 2147483647, %v1162
    %vm1750 = vcmp.lt.f32.partialorder %v1749, 0.0004427343
    %v1751 = vsel %vm1750, %v1748, %v1745
    %v1752 = vadd.f32 %v1164, 1.0
    %v1753 = vlog2.pop %v1752
    %v1754 = vmul.f32 %v1753, 0.6931472
    %v1755 = vmul.f32 -0.5, %v1164
    %v1756 = vadd.f32 %v1755, 1.0
    %v1757 = vmul.f32 %v1756, %v1164
    %v1758 = vand.u32 2147483647, %v1164
    %vm1759 = vcmp.lt.f32.partialorder %v1758, 0.0004427343
    %v1760 = vsel %vm1759, %v1757, %v1754
    %v1761 = vadd.f32 %v1166, 1.0
    %v1762 = vlog2.pop %v1761
    %v1763 = vmul.f32 %v1762, 0.6931472
    %v1764 = vmul.f32 -0.5, %v1166
    %v1765 = vadd.f32 %v1764, 1.0
    %v1766 = vmul.f32 %v1765, %v1166
    %v1767 = vand.u32 2147483647, %v1166
    %vm1768 = vcmp.lt.f32.partialorder %v1767, 0.0004427343
    %v1769 = vsel %vm1768, %v1766, %v1763
    %v1770 = vadd.f32 %v1168, 1.0
    %v1771 = vlog2.pop %v1770
    %v1772 = vmul.f32 %v1771, 0.6931472
    %v1773 = vmul.f32 -0.5, %v1168
    %v1774 = vadd.f32 %v1773, 1.0
    %v1775 = vmul.f32 %v1774, %v1168
    %v1776 = vand.u32 2147483647, %v1168
    %vm1777 = vcmp.lt.f32.partialorder %v1776, 0.0004427343
    %v1778 = vsel %vm1777, %v1775, %v1772
    %v1779 = vadd.f32 %v1170, 1.0
    %v1780 = vlog2.pop %v1779
    %v1781 = vmul.f32 %v1780, 0.6931472
    %v1782 = vmul.f32 -0.5, %v1170
    %v1783 = vadd.f32 %v1782, 1.0
    %v1784 = vmul.f32 %v1783, %v1170
    %v1785 = vand.u32 2147483647, %v1170
    %vm1786 = vcmp.lt.f32.partialorder %v1785, 0.0004427343
    %v1787 = vsel %vm1786, %v1784, %v1781
    %v1788 = vadd.f32 %v1172, 1.0
    %v1789 = vlog2.pop %v1788
    %v1790 = vmul.f32 %v1789, 0.6931472
    %v1791 = vmul.f32 -0.5, %v1172
    %v1792 = vadd.f32 %v1791, 1.0
    %v1793 = vmul.f32 %v1792, %v1172
    %v1794 = vand.u32 2147483647, %v1172
    %vm1795 = vcmp.lt.f32.partialorder %v1794, 0.0004427343
    %v1796 = vsel %vm1795, %v1793, %v1790
    %v1797 = vadd.f32 %v1174, 1.0
    %v1798 = vlog2.pop %v1797
    %v1799 = vmul.f32 %v1798, 0.6931472
    %v1800 = vmul.f32 -0.5, %v1174
    %v1801 = vadd.f32 %v1800, 1.0
    %v1802 = vmul.f32 %v1801, %v1174
    %v1803 = vand.u32 2147483647, %v1174
    %vm1804 = vcmp.lt.f32.partialorder %v1803, 0.0004427343
    %v1805 = vsel %vm1804, %v1802, %v1799
    %v1806 = vadd.f32 %v1176, 1.0
    %v1807 = vlog2.pop %v1806
    %v1808 = vmul.f32 %v1807, 0.6931472
    %v1809 = vmul.f32 -0.5, %v1176
    %v1810 = vadd.f32 %v1809, 1.0
    %v1811 = vmul.f32 %v1810, %v1176
    %v1812 = vand.u32 2147483647, %v1176
    %vm1813 = vcmp.lt.f32.partialorder %v1812, 0.0004427343
    %v1814 = vsel %vm1813, %v1811, %v1808
    %v1815 = vadd.f32 %v1178, 1.0
    %v1816 = vlog2.pop %v1815
    %v1817 = vmul.f32 %v1816, 0.6931472
    %v1818 = vmul.f32 -0.5, %v1178
    %v1819 = vadd.f32 %v1818, 1.0
    %v1820 = vmul.f32 %v1819, %v1178
    %v1821 = vand.u32 2147483647, %v1178
    %vm1822 = vcmp.lt.f32.partialorder %v1821, 0.0004427343
    %v1823 = vsel %vm1822, %v1820, %v1817
    %v1824 = vadd.f32 %v1180, 1.0
    %v1825 = vlog2.pop %v1824
    %v1826 = vmul.f32 %v1825, 0.6931472
    %v1827 = vmul.f32 -0.5, %v1180
    %v1828 = vadd.f32 %v1827, 1.0
    %v1829 = vmul.f32 %v1828, %v1180
    %v1830 = vand.u32 2147483647, %v1180
    %vm1831 = vcmp.lt.f32.partialorder %v1830, 0.0004427343
    %v1832 = vsel %vm1831, %v1829, %v1826
    %v1833 = vadd.f32 %v1182, 1.0
    %v1834 = vlog2.pop %v1833
    %v1835 = vmul.f32 %v1834, 0.6931472
    %v1836 = vmul.f32 -0.5, %v1182
    %v1837 = vadd.f32 %v1836, 1.0
    %v1838 = vmul.f32 %v1837, %v1182
    %v1839 = vand.u32 2147483647, %v1182
    %vm1840 = vcmp.lt.f32.partialorder %v1839, 0.0004427343
    %v1841 = vsel %vm1840, %v1838, %v1835
    %v1842 = vadd.f32 %v1184, 1.0
    %v1843 = vlog2.pop %v1842
    %v1844 = vmul.f32 %v1843, 0.6931472
    %v1845 = vmul.f32 -0.5, %v1184
    %v1846 = vadd.f32 %v1845, 1.0
    %v1847 = vmul.f32 %v1846, %v1184
    %v1848 = vand.u32 2147483647, %v1184
    %vm1849 = vcmp.lt.f32.partialorder %v1848, 0.0004427343
    %v1850 = vsel %vm1849, %v1847, %v1844
    %v1851 = vadd.f32 %v1186, 1.0
    %v1852 = vlog2.pop %v1851
    %v1853 = vmul.f32 %v1852, 0.6931472
    %v1854 = vmul.f32 -0.5, %v1186
    %v1855 = vadd.f32 %v1854, 1.0
    %v1856 = vmul.f32 %v1855, %v1186
    %v1857 = vand.u32 2147483647, %v1186
    %vm1858 = vcmp.lt.f32.partialorder %v1857, 0.0004427343
    %v1859 = vsel %vm1858, %v1856, %v1853
    %v1860 = vadd.f32 %v1188, 1.0
    %v1861 = vlog2.pop %v1860
    %v1862 = vmul.f32 %v1861, 0.6931472
    %v1863 = vmul.f32 -0.5, %v1188
    %v1864 = vadd.f32 %v1863, 1.0
    %v1865 = vmul.f32 %v1864, %v1188
    %v1866 = vand.u32 2147483647, %v1188
    %vm1867 = vcmp.lt.f32.partialorder %v1866, 0.0004427343
    %v1868 = vsel %vm1867, %v1865, %v1862
    %v1869 = vadd.f32 %v1190, 1.0
    %v1870 = vlog2.pop %v1869
    %v1871 = vmul.f32 %v1870, 0.6931472
    %v1872 = vmul.f32 -0.5, %v1190
    %v1873 = vadd.f32 %v1872, 1.0
    %v1874 = vmul.f32 %v1873, %v1190
    %v1875 = vand.u32 2147483647, %v1190
    %vm1876 = vcmp.lt.f32.partialorder %v1875, 0.0004427343
    %v1877 = vsel %vm1876, %v1874, %v1871
    %v1878 = vadd.f32 %v1192, 1.0
    %v1879 = vlog2.pop %v1878
    %v1880 = vmul.f32 %v1879, 0.6931472
    %v1881 = vmul.f32 -0.5, %v1192
    %v1882 = vadd.f32 %v1881, 1.0
    %v1883 = vmul.f32 %v1882, %v1192
    %v1884 = vand.u32 2147483647, %v1192
    %vm1885 = vcmp.lt.f32.partialorder %v1884, 0.0004427343
    %v1886 = vsel %vm1885, %v1883, %v1880
    %v1887 = vadd.f32 %v1194, 1.0
    %v1888 = vlog2.pop %v1887
    %v1889 = vmul.f32 %v1888, 0.6931472
    %v1890 = vmul.f32 -0.5, %v1194
    %v1891 = vadd.f32 %v1890, 1.0
    %v1892 = vmul.f32 %v1891, %v1194
    %v1893 = vand.u32 2147483647, %v1194
    %vm1894 = vcmp.lt.f32.partialorder %v1893, 0.0004427343
    %v1895 = vsel %vm1894, %v1892, %v1889
    %v1896 = vadd.f32 %v1196, 1.0
    %v1897 = vlog2.pop %v1896
    %v1898 = vmul.f32 %v1897, 0.6931472
    %v1899 = vmul.f32 -0.5, %v1196
    %v1900 = vadd.f32 %v1899, 1.0
    %v1901 = vmul.f32 %v1900, %v1196
    %v1902 = vand.u32 2147483647, %v1196
    %vm1903 = vcmp.lt.f32.partialorder %v1902, 0.0004427343
    %v1904 = vsel %vm1903, %v1901, %v1898
    %v1905 = vadd.f32 %v1198, 1.0
    %v1906 = vlog2.pop %v1905
    %v1907 = vmul.f32 %v1906, 0.6931472
    %v1908 = vmul.f32 -0.5, %v1198
    %v1909 = vadd.f32 %v1908, 1.0
    %v1910 = vmul.f32 %v1909, %v1198
    %v1911 = vand.u32 2147483647, %v1198
    %vm1912 = vcmp.lt.f32.partialorder %v1911, 0.0004427343
    %v1913 = vsel %vm1912, %v1910, %v1907
    %v1914 = vadd.f32 %v1200, 1.0
    %v1915 = vlog2.pop %v1914
    %v1916 = vmul.f32 %v1915, 0.6931472
    %v1917 = vmul.f32 -0.5, %v1200
    %v1918 = vadd.f32 %v1917, 1.0
    %v1919 = vmul.f32 %v1918, %v1200
    %v1920 = vand.u32 2147483647, %v1200
    %vm1921 = vcmp.lt.f32.partialorder %v1920, 0.0004427343
    %v1922 = vsel %vm1921, %v1919, %v1916
    %v1923 = vadd.f32 %v1202, 1.0
    %v1924 = vlog2.pop %v1923
    %v1925 = vmul.f32 %v1924, 0.6931472
    %v1926 = vmul.f32 -0.5, %v1202
    %v1927 = vadd.f32 %v1926, 1.0
    %v1928 = vmul.f32 %v1927, %v1202
    %v1929 = vand.u32 2147483647, %v1202
    %vm1930 = vcmp.lt.f32.partialorder %v1929, 0.0004427343
    %v1931 = vsel %vm1930, %v1928, %v1925
    %v1932 = vadd.f32 %v1204, 1.0
    %v1933 = vlog2.pop %v1932
    %v1934 = vmul.f32 %v1933, 0.6931472
    %v1935 = vmul.f32 -0.5, %v1204
    %v1936 = vadd.f32 %v1935, 1.0
    %v1937 = vmul.f32 %v1936, %v1204
    %v1938 = vand.u32 2147483647, %v1204
    %vm1939 = vcmp.lt.f32.partialorder %v1938, 0.0004427343
    %v1940 = vsel %vm1939, %v1937, %v1934
    %v1941 = vadd.f32 %v1206, 1.0
    %v1942 = vlog2.pop %v1941
    %v1943 = vmul.f32 %v1942, 0.6931472
    %v1944 = vmul.f32 -0.5, %v1206
    %v1945 = vadd.f32 %v1944, 1.0
    %v1946 = vmul.f32 %v1945, %v1206
    %v1947 = vand.u32 2147483647, %v1206
    %vm1948 = vcmp.lt.f32.partialorder %v1947, 0.0004427343
    %v1949 = vsel %vm1948, %v1946, %v1943
    %v1950 = vadd.f32 %v1208, 1.0
    %v1951 = vlog2.pop %v1950
    %v1952 = vmul.f32 %v1951, 0.6931472
    %v1953 = vmul.f32 -0.5, %v1208
    %v1954 = vadd.f32 %v1953, 1.0
    %v1955 = vmul.f32 %v1954, %v1208
    %v1956 = vand.u32 2147483647, %v1208
    %vm1957 = vcmp.lt.f32.partialorder %v1956, 0.0004427343
    %v1958 = vsel %vm1957, %v1955, %v1952
    %v1959 = vadd.f32 %v1210, 1.0
    %v1960 = vlog2.pop %v1959
    %v1961 = vmul.f32 %v1960, 0.6931472
    %v1962 = vmul.f32 -0.5, %v1210
    %v1963 = vadd.f32 %v1962, 1.0
    %v1964 = vmul.f32 %v1963, %v1210
    %v1965 = vand.u32 2147483647, %v1210
    %vm1966 = vcmp.lt.f32.partialorder %v1965, 0.0004427343
    %v1967 = vsel %vm1966, %v1964, %v1961
    %v1968 = vadd.f32 %v1212, 1.0
    %v1969 = vlog2.pop %v1968
    %v1970 = vmul.f32 %v1969, 0.6931472
    %v1971 = vmul.f32 -0.5, %v1212
    %v1972 = vadd.f32 %v1971, 1.0
    %v1973 = vmul.f32 %v1972, %v1212
    %v1974 = vand.u32 2147483647, %v1212
    %vm1975 = vcmp.lt.f32.partialorder %v1974, 0.0004427343
    %v1976 = vsel %vm1975, %v1973, %v1970
    %v1977 = vadd.f32 %v1214, 1.0
    %v1978 = vlog2.pop %v1977
    %v1979 = vmul.f32 %v1978, 0.6931472
    %v1980 = vmul.f32 -0.5, %v1214
    %v1981 = vadd.f32 %v1980, 1.0
    %v1982 = vmul.f32 %v1981, %v1214
    %v1983 = vand.u32 2147483647, %v1214
    %vm1984 = vcmp.lt.f32.partialorder %v1983, 0.0004427343
    %v1985 = vsel %vm1984, %v1982, %v1979
    %v1986 = vadd.f32 %v1216, 1.0
    %v1987 = vlog2.pop %v1986
    %v1988 = vmul.f32 %v1987, 0.6931472
    %v1989 = vmul.f32 -0.5, %v1216
    %v1990 = vadd.f32 %v1989, 1.0
    %v1991 = vmul.f32 %v1990, %v1216
    %v1992 = vand.u32 2147483647, %v1216
    %vm1993 = vcmp.lt.f32.partialorder %v1992, 0.0004427343
    %v1994 = vsel %vm1993, %v1991, %v1988
    %v1995 = vadd.f32 %v1218, 1.0
    %v1996 = vlog2.pop %v1995
    %v1997 = vmul.f32 %v1996, 0.6931472
    %v1998 = vmul.f32 -0.5, %v1218
    %v1999 = vadd.f32 %v1998, 1.0
    %v2000 = vmul.f32 %v1999, %v1218
    %v2001 = vand.u32 2147483647, %v1218
    %vm2002 = vcmp.lt.f32.partialorder %v2001, 0.0004427343
    %v2003 = vsel %vm2002, %v2000, %v1997
    %v2004 = vadd.f32 %v1220, 1.0
    %v2005 = vlog2.pop %v2004
    %v2006 = vmul.f32 %v2005, 0.6931472
    %v2007 = vmul.f32 -0.5, %v1220
    %v2008 = vadd.f32 %v2007, 1.0
    %v2009 = vmul.f32 %v2008, %v1220
    %v2010 = vand.u32 2147483647, %v1220
    %vm2011 = vcmp.lt.f32.partialorder %v2010, 0.0004427343
    %v2012 = vsel %vm2011, %v2009, %v2006
    %v2013 = vadd.f32 %v1222, 1.0
    %v2014 = vlog2.pop %v2013
    %v2015 = vmul.f32 %v2014, 0.6931472
    %v2016 = vmul.f32 -0.5, %v1222
    %v2017 = vadd.f32 %v2016, 1.0
    %v2018 = vmul.f32 %v2017, %v1222
    %v2019 = vand.u32 2147483647, %v1222
    %vm2020 = vcmp.lt.f32.partialorder %v2019, 0.0004427343
    %v2021 = vsel %vm2020, %v2018, %v2015
    %v2022 = vadd.f32 %v1224, 1.0
    %v2023 = vlog2.pop %v2022
    %v2024 = vmul.f32 %v2023, 0.6931472
    %v2025 = vmul.f32 -0.5, %v1224
    %v2026 = vadd.f32 %v2025, 1.0
    %v2027 = vmul.f32 %v2026, %v1224
    %v2028 = vand.u32 2147483647, %v1224
    %vm2029 = vcmp.lt.f32.partialorder %v2028, 0.0004427343
    %v2030 = vsel %vm2029, %v2027, %v2024
    %v2031 = vadd.f32 %v1226, 1.0
    %v2032 = vlog2.pop %v2031
    %v2033 = vmul.f32 %v2032, 0.6931472
    %v2034 = vmul.f32 -0.5, %v1226
    %v2035 = vadd.f32 %v2034, 1.0
    %v2036 = vmul.f32 %v2035, %v1226
    %v2037 = vand.u32 2147483647, %v1226
    %vm2038 = vcmp.lt.f32.partialorder %v2037, 0.0004427343
    %v2039 = vsel %vm2038, %v2036, %v2033
    %v2040 = vadd.f32 %v1228, 1.0
    %v2041 = vlog2.pop %v2040
    %v2042 = vmul.f32 %v2041, 0.6931472
    %v2043 = vmul.f32 -0.5, %v1228
    %v2044 = vadd.f32 %v2043, 1.0
    %v2045 = vmul.f32 %v2044, %v1228
    %v2046 = vand.u32 2147483647, %v1228
    %vm2047 = vcmp.lt.f32.partialorder %v2046, 0.0004427343
    %v2048 = vsel %vm2047, %v2045, %v2042
    %v2049 = vadd.f32 %v1230, 1.0
    %v2050 = vlog2.pop %v2049
    %v2051 = vmul.f32 %v2050, 0.6931472
    %v2052 = vmul.f32 -0.5, %v1230
    %v2053 = vadd.f32 %v2052, 1.0
    %v2054 = vmul.f32 %v2053, %v1230
    %v2055 = vand.u32 2147483647, %v1230
    %vm2056 = vcmp.lt.f32.partialorder %v2055, 0.0004427343
    %v2057 = vsel %vm2056, %v2054, %v2051
    %v2058 = vadd.f32 %v1232, 1.0
    %v2059 = vlog2.pop %v2058
    %v2060 = vmul.f32 %v2059, 0.6931472
    %v2061 = vmul.f32 -0.5, %v1232
    %v2062 = vadd.f32 %v2061, 1.0
    %v2063 = vmul.f32 %v2062, %v1232
    %v2064 = vand.u32 2147483647, %v1232
    %vm2065 = vcmp.lt.f32.partialorder %v2064, 0.0004427343
    %v2066 = vsel %vm2065, %v2063, %v2060
    %v2067 = vadd.f32 %v1234, 1.0
    %v2068 = vlog2.pop %v2067
    %v2069 = vmul.f32 %v2068, 0.6931472
    %v2070 = vmul.f32 -0.5, %v1234
    %v2071 = vadd.f32 %v2070, 1.0
    %v2072 = vmul.f32 %v2071, %v1234
    %v2073 = vand.u32 2147483647, %v1234
    %vm2074 = vcmp.lt.f32.partialorder %v2073, 0.0004427343
    %v2075 = vsel %vm2074, %v2072, %v2069
    %v2076 = vadd.f32 %v1236, 1.0
    %v2077 = vlog2.pop %v2076
    %v2078 = vmul.f32 %v2077, 0.6931472
    %v2079 = vmul.f32 -0.5, %v1236
    %v2080 = vadd.f32 %v2079, 1.0
    %v2081 = vmul.f32 %v2080, %v1236
    %v2082 = vand.u32 2147483647, %v1236
    %vm2083 = vcmp.lt.f32.partialorder %v2082, 0.0004427343
    %v2084 = vsel %vm2083, %v2081, %v2078
    %v2085 = vadd.f32 %v1238, 1.0
    %v2086 = vlog2.pop %v2085
    %v2087 = vmul.f32 %v2086, 0.6931472
    %v2088 = vmul.f32 -0.5, %v1238
    %v2089 = vadd.f32 %v2088, 1.0
    %v2090 = vmul.f32 %v2089, %v1238
    %v2091 = vand.u32 2147483647, %v1238
    %vm2092 = vcmp.lt.f32.partialorder %v2091, 0.0004427343
    %v2093 = vsel %vm2092, %v2090, %v2087
    %v2094 = vadd.f32 %v1240, 1.0
    %v2095 = vlog2.pop %v2094
    %v2096 = vmul.f32 %v2095, 0.6931472
    %v2097 = vmul.f32 -0.5, %v1240
    %v2098 = vadd.f32 %v2097, 1.0
    %v2099 = vmul.f32 %v2098, %v1240
    %v2100 = vand.u32 2147483647, %v1240
    %vm2101 = vcmp.lt.f32.partialorder %v2100, 0.0004427343
    %v2102 = vsel %vm2101, %v2099, %v2096
    %v2103 = vadd.f32 %v1242, 1.0
    %v2104 = vlog2.pop %v2103
    %v2105 = vmul.f32 %v2104, 0.6931472
    %v2106 = vmul.f32 -0.5, %v1242
    %v2107 = vadd.f32 %v2106, 1.0
    %v2108 = vmul.f32 %v2107, %v1242
    %v2109 = vand.u32 2147483647, %v1242
    %vm2110 = vcmp.lt.f32.partialorder %v2109, 0.0004427343
    %v2111 = vsel %vm2110, %v2108, %v2105
    %v2112 = vadd.f32 %v1244, 1.0
    %v2113 = vlog2.pop %v2112
    %v2114 = vmul.f32 %v2113, 0.6931472
    %v2115 = vmul.f32 -0.5, %v1244
    %v2116 = vadd.f32 %v2115, 1.0
    %v2117 = vmul.f32 %v2116, %v1244
    %v2118 = vand.u32 2147483647, %v1244
    %vm2119 = vcmp.lt.f32.partialorder %v2118, 0.0004427343
    %v2120 = vsel %vm2119, %v2117, %v2114
    %v2121 = vadd.f32 %v1246, 1.0
    %v2122 = vlog2.pop %v2121
    %v2123 = vmul.f32 %v2122, 0.6931472
    %v2124 = vmul.f32 -0.5, %v1246
    %v2125 = vadd.f32 %v2124, 1.0
    %v2126 = vmul.f32 %v2125, %v1246
    %v2127 = vand.u32 2147483647, %v1246
    %vm2128 = vcmp.lt.f32.partialorder %v2127, 0.0004427343
    %v2129 = vsel %vm2128, %v2126, %v2123
    %v2130 = vadd.f32 %v1248, 1.0
    %v2131 = vlog2.pop %v2130
    %v2132 = vmul.f32 %v2131, 0.6931472
    %v2133 = vmul.f32 -0.5, %v1248
    %v2134 = vadd.f32 %v2133, 1.0
    %v2135 = vmul.f32 %v2134, %v1248
    %v2136 = vand.u32 2147483647, %v1248
    %vm2137 = vcmp.lt.f32.partialorder %v2136, 0.0004427343
    %v2138 = vsel %vm2137, %v2135, %v2132
    %v2139 = vadd.f32 %v1250, 1.0
    %v2140 = vlog2.pop %v2139
    %v2141 = vmul.f32 %v2140, 0.6931472
    %v2142 = vmul.f32 -0.5, %v1250
    %v2143 = vadd.f32 %v2142, 1.0
    %v2144 = vmul.f32 %v2143, %v1250
    %v2145 = vand.u32 2147483647, %v1250
    %vm2146 = vcmp.lt.f32.partialorder %v2145, 0.0004427343
    %v2147 = vsel %vm2146, %v2144, %v2141
    %v2148 = vadd.f32 %v1252, 1.0
    %v2149 = vlog2.pop %v2148
    %v2150 = vmul.f32 %v2149, 0.6931472
    %v2151 = vmul.f32 -0.5, %v1252
    %v2152 = vadd.f32 %v2151, 1.0
    %v2153 = vmul.f32 %v2152, %v1252
    %v2154 = vand.u32 2147483647, %v1252
    %vm2155 = vcmp.lt.f32.partialorder %v2154, 0.0004427343
    %v2156 = vsel %vm2155, %v2153, %v2150
    %v2157 = vadd.f32 %v1254, 1.0
    %v2158 = vlog2.pop %v2157
    %v2159 = vmul.f32 %v2158, 0.6931472
    %v2160 = vmul.f32 -0.5, %v1254
    %v2161 = vadd.f32 %v2160, 1.0
    %v2162 = vmul.f32 %v2161, %v1254
    %v2163 = vand.u32 2147483647, %v1254
    %vm2164 = vcmp.lt.f32.partialorder %v2163, 0.0004427343
    %v2165 = vsel %vm2164, %v2162, %v2159
    %v2166 = vadd.f32 %v1256, 1.0
    %v2167 = vlog2.pop %v2166
    %v2168 = vmul.f32 %v2167, 0.6931472
    %v2169 = vmul.f32 -0.5, %v1256
    %v2170 = vadd.f32 %v2169, 1.0
    %v2171 = vmul.f32 %v2170, %v1256
    %v2172 = vand.u32 2147483647, %v1256
    %vm2173 = vcmp.lt.f32.partialorder %v2172, 0.0004427343
    %v2174 = vsel %vm2173, %v2171, %v2168
    %v2175 = vadd.f32 %v1258, 1.0
    %v2176 = vlog2.pop %v2175
    %v2177 = vmul.f32 %v2176, 0.6931472
    %v2178 = vmul.f32 -0.5, %v1258
    %v2179 = vadd.f32 %v2178, 1.0
    %v2180 = vmul.f32 %v2179, %v1258
    %v2181 = vand.u32 2147483647, %v1258
    %vm2182 = vcmp.lt.f32.partialorder %v2181, 0.0004427343
    %v2183 = vsel %vm2182, %v2180, %v2177
    %v2184 = vadd.f32 %v1260, 1.0
    %v2185 = vlog2.pop %v2184
    %v2186 = vmul.f32 %v2185, 0.6931472
    %v2187 = vmul.f32 -0.5, %v1260
    %v2188 = vadd.f32 %v2187, 1.0
    %v2189 = vmul.f32 %v2188, %v1260
    %v2190 = vand.u32 2147483647, %v1260
    %vm2191 = vcmp.lt.f32.partialorder %v2190, 0.0004427343
    %v2192 = vsel %vm2191, %v2189, %v2186
    %v2193 = vadd.f32 %v1262, 1.0
    %v2194 = vlog2.pop %v2193
    %v2195 = vmul.f32 %v2194, 0.6931472
    %v2196 = vmul.f32 -0.5, %v1262
    %v2197 = vadd.f32 %v2196, 1.0
    %v2198 = vmul.f32 %v2197, %v1262
    %v2199 = vand.u32 2147483647, %v1262
    %vm2200 = vcmp.lt.f32.partialorder %v2199, 0.0004427343
    %v2201 = vsel %vm2200, %v2198, %v2195
    %v2202 = vadd.f32 %v1264, 1.0
    %v2203 = vlog2.pop %v2202
    %v2204 = vmul.f32 %v2203, 0.6931472
    %v2205 = vmul.f32 -0.5, %v1264
    %v2206 = vadd.f32 %v2205, 1.0
    %v2207 = vmul.f32 %v2206, %v1264
    %v2208 = vand.u32 2147483647, %v1264
    %vm2209 = vcmp.lt.f32.partialorder %v2208, 0.0004427343
    %v2210 = vsel %vm2209, %v2207, %v2204
    %v2211 = vadd.f32 %v1266, 1.0
    %v2212 = vlog2.pop %v2211
    %v2213 = vmul.f32 %v2212, 0.6931472
    %v2214 = vmul.f32 -0.5, %v1266
    %v2215 = vadd.f32 %v2214, 1.0
    %v2216 = vmul.f32 %v2215, %v1266
    %v2217 = vand.u32 2147483647, %v1266
    %vm2218 = vcmp.lt.f32.partialorder %v2217, 0.0004427343
    %v2219 = vsel %vm2218, %v2216, %v2213
    %v2220 = vadd.f32 %v1268, 1.0
    %v2221 = vlog2.pop %v2220
    %v2222 = vmul.f32 %v2221, 0.6931472
    %v2223 = vmul.f32 -0.5, %v1268
    %v2224 = vadd.f32 %v2223, 1.0
    %v2225 = vmul.f32 %v2224, %v1268
    %v2226 = vand.u32 2147483647, %v1268
    %vm2227 = vcmp.lt.f32.partialorder %v2226, 0.0004427343
    %v2228 = vsel %vm2227, %v2225, %v2222
    %v2229 = vadd.f32 %v1270, 1.0
    %v2230 = vlog2.pop %v2229
    %v2231 = vmul.f32 %v2230, 0.6931472
    %v2232 = vmul.f32 -0.5, %v1270
    %v2233 = vadd.f32 %v2232, 1.0
    %v2234 = vmul.f32 %v2233, %v1270
    %v2235 = vand.u32 2147483647, %v1270
    %vm2236 = vcmp.lt.f32.partialorder %v2235, 0.0004427343
    %v2237 = vsel %vm2236, %v2234, %v2231
    %v2238 = vadd.f32 %v1272, 1.0
    %v2239 = vlog2.pop %v2238
    %v2240 = vmul.f32 %v2239, 0.6931472
    %v2241 = vmul.f32 -0.5, %v1272
    %v2242 = vadd.f32 %v2241, 1.0
    %v2243 = vmul.f32 %v2242, %v1272
    %v2244 = vand.u32 2147483647, %v1272
    %vm2245 = vcmp.lt.f32.partialorder %v2244, 0.0004427343
    %v2246 = vsel %vm2245, %v2243, %v2240
    %v2247 = vadd.f32 %v1274, 1.0
    %v2248 = vlog2.pop %v2247
    %v2249 = vmul.f32 %v2248, 0.6931472
    %v2250 = vmul.f32 -0.5, %v1274
    %v2251 = vadd.f32 %v2250, 1.0
    %v2252 = vmul.f32 %v2251, %v1274
    %v2253 = vand.u32 2147483647, %v1274
    %vm2254 = vcmp.lt.f32.partialorder %v2253, 0.0004427343
    %v2255 = vsel %vm2254, %v2252, %v2249
    %v2256 = vadd.f32 %v1276, 1.0
    %v2257 = vlog2.pop %v2256
    %v2258 = vmul.f32 %v2257, 0.6931472
    %v2259 = vmul.f32 -0.5, %v1276
    %v2260 = vadd.f32 %v2259, 1.0
    %v2261 = vmul.f32 %v2260, %v1276
    %v2262 = vand.u32 2147483647, %v1276
    %vm2263 = vcmp.lt.f32.partialorder %v2262, 0.0004427343
    %v2264 = vsel %vm2263, %v2261, %v2258
    %v2265 = vadd.f32 %v1278, 1.0
    %v2266 = vlog2.pop %v2265
    %v2267 = vmul.f32 %v2266, 0.6931472
    %v2268 = vmul.f32 -0.5, %v1278
    %v2269 = vadd.f32 %v2268, 1.0
    %v2270 = vmul.f32 %v2269, %v1278
    %v2271 = vand.u32 2147483647, %v1278
    %vm2272 = vcmp.lt.f32.partialorder %v2271, 0.0004427343
    %v2273 = vsel %vm2272, %v2270, %v2267
    %v2274 = vadd.f32 %v1280, 1.0
    %v2275 = vlog2.pop %v2274
    %v2276 = vmul.f32 %v2275, 0.6931472
    %v2277 = vmul.f32 -0.5, %v1280
    %v2278 = vadd.f32 %v2277, 1.0
    %v2279 = vmul.f32 %v2278, %v1280
    %v2280 = vand.u32 2147483647, %v1280
    %vm2281 = vcmp.lt.f32.partialorder %v2280, 0.0004427343
    %v2282 = vsel %vm2281, %v2279, %v2276
    %v2283 = vadd.f32 %v1282, 1.0
    %v2284 = vlog2.pop %v2283
    %v2285 = vmul.f32 %v2284, 0.6931472
    %v2286 = vmul.f32 -0.5, %v1282
    %v2287 = vadd.f32 %v2286, 1.0
    %v2288 = vmul.f32 %v2287, %v1282
    %v2289 = vand.u32 2147483647, %v1282
    %vm2290 = vcmp.lt.f32.partialorder %v2289, 0.0004427343
    %v2291 = vsel %vm2290, %v2288, %v2285
    %v2292 = vadd.f32 %v1284, 1.0
    %v2293 = vlog2.pop %v2292
    %v2294 = vmul.f32 %v2293, 0.6931472
    %v2295 = vmul.f32 -0.5, %v1284
    %v2296 = vadd.f32 %v2295, 1.0
    %v2297 = vmul.f32 %v2296, %v1284
    %v2298 = vand.u32 2147483647, %v1284
    %vm2299 = vcmp.lt.f32.partialorder %v2298, 0.0004427343
    %v2300 = vsel %vm2299, %v2297, %v2294
    %v2301 = vadd.f32 %v1286, 1.0
    %v2302 = vlog2.pop %v2301
    %v2303 = vmul.f32 %v2302, 0.6931472
    %v2304 = vmul.f32 -0.5, %v1286
    %v2305 = vadd.f32 %v2304, 1.0
    %v2306 = vmul.f32 %v2305, %v1286
    %v2307 = vand.u32 2147483647, %v1286
    %vm2308 = vcmp.lt.f32.partialorder %v2307, 0.0004427343
    %v2309 = vsel %vm2308, %v2306, %v2303
    %v2310 = vadd.f32 %v1288, 1.0
    %v2311 = vlog2.pop %v2310
    %v2312 = vmul.f32 %v2311, 0.6931472
    %v2313 = vmul.f32 -0.5, %v1288
    %v2314 = vadd.f32 %v2313, 1.0
    %v2315 = vmul.f32 %v2314, %v1288
    %v2316 = vand.u32 2147483647, %v1288
    %vm2317 = vcmp.lt.f32.partialorder %v2316, 0.0004427343
    %v2318 = vsel %vm2317, %v2315, %v2312
    %v2319 = vadd.f32 %v1290, 1.0
    %v2320 = vlog2.pop %v2319
    %v2321 = vmul.f32 %v2320, 0.6931472
    %v2322 = vmul.f32 -0.5, %v1290
    %v2323 = vadd.f32 %v2322, 1.0
    %v2324 = vmul.f32 %v2323, %v1290
    %v2325 = vand.u32 2147483647, %v1290
    %vm2326 = vcmp.lt.f32.partialorder %v2325, 0.0004427343
    %v2327 = vsel %vm2326, %v2324, %v2321
    %v2328 = vadd.f32 %v1292, 1.0
    %v2329 = vlog2.pop %v2328
    %v2330 = vmul.f32 %v2329, 0.6931472
    %v2331 = vmul.f32 -0.5, %v1292
    %v2332 = vadd.f32 %v2331, 1.0
    %v2333 = vmul.f32 %v2332, %v1292
    %v2334 = vand.u32 2147483647, %v1292
    %vm2335 = vcmp.lt.f32.partialorder %v2334, 0.0004427343
    %v2336 = vsel %vm2335, %v2333, %v2330
    %v2337 = vadd.f32 %v1294, 1.0
    %v2338 = vlog2.pop %v2337
    %v2339 = vmul.f32 %v2338, 0.6931472
    %v2340 = vmul.f32 -0.5, %v1294
    %v2341 = vadd.f32 %v2340, 1.0
    %v2342 = vmul.f32 %v2341, %v1294
    %v2343 = vand.u32 2147483647, %v1294
    %vm2344 = vcmp.lt.f32.partialorder %v2343, 0.0004427343
    %v2345 = vsel %vm2344, %v2342, %v2339
    %v2346 = vadd.f32 %v1296, 1.0
    %v2347 = vlog2.pop %v2346
    %v2348 = vmul.f32 %v2347, 0.6931472
    %v2349 = vmul.f32 -0.5, %v1296
    %v2350 = vadd.f32 %v2349, 1.0
    %v2351 = vmul.f32 %v2350, %v1296
    %v2352 = vand.u32 2147483647, %v1296
    %vm2353 = vcmp.lt.f32.partialorder %v2352, 0.0004427343
    %v2354 = vsel %vm2353, %v2351, %v2348
    %v2355 = vadd.f32 %v1298, 1.0
    %v2356 = vlog2.pop %v2355
    %v2357 = vmul.f32 %v2356, 0.6931472
    %v2358 = vmul.f32 -0.5, %v1298
    %v2359 = vadd.f32 %v2358, 1.0
    %v2360 = vmul.f32 %v2359, %v1298
    %v2361 = vand.u32 2147483647, %v1298
    %vm2362 = vcmp.lt.f32.partialorder %v2361, 0.0004427343
    %v2363 = vsel %vm2362, %v2360, %v2357
    %v2364 = vadd.f32 %v1300, 1.0
    %v2365 = vlog2.pop %v2364
    %v2366 = vmul.f32 %v2365, 0.6931472
    %v2367 = vmul.f32 -0.5, %v1300
    %v2368 = vadd.f32 %v2367, 1.0
    %v2369 = vmul.f32 %v2368, %v1300
    %v2370 = vand.u32 2147483647, %v1300
    %vm2371 = vcmp.lt.f32.partialorder %v2370, 0.0004427343
    %v2372 = vsel %vm2371, %v2369, %v2366
    %v2373 = vadd.f32 %v1302, 1.0
    %v2374 = vlog2.pop %v2373
    %v2375 = vmul.f32 %v2374, 0.6931472
    %v2376 = vmul.f32 -0.5, %v1302
    %v2377 = vadd.f32 %v2376, 1.0
    %v2378 = vmul.f32 %v2377, %v1302
    %v2379 = vand.u32 2147483647, %v1302
    %vm2380 = vcmp.lt.f32.partialorder %v2379, 0.0004427343
    %v2381 = vsel %vm2380, %v2378, %v2375
    %v2382 = vadd.f32 %v1304, 1.0
    %v2383 = vlog2.pop %v2382
    %v2384 = vmul.f32 %v2383, 0.6931472
    %v2385 = vmul.f32 -0.5, %v1304
    %v2386 = vadd.f32 %v2385, 1.0
    %v2387 = vmul.f32 %v2386, %v1304
    %v2388 = vand.u32 2147483647, %v1304
    %vm2389 = vcmp.lt.f32.partialorder %v2388, 0.0004427343
    %v2390 = vsel %vm2389, %v2387, %v2384
    %v2391 = vadd.f32 %v1306, 1.0
    %v2392 = vlog2.pop %v2391
    %v2393 = vmul.f32 %v2392, 0.6931472
    %v2394 = vmul.f32 -0.5, %v1306
    %v2395 = vadd.f32 %v2394, 1.0
    %v2396 = vmul.f32 %v2395, %v1306
    %v2397 = vand.u32 2147483647, %v1306
    %vm2398 = vcmp.lt.f32.partialorder %v2397, 0.0004427343
    %v2399 = vsel %vm2398, %v2396, %v2393
    %v2400 = vadd.f32 %v1308, 1.0
    %v2401 = vlog2.pop %v2400
    %v2402 = vmul.f32 %v2401, 0.6931472
    %v2403 = vmul.f32 -0.5, %v1308
    %v2404 = vadd.f32 %v2403, 1.0
    %v2405 = vmul.f32 %v2404, %v1308
    %v2406 = vand.u32 2147483647, %v1308
    %vm2407 = vcmp.lt.f32.partialorder %v2406, 0.0004427343
    %v2408 = vsel %vm2407, %v2405, %v2402
    %v2409 = vadd.f32 %v1310, 1.0
    %v2410 = vlog2.pop %v2409
    %v2411 = vmul.f32 %v2410, 0.6931472
    %v2412 = vmul.f32 -0.5, %v1310
    %v2413 = vadd.f32 %v2412, 1.0
    %v2414 = vmul.f32 %v2413, %v1310
    %v2415 = vand.u32 2147483647, %v1310
    %vm2416 = vcmp.lt.f32.partialorder %v2415, 0.0004427343
    %v2417 = vsel %vm2416, %v2414, %v2411
    %v2418 = vadd.f32 %v1312, 1.0
    %v2419 = vlog2.pop %v2418
    %v2420 = vmul.f32 %v2419, 0.6931472
    %v2421 = vmul.f32 -0.5, %v1312
    %v2422 = vadd.f32 %v2421, 1.0
    %v2423 = vmul.f32 %v2422, %v1312
    %v2424 = vand.u32 2147483647, %v1312
    %vm2425 = vcmp.lt.f32.partialorder %v2424, 0.0004427343
    %v2426 = vsel %vm2425, %v2423, %v2420
    %v2427 = vadd.f32 %v1314, 1.0
    %v2428 = vlog2.pop %v2427
    %v2429 = vmul.f32 %v2428, 0.6931472
    %v2430 = vmul.f32 -0.5, %v1314
    %v2431 = vadd.f32 %v2430, 1.0
    %v2432 = vmul.f32 %v2431, %v1314
    %v2433 = vand.u32 2147483647, %v1314
    %vm2434 = vcmp.lt.f32.partialorder %v2433, 0.0004427343
    %v2435 = vsel %vm2434, %v2432, %v2429
    %v2436 = vadd.f32 %v1316, 1.0
    %v2437 = vlog2.pop %v2436
    %v2438 = vmul.f32 %v2437, 0.6931472
    %v2439 = vmul.f32 -0.5, %v1316
    %v2440 = vadd.f32 %v2439, 1.0
    %v2441 = vmul.f32 %v2440, %v1316
    %v2442 = vand.u32 2147483647, %v1316
    %vm2443 = vcmp.lt.f32.partialorder %v2442, 0.0004427343
    %v2444 = vsel %vm2443, %v2441, %v2438
    %v2445 = vadd.f32 %v1318, 1.0
    %v2446 = vlog2.pop %v2445
    %v2447 = vmul.f32 %v2446, 0.6931472
    %v2448 = vmul.f32 -0.5, %v1318
    %v2449 = vadd.f32 %v2448, 1.0
    %v2450 = vmul.f32 %v2449, %v1318
    %v2451 = vand.u32 2147483647, %v1318
    %vm2452 = vcmp.lt.f32.partialorder %v2451, 0.0004427343
    %v2453 = vsel %vm2452, %v2450, %v2447
    %v2454 = vadd.f32 %v1320, 1.0
    %v2455 = vlog2.pop %v2454
    %v2456 = vmul.f32 %v2455, 0.6931472
    %v2457 = vmul.f32 -0.5, %v1320
    %v2458 = vadd.f32 %v2457, 1.0
    %v2459 = vmul.f32 %v2458, %v1320
    %v2460 = vand.u32 2147483647, %v1320
    %vm2461 = vcmp.lt.f32.partialorder %v2460, 0.0004427343
    %v2462 = vsel %vm2461, %v2459, %v2456
    %v2463 = vadd.f32 %v1322, 1.0
    %v2464 = vlog2.pop %v2463
    %v2465 = vmul.f32 %v2464, 0.6931472
    %v2466 = vmul.f32 -0.5, %v1322
    %v2467 = vadd.f32 %v2466, 1.0
    %v2468 = vmul.f32 %v2467, %v1322
    %v2469 = vand.u32 2147483647, %v1322
    %vm2470 = vcmp.lt.f32.partialorder %v2469, 0.0004427343
    %v2471 = vsel %vm2470, %v2468, %v2465
    %v2472 = vadd.f32 %v1324, 1.0
    %v2473 = vlog2.pop %v2472
    %v2474 = vmul.f32 %v2473, 0.6931472
    %v2475 = vmul.f32 -0.5, %v1324
    %v2476 = vadd.f32 %v2475, 1.0
    %v2477 = vmul.f32 %v2476, %v1324
    %v2478 = vand.u32 2147483647, %v1324
    %vm2479 = vcmp.lt.f32.partialorder %v2478, 0.0004427343
    %v2480 = vsel %vm2479, %v2477, %v2474
    %v2481 = vadd.f32 %v1326, 1.0
    %v2482 = vlog2.pop %v2481
    %v2483 = vmul.f32 %v2482, 0.6931472
    %v2484 = vmul.f32 -0.5, %v1326
    %v2485 = vadd.f32 %v2484, 1.0
    %v2486 = vmul.f32 %v2485, %v1326
    %v2487 = vand.u32 2147483647, %v1326
    %vm2488 = vcmp.lt.f32.partialorder %v2487, 0.0004427343
    %v2489 = vsel %vm2488, %v2486, %v2483
    %v2490 = vadd.f32 %v1328, 1.0
    %v2491 = vlog2.pop %v2490
    %v2492 = vmul.f32 %v2491, 0.6931472
    %v2493 = vmul.f32 -0.5, %v1328
    %v2494 = vadd.f32 %v2493, 1.0
    %v2495 = vmul.f32 %v2494, %v1328
    %v2496 = vand.u32 2147483647, %v1328
    %vm2497 = vcmp.lt.f32.partialorder %v2496, 0.0004427343
    %v2498 = vsel %vm2497, %v2495, %v2492
    %v2499 = vadd.f32 %v1330, 1.0
    %v2500 = vlog2.pop %v2499
    %v2501 = vmul.f32 %v2500, 0.6931472
    %v2502 = vmul.f32 -0.5, %v1330
    %v2503 = vadd.f32 %v2502, 1.0
    %v2504 = vmul.f32 %v2503, %v1330
    %v2505 = vand.u32 2147483647, %v1330
    %vm2506 = vcmp.lt.f32.partialorder %v2505, 0.0004427343
    %v2507 = vsel %vm2506, %v2504, %v2501
    %v2508 = vadd.f32 %v1332, 1.0
    %v2509 = vlog2.pop %v2508
    %v2510 = vmul.f32 %v2509, 0.6931472
    %v2511 = vmul.f32 -0.5, %v1332
    %v2512 = vadd.f32 %v2511, 1.0
    %v2513 = vmul.f32 %v2512, %v1332
    %v2514 = vand.u32 2147483647, %v1332
    %vm2515 = vcmp.lt.f32.partialorder %v2514, 0.0004427343
    %v2516 = vsel %vm2515, %v2513, %v2510
    %v2517 = vadd.f32 %v1334, 1.0
    %v2518 = vlog2.pop %v2517
    %v2519 = vmul.f32 %v2518, 0.6931472
    %v2520 = vmul.f32 -0.5, %v1334
    %v2521 = vadd.f32 %v2520, 1.0
    %v2522 = vmul.f32 %v2521, %v1334
    %v2523 = vand.u32 2147483647, %v1334
    %vm2524 = vcmp.lt.f32.partialorder %v2523, 0.0004427343
    %v2525 = vsel %vm2524, %v2522, %v2519
    %v2526 = vadd.f32 %v1336, 1.0
    %v2527 = vlog2.pop %v2526
    %v2528 = vmul.f32 %v2527, 0.6931472
    %v2529 = vmul.f32 -0.5, %v1336
    %v2530 = vadd.f32 %v2529, 1.0
    %v2531 = vmul.f32 %v2530, %v1336
    %v2532 = vand.u32 2147483647, %v1336
    %vm2533 = vcmp.lt.f32.partialorder %v2532, 0.0004427343
    %v2534 = vsel %vm2533, %v2531, %v2528
    %v2535 = vadd.f32 %v1338, 1.0
    %v2536 = vlog2.pop %v2535
    %v2537 = vmul.f32 %v2536, 0.6931472
    %v2538 = vmul.f32 -0.5, %v1338
    %v2539 = vadd.f32 %v2538, 1.0
    %v2540 = vmul.f32 %v2539, %v1338
    %v2541 = vand.u32 2147483647, %v1338
    %vm2542 = vcmp.lt.f32.partialorder %v2541, 0.0004427343
    %v2543 = vsel %vm2542, %v2540, %v2537
    %v2544 = vadd.f32 %v1340, 1.0
    %v2545 = vlog2.pop %v2544
    %v2546 = vmul.f32 %v2545, 0.6931472
    %v2547 = vmul.f32 -0.5, %v1340
    %v2548 = vadd.f32 %v2547, 1.0
    %v2549 = vmul.f32 %v2548, %v1340
    %v2550 = vand.u32 2147483647, %v1340
    %vm2551 = vcmp.lt.f32.partialorder %v2550, 0.0004427343
    %v2552 = vsel %vm2551, %v2549, %v2546
    %v2553 = vadd.f32 %v1342, 1.0
    %v2554 = vlog2.pop %v2553
    %v2555 = vmul.f32 %v2554, 0.6931472
    %v2556 = vmul.f32 -0.5, %v1342
    %v2557 = vadd.f32 %v2556, 1.0
    %v2558 = vmul.f32 %v2557, %v1342
    %v2559 = vand.u32 2147483647, %v1342
    %vm2560 = vcmp.lt.f32.partialorder %v2559, 0.0004427343
    %v2561 = vsel %vm2560, %v2558, %v2555
    %v2562 = vadd.f32 %v1344, 1.0
    %v2563 = vlog2.pop %v2562
    %v2564 = vmul.f32 %v2563, 0.6931472
    %v2565 = vmul.f32 -0.5, %v1344
    %v2566 = vadd.f32 %v2565, 1.0
    %v2567 = vmul.f32 %v2566, %v1344
    %v2568 = vand.u32 2147483647, %v1344
    %vm2569 = vcmp.lt.f32.partialorder %v2568, 0.0004427343
    %v2570 = vsel %vm2569, %v2567, %v2564
    %v2571 = vadd.f32 %v1346, 1.0
    %v2572 = vlog2.pop %v2571
    %v2573 = vmul.f32 %v2572, 0.6931472
    %v2574 = vmul.f32 -0.5, %v1346
    %v2575 = vadd.f32 %v2574, 1.0
    %v2576 = vmul.f32 %v2575, %v1346
    %v2577 = vand.u32 2147483647, %v1346
    %vm2578 = vcmp.lt.f32.partialorder %v2577, 0.0004427343
    %v2579 = vsel %vm2578, %v2576, %v2573
    %v2580 = vadd.f32 %v1348, 1.0
    %v2581 = vlog2.pop %v2580
    %v2582 = vmul.f32 %v2581, 0.6931472
    %v2583 = vmul.f32 -0.5, %v1348
    %v2584 = vadd.f32 %v2583, 1.0
    %v2585 = vmul.f32 %v2584, %v1348
    %v2586 = vand.u32 2147483647, %v1348
    %vm2587 = vcmp.lt.f32.partialorder %v2586, 0.0004427343
    %v2588 = vsel %vm2587, %v2585, %v2582
    %v2589 = vadd.f32 %v1350, 1.0
    %v2590 = vlog2.pop %v2589
    %v2591 = vmul.f32 %v2590, 0.6931472
    %v2592 = vmul.f32 -0.5, %v1350
    %v2593 = vadd.f32 %v2592, 1.0
    %v2594 = vmul.f32 %v2593, %v1350
    %v2595 = vand.u32 2147483647, %v1350
    %vm2596 = vcmp.lt.f32.partialorder %v2595, 0.0004427343
    %v2597 = vsel %vm2596, %v2594, %v2591
    %v2598 = vadd.f32 %v1352, 1.0
    %v2599 = vlog2.pop %v2598
    %v2600 = vmul.f32 %v2599, 0.6931472
    %v2601 = vmul.f32 -0.5, %v1352
    %v2602 = vadd.f32 %v2601, 1.0
    %v2603 = vmul.f32 %v2602, %v1352
    %v2604 = vand.u32 2147483647, %v1352
    %vm2605 = vcmp.lt.f32.partialorder %v2604, 0.0004427343
    %v2606 = vsel %vm2605, %v2603, %v2600
    %v2607 = vadd.f32 %v1354, 1.0
    %v2608 = vlog2.pop %v2607
    %v2609 = vmul.f32 %v2608, 0.6931472
    %v2610 = vmul.f32 -0.5, %v1354
    %v2611 = vadd.f32 %v2610, 1.0
    %v2612 = vmul.f32 %v2611, %v1354
    %v2613 = vand.u32 2147483647, %v1354
    %vm2614 = vcmp.lt.f32.partialorder %v2613, 0.0004427343
    %v2615 = vsel %vm2614, %v2612, %v2609
    %v2616 = vadd.f32 %v1356, 1.0
    %v2617 = vlog2.pop %v2616
    %v2618 = vmul.f32 %v2617, 0.6931472
    %v2619 = vmul.f32 -0.5, %v1356
    %v2620 = vadd.f32 %v2619, 1.0
    %v2621 = vmul.f32 %v2620, %v1356
    %v2622 = vand.u32 2147483647, %v1356
    %vm2623 = vcmp.lt.f32.partialorder %v2622, 0.0004427343
    %v2624 = vsel %vm2623, %v2621, %v2618
    %v2625 = vadd.f32 %v1358, 1.0
    %v2626 = vlog2.pop %v2625
    %v2627 = vmul.f32 %v2626, 0.6931472
    %v2628 = vmul.f32 -0.5, %v1358
    %v2629 = vadd.f32 %v2628, 1.0
    %v2630 = vmul.f32 %v2629, %v1358
    %v2631 = vand.u32 2147483647, %v1358
    %vm2632 = vcmp.lt.f32.partialorder %v2631, 0.0004427343
    %v2633 = vsel %vm2632, %v2630, %v2627
    %v2634 = vadd.f32 %v1360, 1.0
    %v2635 = vlog2.pop %v2634
    %v2636 = vmul.f32 %v2635, 0.6931472
    %v2637 = vmul.f32 -0.5, %v1360
    %v2638 = vadd.f32 %v2637, 1.0
    %v2639 = vmul.f32 %v2638, %v1360
    %v2640 = vand.u32 2147483647, %v1360
    %vm2641 = vcmp.lt.f32.partialorder %v2640, 0.0004427343
    %v2642 = vsel %vm2641, %v2639, %v2636
    %v2643 = vadd.f32 %v1362, 1.0
    %v2644 = vlog2.pop %v2643
    %v2645 = vmul.f32 %v2644, 0.6931472
    %v2646 = vmul.f32 -0.5, %v1362
    %v2647 = vadd.f32 %v2646, 1.0
    %v2648 = vmul.f32 %v2647, %v1362
    %v2649 = vand.u32 2147483647, %v1362
    %vm2650 = vcmp.lt.f32.partialorder %v2649, 0.0004427343
    %v2651 = vsel %vm2650, %v2648, %v2645
    %v2652 = vadd.f32 %v1364, 1.0
    %v2653 = vlog2.pop %v2652
    %v2654 = vmul.f32 %v2653, 0.6931472
    %v2655 = vmul.f32 -0.5, %v1364
    %v2656 = vadd.f32 %v2655, 1.0
    %v2657 = vmul.f32 %v2656, %v1364
    %v2658 = vand.u32 2147483647, %v1364
    %vm2659 = vcmp.lt.f32.partialorder %v2658, 0.0004427343
    %v2660 = vsel %vm2659, %v2657, %v2654
    %v2661 = vadd.f32 %v645, %v1373
    %v2662 = vadd.f32 %v646, %v1382
    %v2663 = vadd.f32 %v647, %v1391
    %v2664 = vadd.f32 %v648, %v1400
    %v2665 = vadd.f32 %v649, %v1409
    %v2666 = vadd.f32 %v650, %v1418
    %v2667 = vadd.f32 %v651, %v1427
    %v2668 = vadd.f32 %v652, %v1436
    %v2669 = vadd.f32 %v653, %v1445
    %v2670 = vadd.f32 %v654, %v1454
    %v2671 = vadd.f32 %v655, %v1463
    %v2672 = vadd.f32 %v656, %v1472
    %v2673 = vadd.f32 %v657, %v1481
    %v2674 = vadd.f32 %v658, %v1490
    %v2675 = vadd.f32 %v659, %v1499
    %v2676 = vadd.f32 %v660, %v1508
    %v2677 = vadd.f32 %v661, %v1517
    %v2678 = vadd.f32 %v662, %v1526
    %v2679 = vadd.f32 %v663, %v1535
    %v2680 = vadd.f32 %v664, %v1544
    %v2681 = vadd.f32 %v665, %v1553
    %v2682 = vadd.f32 %v666, %v1562
    %v2683 = vadd.f32 %v667, %v1571
    %v2684 = vadd.f32 %v668, %v1580
    %v2685 = vadd.f32 %v669, %v1589
    %v2686 = vadd.f32 %v670, %v1598
    %v2687 = vadd.f32 %v671, %v1607
    %v2688 = vadd.f32 %v672, %v1616
    %v2689 = vadd.f32 %v673, %v1625
    %v2690 = vadd.f32 %v674, %v1634
    %v2691 = vadd.f32 %v675, %v1643
    %v2692 = vadd.f32 %v676, %v1652
    %v2693 = vadd.f32 %v677, %v1661
    %v2694 = vadd.f32 %v678, %v1670
    %v2695 = vadd.f32 %v679, %v1679
    %v2696 = vadd.f32 %v680, %v1688
    %v2697 = vadd.f32 %v681, %v1697
    %v2698 = vadd.f32 %v682, %v1706
    %v2699 = vadd.f32 %v683, %v1715
    %v2700 = vadd.f32 %v684, %v1724
    %v2701 = vadd.f32 %v685, %v1733
    %v2702 = vadd.f32 %v686, %v1742
    %v2703 = vadd.f32 %v687, %v1751
    %v2704 = vadd.f32 %v688, %v1760
    %v2705 = vadd.f32 %v689, %v1769
    %v2706 = vadd.f32 %v690, %v1778
    %v2707 = vadd.f32 %v691, %v1787
    %v2708 = vadd.f32 %v692, %v1796
    %v2709 = vadd.f32 %v693, %v1805
    %v2710 = vadd.f32 %v694, %v1814
    %v2711 = vadd.f32 %v695, %v1823
    %v2712 = vadd.f32 %v696, %v1832
    %v2713 = vadd.f32 %v697, %v1841
    %v2714 = vadd.f32 %v698, %v1850
    %v2715 = vadd.f32 %v699, %v1859
    %v2716 = vadd.f32 %v700, %v1868
    %v2717 = vadd.f32 %v701, %v1877
    %v2718 = vadd.f32 %v702, %v1886
    %v2719 = vadd.f32 %v703, %v1895
    %v2720 = vadd.f32 %v704, %v1904
    %v2721 = vadd.f32 %v705, %v1913
    %v2722 = vadd.f32 %v706, %v1922
    %v2723 = vadd.f32 %v707, %v1931
    %v2724 = vadd.f32 %v708, %v1940
    %v2725 = vadd.f32 %v709, %v1949
    %v2726 = vadd.f32 %v710, %v1958
    %v2727 = vadd.f32 %v711, %v1967
    %v2728 = vadd.f32 %v712, %v1976
    %v2729 = vadd.f32 %v713, %v1985
    %v2730 = vadd.f32 %v714, %v1994
    %v2731 = vadd.f32 %v715, %v2003
    %v2732 = vadd.f32 %v716, %v2012
    %v2733 = vadd.f32 %v717, %v2021
    %v2734 = vadd.f32 %v718, %v2030
    %v2735 = vadd.f32 %v719, %v2039
    %v2736 = vadd.f32 %v720, %v2048
    %v2737 = vadd.f32 %v721, %v2057
    %v2738 = vadd.f32 %v722, %v2066
    %v2739 = vadd.f32 %v723, %v2075
    %v2740 = vadd.f32 %v724, %v2084
    %v2741 = vadd.f32 %v725, %v2093
    %v2742 = vadd.f32 %v726, %v2102
    %v2743 = vadd.f32 %v727, %v2111
    %v2744 = vadd.f32 %v728, %v2120
    %v2745 = vadd.f32 %v729, %v2129
    %v2746 = vadd.f32 %v730, %v2138
    %v2747 = vadd.f32 %v731, %v2147
    %v2748 = vadd.f32 %v732, %v2156
    %v2749 = vadd.f32 %v733, %v2165
    %v2750 = vadd.f32 %v734, %v2174
    %v2751 = vadd.f32 %v735, %v2183
    %v2752 = vadd.f32 %v736, %v2192
    %v2753 = vadd.f32 %v737, %v2201
    %v2754 = vadd.f32 %v738, %v2210
    %v2755 = vadd.f32 %v739, %v2219
    %v2756 = vadd.f32 %v740, %v2228
    %v2757 = vadd.f32 %v741, %v2237
    %v2758 = vadd.f32 %v742, %v2246
    %v2759 = vadd.f32 %v743, %v2255
    %v2760 = vadd.f32 %v744, %v2264
    %v2761 = vadd.f32 %v745, %v2273
    %v2762 = vadd.f32 %v746, %v2282
    %v2763 = vadd.f32 %v747, %v2291
    %v2764 = vadd.f32 %v748, %v2300
    %v2765 = vadd.f32 %v749, %v2309
    %v2766 = vadd.f32 %v750, %v2318
    %v2767 = vadd.f32 %v751, %v2327
    %v2768 = vadd.f32 %v752, %v2336
    %v2769 = vadd.f32 %v753, %v2345
    %v2770 = vadd.f32 %v754, %v2354
    %v2771 = vadd.f32 %v755, %v2363
    %v2772 = vadd.f32 %v756, %v2372
    %v2773 = vadd.f32 %v757, %v2381
    %v2774 = vadd.f32 %v758, %v2390
    %v2775 = vadd.f32 %v759, %v2399
    %v2776 = vadd.f32 %v760, %v2408
    %v2777 = vadd.f32 %v761, %v2417
    %v2778 = vadd.f32 %v762, %v2426
    %v2779 = vadd.f32 %v763, %v2435
    %v2780 = vadd.f32 %v764, %v2444
    %v2781 = vadd.f32 %v765, %v2453
    %v2782 = vadd.f32 %v766, %v2462
    %v2783 = vadd.f32 %v767, %v2471
    %v2784 = vadd.f32 %v768, %v2480
    %v2785 = vadd.f32 %v769, %v2489
    %v2786 = vadd.f32 %v770, %v2498
    %v2787 = vadd.f32 %v771, %v2507
    %v2788 = vadd.f32 %v772, %v2516
    %v2789 = vadd.f32 %v773, %v2525
    %v2790 = vadd.f32 %v774, %v2534
    %v2791 = vadd.f32 %v775, %v2543
    %v2792 = vadd.f32 %v776, %v2552
    %v2793 = vadd.f32 %v777, %v2561
    %v2794 = vadd.f32 %v778, %v2570
    %v2795 = vadd.f32 %v779, %v2579
    %v2796 = vadd.f32 %v780, %v2588
    %v2797 = vadd.f32 %v781, %v2597
    %v2798 = vadd.f32 %v782, %v2606
    %v2799 = vadd.f32 %v783, %v2615
    %v2800 = vadd.f32 %v784, %v2624
    %v2801 = vadd.f32 %v785, %v2633
    %v2802 = vadd.f32 %v786, %v2642
    %v2803 = vadd.f32 %v787, %v2651
    %v2804 = vadd.f32 %v788, %v2660
    %s2805 = sadd.s32 0, 0
    %s2806 = smul.u32 %s2805, 1152
    %s2807 = ssub.s32 1152, %s2806
    %p2808 = scmp.ge.s32.totalorder %s2807, 1152
    // Predicated region
    $region22: #{tpu_custom_call.1} parent=1 // pred_check
      %p2809 = pneg %p2808
    $region23: #{tpu_custom_call.1} parent=1 // pred_check_branch
      %2811 = sbr.rel (%p2809) target = $region25
    $region24: #{tpu_custom_call.1} parent=1 // pred_region
      %v2812 = vld [vmem:[#allocation7] sm:$0xff]
      %v2813 = vadd.f32 %v2661, %v2662
      %v2814 = vadd.f32 %v2813, %v2663
      %v2815 = vadd.f32 %v2814, %v2664
      %v2816 = vadd.f32 %v2815, %v2665
      %v2817 = vadd.f32 %v2816, %v2666
      %v2818 = vadd.f32 %v2817, %v2667
      %v2819 = vadd.f32 %v2818, %v2668
      %v2820 = vadd.f32 %v2819, %v2669
      %v2821 = vadd.f32 %v2820, %v2670
      %v2822 = vadd.f32 %v2821, %v2671
      %v2823 = vadd.f32 %v2822, %v2672
      %v2824 = vadd.f32 %v2823, %v2673
      %v2825 = vadd.f32 %v2824, %v2674
      %v2826 = vadd.f32 %v2825, %v2675
      %v2827 = vadd.f32 %v2826, %v2676
      %v2828 = vadd.f32 %v2827, %v2677
      %v2829 = vadd.f32 %v2828, %v2678
      %v2830 = vadd.f32 %v2829, %v2679
      %v2831 = vadd.f32 %v2830, %v2680
      %v2832 = vadd.f32 %v2831, %v2681
      %v2833 = vadd.f32 %v2832, %v2682
      %v2834 = vadd.f32 %v2833, %v2683
      %v2835 = vadd.f32 %v2834, %v2684
      %v2836 = vadd.f32 %v2835, %v2685
      %v2837 = vadd.f32 %v2836, %v2686
      %v2838 = vadd.f32 %v2837, %v2687
      %v2839 = vadd.f32 %v2838, %v2688
      %v2840 = vadd.f32 %v2839, %v2689
      %v2841 = vadd.f32 %v2840, %v2690
      %v2842 = vadd.f32 %v2841, %v2691
      %v2843 = vadd.f32 %v2842, %v2692
      %v2844 = vadd.f32 %v2843, %v2693
      %v2845 = vadd.f32 %v2844, %v2694
      %v2846 = vadd.f32 %v2845, %v2695
      %v2847 = vadd.f32 %v2846, %v2696
      %v2848 = vadd.f32 %v2847, %v2697
      %v2849 = vadd.f32 %v2848, %v2698
      %v2850 = vadd.f32 %v2849, %v2699
      %v2851 = vadd.f32 %v2850, %v2700
      %v2852 = vadd.f32 %v2851, %v2701
      %v2853 = vadd.f32 %v2852, %v2702
      %v2854 = vadd.f32 %v2853, %v2703
      %v2855 = vadd.f32 %v2854, %v2704
      %v2856 = vadd.f32 %v2855, %v2705
      %v2857 = vadd.f32 %v2856, %v2706
      %v2858 = vadd.f32 %v2857, %v2707
      %v2859 = vadd.f32 %v2858, %v2708
      %v2860 = vadd.f32 %v2859, %v2709
      %v2861 = vadd.f32 %v2860, %v2710
      %v2862 = vadd.f32 %v2861, %v2711
      %v2863 = vadd.f32 %v2862, %v2712
      %v2864 = vadd.f32 %v2863, %v2713
      %v2865 = vadd.f32 %v2864, %v2714
      %v2866 = vadd.f32 %v2865, %v2715
      %v2867 = vadd.f32 %v2866, %v2716
      %v2868 = vadd.f32 %v2867, %v2717
      %v2869 = vadd.f32 %v2868, %v2718
      %v2870 = vadd.f32 %v2869, %v2719
      %v2871 = vadd.f32 %v2870, %v2720
      %v2872 = vadd.f32 %v2871, %v2721
      %v2873 = vadd.f32 %v2872, %v2722
      %v2874 = vadd.f32 %v2873, %v2723
      %v2875 = vadd.f32 %v2874, %v2724
      %v2876 = vadd.f32 %v2875, %v2725
      %v2877 = vadd.f32 %v2876, %v2726
      %v2878 = vadd.f32 %v2877, %v2727
      %v2879 = vadd.f32 %v2878, %v2728
      %v2880 = vadd.f32 %v2879, %v2729
      %v2881 = vadd.f32 %v2880, %v2730
      %v2882 = vadd.f32 %v2881, %v2731
      %v2883 = vadd.f32 %v2882, %v2732
      %v2884 = vadd.f32 %v2883, %v2733
      %v2885 = vadd.f32 %v2884, %v2734
      %v2886 = vadd.f32 %v2885, %v2735
      %v2887 = vadd.f32 %v2886, %v2736
      %v2888 = vadd.f32 %v2887, %v2737
      %v2889 = vadd.f32 %v2888, %v2738
      %v2890 = vadd.f32 %v2889, %v2739
      %v2891 = vadd.f32 %v2890, %v2740
      %v2892 = vadd.f32 %v2891, %v2741
      %v2893 = vadd.f32 %v2892, %v2742
      %v2894 = vadd.f32 %v2893, %v2743
      %v2895 = vadd.f32 %v2894, %v2744
      %v2896 = vadd.f32 %v2895, %v2745
      %v2897 = vadd.f32 %v2896, %v2746
      %v2898 = vadd.f32 %v2897, %v2747
      %v2899 = vadd.f32 %v2898, %v2748
      %v2900 = vadd.f32 %v2899, %v2749
      %v2901 = vadd.f32 %v2900, %v2750
      %v2902 = vadd.f32 %v2901, %v2751
      %v2903 = vadd.f32 %v2902, %v2752
      %v2904 = vadd.f32 %v2903, %v2753
      %v2905 = vadd.f32 %v2904, %v2754
      %v2906 = vadd.f32 %v2905, %v2755
      %v2907 = vadd.f32 %v2906, %v2756
      %v2908 = vadd.f32 %v2907, %v2757
      %v2909 = vadd.f32 %v2908, %v2758
      %v2910 = vadd.f32 %v2909, %v2759
      %v2911 = vadd.f32 %v2910, %v2760
      %v2912 = vadd.f32 %v2911, %v2761
      %v2913 = vadd.f32 %v2912, %v2762
      %v2914 = vadd.f32 %v2913, %v2763
      %v2915 = vadd.f32 %v2914, %v2764
      %v2916 = vadd.f32 %v2915, %v2765
      %v2917 = vadd.f32 %v2916, %v2766
      %v2918 = vadd.f32 %v2917, %v2767
      %v2919 = vadd.f32 %v2918, %v2768
      %v2920 = vadd.f32 %v2919, %v2769
      %v2921 = vadd.f32 %v2920, %v2770
      %v2922 = vadd.f32 %v2921, %v2771
      %v2923 = vadd.f32 %v2922, %v2772
      %v2924 = vadd.f32 %v2923, %v2773
      %v2925 = vadd.f32 %v2924, %v2774
      %v2926 = vadd.f32 %v2925, %v2775
      %v2927 = vadd.f32 %v2926, %v2776
      %v2928 = vadd.f32 %v2927, %v2777
      %v2929 = vadd.f32 %v2928, %v2778
      %v2930 = vadd.f32 %v2929, %v2779
      %v2931 = vadd.f32 %v2930, %v2780
      %v2932 = vadd.f32 %v2931, %v2781
      %v2933 = vadd.f32 %v2932, %v2782
      %v2934 = vadd.f32 %v2933, %v2783
      %v2935 = vadd.f32 %v2934, %v2784
      %v2936 = vadd.f32 %v2935, %v2785
      %v2937 = vadd.f32 %v2936, %v2786
      %v2938 = vadd.f32 %v2937, %v2787
      %v2939 = vadd.f32 %v2938, %v2788
      %v2940 = vadd.f32 %v2939, %v2789
      %v2941 = vadd.f32 %v2940, %v2790
      %v2942 = vadd.f32 %v2941, %v2791
      %v2943 = vadd.f32 %v2942, %v2792
      %v2944 = vadd.f32 %v2943, %v2793
      %v2945 = vadd.f32 %v2944, %v2794
      %v2946 = vadd.f32 %v2945, %v2795
      %v2947 = vadd.f32 %v2946, %v2796
      %v2948 = vadd.f32 %v2947, %v2797
      %v2949 = vadd.f32 %v2948, %v2798
      %v2950 = vadd.f32 %v2949, %v2799
      %v2951 = vadd.f32 %v2950, %v2800
      %v2952 = vadd.f32 %v2951, %v2801
      %v2953 = vadd.f32 %v2952, %v2802
      %v2954 = vadd.f32 %v2953, %v2803
      %v2955 = vadd.f32 %v2954, %v2804
      %v2956 = vadd.f32 %v2812, %v2955
      %2957 = vst [vmem:[#allocation7] sm:$0xff] %v2956
    $region25: #{tpu_custom_call.1} parent=1 // pred_fallthru
      _
    %p2958 = scmp.lt.s32.totalorder %s2807, 1152
    // Predicated region
    $region26: #{tpu_custom_call.1} parent=1 // pred_check
      %p2959 = pneg %p2958
    $region27: #{tpu_custom_call.1} parent=1 // pred_check_branch
      %2961 = sbr.rel (%p2959) target = $region29
    $region28: #{tpu_custom_call.1} parent=1 // pred_region
      %v2962 = vlaneseq
      %v2963 = vshrl.u32 %v2962, 7
      %v2964 = vadd.s32 %v2963, 8
      %v2965 = vadd.s32 %v2963, 16
      %v2966 = vadd.s32 %v2963, 24
      %v2967 = vadd.s32 %v2963, 32
      %v2968 = vadd.s32 %v2963, 40
      %v2969 = vadd.s32 %v2963, 48
      %v2970 = vadd.s32 %v2963, 56
      %v2971 = vadd.s32 %v2963, 64
      %v2972 = vadd.s32 %v2963, 72
      %v2973 = vadd.s32 %v2963, 80
      %v2974 = vadd.s32 %v2963, 88
      %v2975 = vadd.s32 %v2963, 96
      %v2976 = vadd.s32 %v2963, 104
      %v2977 = vadd.s32 %v2963, 112
      %v2978 = vadd.s32 %v2963, 120
      %v2979 = vadd.s32 %v2963, 128
      %v2980 = vadd.s32 %v2963, 136
      %v2981 = vadd.s32 %v2963, 144
      %v2982 = vadd.s32 %v2963, 152
      %v2983 = vadd.s32 %v2963, 160
      %v2984 = vadd.s32 %v2963, 168
      %v2985 = vadd.s32 %v2963, 176
      %v2986 = vadd.s32 %v2963, 184
      %v2987 = vadd.s32 %v2963, 192
      %v2988 = vadd.s32 %v2963, 200
      %v2989 = vadd.s32 %v2963, 208
      %v2990 = vadd.s32 %v2963, 216
      %v2991 = vadd.s32 %v2963, 224
      %v2992 = vadd.s32 %v2963, 232
      %v2993 = vadd.s32 %v2963, 240
      %v2994 = vadd.s32 %v2963, 248
      %v2995 = vadd.s32 %v2963, 256
      %v2996 = vadd.s32 %v2963, 264
      %v2997 = vadd.s32 %v2963, 272
      %v2998 = vadd.s32 %v2963, 280
      %v2999 = vadd.s32 %v2963, 288
      %v3000 = vadd.s32 %v2963, 296
      %v3001 = vadd.s32 %v2963, 304
      %v3002 = vadd.s32 %v2963, 312
      %v3003 = vadd.s32 %v2963, 320
      %v3004 = vadd.s32 %v2963, 328
      %v3005 = vadd.s32 %v2963, 336
      %v3006 = vadd.s32 %v2963, 344
      %v3007 = vadd.s32 %v2963, 352
      %v3008 = vadd.s32 %v2963, 360
      %v3009 = vadd.s32 %v2963, 368
      %v3010 = vadd.s32 %v2963, 376
      %v3011 = vadd.s32 %v2963, 384
      %v3012 = vadd.s32 %v2963, 392
      %v3013 = vadd.s32 %v2963, 400
      %v3014 = vadd.s32 %v2963, 408
      %v3015 = vadd.s32 %v2963, 416
      %v3016 = vadd.s32 %v2963, 424
      %v3017 = vadd.s32 %v2963, 432
      %v3018 = vadd.s32 %v2963, 440
      %v3019 = vadd.s32 %v2963, 448
      %v3020 = vadd.s32 %v2963, 456
      %v3021 = vadd.s32 %v2963, 464
      %v3022 = vadd.s32 %v2963, 472
      %v3023 = vadd.s32 %v2963, 480
      %v3024 = vadd.s32 %v2963, 488
      %v3025 = vadd.s32 %v2963, 496
      %v3026 = vadd.s32 %v2963, 504
      %v3027 = vadd.s32 %v2963, 512
      %v3028 = vadd.s32 %v2963, 520
      %v3029 = vadd.s32 %v2963, 528
      %v3030 = vadd.s32 %v2963, 536
      %v3031 = vadd.s32 %v2963, 544
      %v3032 = vadd.s32 %v2963, 552
      %v3033 = vadd.s32 %v2963, 560
      %v3034 = vadd.s32 %v2963, 568
      %v3035 = vadd.s32 %v2963, 576
      %v3036 = vadd.s32 %v2963, 584
      %v3037 = vadd.s32 %v2963, 592
      %v3038 = vadd.s32 %v2963, 600
      %v3039 = vadd.s32 %v2963, 608
      %v3040 = vadd.s32 %v2963, 616
      %v3041 = vadd.s32 %v2963, 624
      %v3042 = vadd.s32 %v2963, 632
      %v3043 = vadd.s32 %v2963, 640
      %v3044 = vadd.s32 %v2963, 648
      %v3045 = vadd.s32 %v2963, 656
      %v3046 = vadd.s32 %v2963, 664
      %v3047 = vadd.s32 %v2963, 672
      %v3048 = vadd.s32 %v2963, 680
      %v3049 = vadd.s32 %v2963, 688
      %v3050 = vadd.s32 %v2963, 696
      %v3051 = vadd.s32 %v2963, 704
      %v3052 = vadd.s32 %v2963, 712
      %v3053 = vadd.s32 %v2963, 720
      %v3054 = vadd.s32 %v2963, 728
      %v3055 = vadd.s32 %v2963, 736
      %v3056 = vadd.s32 %v2963, 744
      %v3057 = vadd.s32 %v2963, 752
      %v3058 = vadd.s32 %v2963, 760
      %v3059 = vadd.s32 %v2963, 768
      %v3060 = vadd.s32 %v2963, 776
      %v3061 = vadd.s32 %v2963, 784
      %v3062 = vadd.s32 %v2963, 792
      %v3063 = vadd.s32 %v2963, 800
      %v3064 = vadd.s32 %v2963, 808
      %v3065 = vadd.s32 %v2963, 816
      %v3066 = vadd.s32 %v2963, 824
      %v3067 = vadd.s32 %v2963, 832
      %v3068 = vadd.s32 %v2963, 840
      %v3069 = vadd.s32 %v2963, 848
      %v3070 = vadd.s32 %v2963, 856
      %v3071 = vadd.s32 %v2963, 864
      %v3072 = vadd.s32 %v2963, 872
      %v3073 = vadd.s32 %v2963, 880
      %v3074 = vadd.s32 %v2963, 888
      %v3075 = vadd.s32 %v2963, 896
      %v3076 = vadd.s32 %v2963, 904
      %v3077 = vadd.s32 %v2963, 912
      %v3078 = vadd.s32 %v2963, 920
      %v3079 = vadd.s32 %v2963, 928
      %v3080 = vadd.s32 %v2963, 936
      %v3081 = vadd.s32 %v2963, 944
      %v3082 = vadd.s32 %v2963, 952
      %v3083 = vadd.s32 %v2963, 960
      %v3084 = vadd.s32 %v2963, 968
      %v3085 = vadd.s32 %v2963, 976
      %v3086 = vadd.s32 %v2963, 984
      %v3087 = vadd.s32 %v2963, 992
      %v3088 = vadd.s32 %v2963, 1000
      %v3089 = vadd.s32 %v2963, 1008
      %v3090 = vadd.s32 %v2963, 1016
      %v3091 = vadd.s32 %v2963, 1024
      %v3092 = vadd.s32 %v2963, 1032
      %v3093 = vadd.s32 %v2963, 1040
      %v3094 = vadd.s32 %v2963, 1048
      %v3095 = vadd.s32 %v2963, 1056
      %v3096 = vadd.s32 %v2963, 1064
      %v3097 = vadd.s32 %v2963, 1072
      %v3098 = vadd.s32 %v2963, 1080
      %v3099 = vadd.s32 %v2963, 1088
      %v3100 = vadd.s32 %v2963, 1096
      %v3101 = vadd.s32 %v2963, 1104
      %v3102 = vadd.s32 %v2963, 1112
      %v3103 = vadd.s32 %v2963, 1120
      %v3104 = vadd.s32 %v2963, 1128
      %v3105 = vadd.s32 %v2963, 1136
      %v3106 = vadd.s32 %v2963, 1144
      %v3107 = vstv %s2807
      %vm3108 = vcmp.lt.s32.totalorder %v2963, %v3107
      %vm3109 = vcmp.lt.s32.totalorder %v2964, %v3107
      %vm3110 = vcmp.lt.s32.totalorder %v2965, %v3107
      %vm3111 = vcmp.lt.s32.totalorder %v2966, %v3107
      %vm3112 = vcmp.lt.s32.totalorder %v2967, %v3107
      %vm3113 = vcmp.lt.s32.totalorder %v2968, %v3107
      %vm3114 = vcmp.lt.s32.totalorder %v2969, %v3107
      %vm3115 = vcmp.lt.s32.totalorder %v2970, %v3107
      %vm3116 = vcmp.lt.s32.totalorder %v2971, %v3107
      %vm3117 = vcmp.lt.s32.totalorder %v2972, %v3107
      %vm3118 = vcmp.lt.s32.totalorder %v2973, %v3107
      %vm3119 = vcmp.lt.s32.totalorder %v2974, %v3107
      %vm3120 = vcmp.lt.s32.totalorder %v2975, %v3107
      %vm3121 = vcmp.lt.s32.totalorder %v2976, %v3107
      %vm3122 = vcmp.lt.s32.totalorder %v2977, %v3107
      %vm3123 = vcmp.lt.s32.totalorder %v2978, %v3107
      %vm3124 = vcmp.lt.s32.totalorder %v2979, %v3107
      %vm3125 = vcmp.lt.s32.totalorder %v2980, %v3107
      %vm3126 = vcmp.lt.s32.totalorder %v2981, %v3107
      %vm3127 = vcmp.lt.s32.totalorder %v2982, %v3107
      %vm3128 = vcmp.lt.s32.totalorder %v2983, %v3107
      %vm3129 = vcmp.lt.s32.totalorder %v2984, %v3107
      %vm3130 = vcmp.lt.s32.totalorder %v2985, %v3107
      %vm3131 = vcmp.lt.s32.totalorder %v2986, %v3107
      %vm3132 = vcmp.lt.s32.totalorder %v2987, %v3107
      %vm3133 = vcmp.lt.s32.totalorder %v2988, %v3107
      %vm3134 = vcmp.lt.s32.totalorder %v2989, %v3107
      %vm3135 = vcmp.lt.s32.totalorder %v2990, %v3107
      %vm3136 = vcmp.lt.s32.totalorder %v2991, %v3107
      %vm3137 = vcmp.lt.s32.totalorder %v2992, %v3107
      %vm3138 = vcmp.lt.s32.totalorder %v2993, %v3107
      %vm3139 = vcmp.lt.s32.totalorder %v2994, %v3107
      %vm3140 = vcmp.lt.s32.totalorder %v2995, %v3107
      %vm3141 = vcmp.lt.s32.totalorder %v2996, %v3107
      %vm3142 = vcmp.lt.s32.totalorder %v2997, %v3107
      %vm3143 = vcmp.lt.s32.totalorder %v2998, %v3107
      %vm3144 = vcmp.lt.s32.totalorder %v2999, %v3107
      %vm3145 = vcmp.lt.s32.totalorder %v3000, %v3107
      %vm3146 = vcmp.lt.s32.totalorder %v3001, %v3107
      %vm3147 = vcmp.lt.s32.totalorder %v3002, %v3107
      %vm3148 = vcmp.lt.s32.totalorder %v3003, %v3107
      %vm3149 = vcmp.lt.s32.totalorder %v3004, %v3107
      %vm3150 = vcmp.lt.s32.totalorder %v3005, %v3107
      %vm3151 = vcmp.lt.s32.totalorder %v3006, %v3107
      %vm3152 = vcmp.lt.s32.totalorder %v3007, %v3107
      %vm3153 = vcmp.lt.s32.totalorder %v3008, %v3107
      %vm3154 = vcmp.lt.s32.totalorder %v3009, %v3107
      %vm3155 = vcmp.lt.s32.totalorder %v3010, %v3107
      %vm3156 = vcmp.lt.s32.totalorder %v3011, %v3107
      %vm3157 = vcmp.lt.s32.totalorder %v3012, %v3107
      %vm3158 = vcmp.lt.s32.totalorder %v3013, %v3107
      %vm3159 = vcmp.lt.s32.totalorder %v3014, %v3107
      %vm3160 = vcmp.lt.s32.totalorder %v3015, %v3107
      %vm3161 = vcmp.lt.s32.totalorder %v3016, %v3107
      %vm3162 = vcmp.lt.s32.totalorder %v3017, %v3107
      %vm3163 = vcmp.lt.s32.totalorder %v3018, %v3107
      %vm3164 = vcmp.lt.s32.totalorder %v3019, %v3107
      %vm3165 = vcmp.lt.s32.totalorder %v3020, %v3107
      %vm3166 = vcmp.lt.s32.totalorder %v3021, %v3107
      %vm3167 = vcmp.lt.s32.totalorder %v3022, %v3107
      %vm3168 = vcmp.lt.s32.totalorder %v3023, %v3107
      %vm3169 = vcmp.lt.s32.totalorder %v3024, %v3107
      %vm3170 = vcmp.lt.s32.totalorder %v3025, %v3107
      %vm3171 = vcmp.lt.s32.totalorder %v3026, %v3107
      %vm3172 = vcmp.lt.s32.totalorder %v3027, %v3107
      %vm3173 = vcmp.lt.s32.totalorder %v3028, %v3107
      %vm3174 = vcmp.lt.s32.totalorder %v3029, %v3107
      %vm3175 = vcmp.lt.s32.totalorder %v3030, %v3107
      %vm3176 = vcmp.lt.s32.totalorder %v3031, %v3107
      %vm3177 = vcmp.lt.s32.totalorder %v3032, %v3107
      %vm3178 = vcmp.lt.s32.totalorder %v3033, %v3107
      %vm3179 = vcmp.lt.s32.totalorder %v3034, %v3107
      %vm3180 = vcmp.lt.s32.totalorder %v3035, %v3107
      %vm3181 = vcmp.lt.s32.totalorder %v3036, %v3107
      %vm3182 = vcmp.lt.s32.totalorder %v3037, %v3107
      %vm3183 = vcmp.lt.s32.totalorder %v3038, %v3107
      %vm3184 = vcmp.lt.s32.totalorder %v3039, %v3107
      %vm3185 = vcmp.lt.s32.totalorder %v3040, %v3107
      %vm3186 = vcmp.lt.s32.totalorder %v3041, %v3107
      %vm3187 = vcmp.lt.s32.totalorder %v3042, %v3107
      %vm3188 = vcmp.lt.s32.totalorder %v3043, %v3107
      %vm3189 = vcmp.lt.s32.totalorder %v3044, %v3107
      %vm3190 = vcmp.lt.s32.totalorder %v3045, %v3107
      %vm3191 = vcmp.lt.s32.totalorder %v3046, %v3107
      %vm3192 = vcmp.lt.s32.totalorder %v3047, %v3107
      %vm3193 = vcmp.lt.s32.totalorder %v3048, %v3107
      %vm3194 = vcmp.lt.s32.totalorder %v3049, %v3107
      %vm3195 = vcmp.lt.s32.totalorder %v3050, %v3107
      %vm3196 = vcmp.lt.s32.totalorder %v3051, %v3107
      %vm3197 = vcmp.lt.s32.totalorder %v3052, %v3107
      %vm3198 = vcmp.lt.s32.totalorder %v3053, %v3107
      %vm3199 = vcmp.lt.s32.totalorder %v3054, %v3107
      %vm3200 = vcmp.lt.s32.totalorder %v3055, %v3107
      %vm3201 = vcmp.lt.s32.totalorder %v3056, %v3107
      %vm3202 = vcmp.lt.s32.totalorder %v3057, %v3107
      %vm3203 = vcmp.lt.s32.totalorder %v3058, %v3107
      %vm3204 = vcmp.lt.s32.totalorder %v3059, %v3107
      %vm3205 = vcmp.lt.s32.totalorder %v3060, %v3107
      %vm3206 = vcmp.lt.s32.totalorder %v3061, %v3107
      %vm3207 = vcmp.lt.s32.totalorder %v3062, %v3107
      %vm3208 = vcmp.lt.s32.totalorder %v3063, %v3107
      %vm3209 = vcmp.lt.s32.totalorder %v3064, %v3107
      %vm3210 = vcmp.lt.s32.totalorder %v3065, %v3107
      %vm3211 = vcmp.lt.s32.totalorder %v3066, %v3107
      %vm3212 = vcmp.lt.s32.totalorder %v3067, %v3107
      %vm3213 = vcmp.lt.s32.totalorder %v3068, %v3107
      %vm3214 = vcmp.lt.s32.totalorder %v3069, %v3107
      %vm3215 = vcmp.lt.s32.totalorder %v3070, %v3107
      %vm3216 = vcmp.lt.s32.totalorder %v3071, %v3107
      %vm3217 = vcmp.lt.s32.totalorder %v3072, %v3107
      %vm3218 = vcmp.lt.s32.totalorder %v3073, %v3107
      %vm3219 = vcmp.lt.s32.totalorder %v3074, %v3107
      %vm3220 = vcmp.lt.s32.totalorder %v3075, %v3107
      %vm3221 = vcmp.lt.s32.totalorder %v3076, %v3107
      %vm3222 = vcmp.lt.s32.totalorder %v3077, %v3107
      %vm3223 = vcmp.lt.s32.totalorder %v3078, %v3107
      %vm3224 = vcmp.lt.s32.totalorder %v3079, %v3107
      %vm3225 = vcmp.lt.s32.totalorder %v3080, %v3107
      %vm3226 = vcmp.lt.s32.totalorder %v3081, %v3107
      %vm3227 = vcmp.lt.s32.totalorder %v3082, %v3107
      %vm3228 = vcmp.lt.s32.totalorder %v3083, %v3107
      %vm3229 = vcmp.lt.s32.totalorder %v3084, %v3107
      %vm3230 = vcmp.lt.s32.totalorder %v3085, %v3107
      %vm3231 = vcmp.lt.s32.totalorder %v3086, %v3107
      %vm3232 = vcmp.lt.s32.totalorder %v3087, %v3107
      %vm3233 = vcmp.lt.s32.totalorder %v3088, %v3107
      %vm3234 = vcmp.lt.s32.totalorder %v3089, %v3107
      %vm3235 = vcmp.lt.s32.totalorder %v3090, %v3107
      %vm3236 = vcmp.lt.s32.totalorder %v3091, %v3107
      %vm3237 = vcmp.lt.s32.totalorder %v3092, %v3107
      %vm3238 = vcmp.lt.s32.totalorder %v3093, %v3107
      %vm3239 = vcmp.lt.s32.totalorder %v3094, %v3107
      %vm3240 = vcmp.lt.s32.totalorder %v3095, %v3107
      %vm3241 = vcmp.lt.s32.totalorder %v3096, %v3107
      %vm3242 = vcmp.lt.s32.totalorder %v3097, %v3107
      %vm3243 = vcmp.lt.s32.totalorder %v3098, %v3107
      %vm3244 = vcmp.lt.s32.totalorder %v3099, %v3107
      %vm3245 = vcmp.lt.s32.totalorder %v3100, %v3107
      %vm3246 = vcmp.lt.s32.totalorder %v3101, %v3107
      %vm3247 = vcmp.lt.s32.totalorder %v3102, %v3107
      %vm3248 = vcmp.lt.s32.totalorder %v3103, %v3107
      %vm3249 = vcmp.lt.s32.totalorder %v3104, %v3107
      %vm3250 = vcmp.lt.s32.totalorder %v3105, %v3107
      %vm3251 = vcmp.lt.s32.totalorder %v3106, %v3107
      %v3252 = vld [vmem:[#allocation7] sm:$0xff]
      %v3253 = vsel %vm3108, %v2661, 0.0
      %v3254 = vsel %vm3109, %v2662, 0.0
      %v3255 = vsel %vm3110, %v2663, 0.0
      %v3256 = vsel %vm3111, %v2664, 0.0
      %v3257 = vsel %vm3112, %v2665, 0.0
      %v3258 = vsel %vm3113, %v2666, 0.0
      %v3259 = vsel %vm3114, %v2667, 0.0
      %v3260 = vsel %vm3115, %v2668, 0.0
      %v3261 = vsel %vm3116, %v2669, 0.0
      %v3262 = vsel %vm3117, %v2670, 0.0
      %v3263 = vsel %vm3118, %v2671, 0.0
      %v3264 = vsel %vm3119, %v2672, 0.0
      %v3265 = vsel %vm3120, %v2673, 0.0
      %v3266 = vsel %vm3121, %v2674, 0.0
      %v3267 = vsel %vm3122, %v2675, 0.0
      %v3268 = vsel %vm3123, %v2676, 0.0
      %v3269 = vsel %vm3124, %v2677, 0.0
      %v3270 = vsel %vm3125, %v2678, 0.0
      %v3271 = vsel %vm3126, %v2679, 0.0
      %v3272 = vsel %vm3127, %v2680, 0.0
      %v3273 = vsel %vm3128, %v2681, 0.0
      %v3274 = vsel %vm3129, %v2682, 0.0
      %v3275 = vsel %vm3130, %v2683, 0.0
      %v3276 = vsel %vm3131, %v2684, 0.0
      %v3277 = vsel %vm3132, %v2685, 0.0
      %v3278 = vsel %vm3133, %v2686, 0.0
      %v3279 = vsel %vm3134, %v2687, 0.0
      %v3280 = vsel %vm3135, %v2688, 0.0
      %v3281 = vsel %vm3136, %v2689, 0.0
      %v3282 = vsel %vm3137, %v2690, 0.0
      %v3283 = vsel %vm3138, %v2691, 0.0
      %v3284 = vsel %vm3139, %v2692, 0.0
      %v3285 = vsel %vm3140, %v2693, 0.0
      %v3286 = vsel %vm3141, %v2694, 0.0
      %v3287 = vsel %vm3142, %v2695, 0.0
      %v3288 = vsel %vm3143, %v2696, 0.0
      %v3289 = vsel %vm3144, %v2697, 0.0
      %v3290 = vsel %vm3145, %v2698, 0.0
      %v3291 = vsel %vm3146, %v2699, 0.0
      %v3292 = vsel %vm3147, %v2700, 0.0
      %v3293 = vsel %vm3148, %v2701, 0.0
      %v3294 = vsel %vm3149, %v2702, 0.0
      %v3295 = vsel %vm3150, %v2703, 0.0
      %v3296 = vsel %vm3151, %v2704, 0.0
      %v3297 = vsel %vm3152, %v2705, 0.0
      %v3298 = vsel %vm3153, %v2706, 0.0
      %v3299 = vsel %vm3154, %v2707, 0.0
      %v3300 = vsel %vm3155, %v2708, 0.0
      %v3301 = vsel %vm3156, %v2709, 0.0
      %v3302 = vsel %vm3157, %v2710, 0.0
      %v3303 = vsel %vm3158, %v2711, 0.0
      %v3304 = vsel %vm3159, %v2712, 0.0
      %v3305 = vsel %vm3160, %v2713, 0.0
      %v3306 = vsel %vm3161, %v2714, 0.0
      %v3307 = vsel %vm3162, %v2715, 0.0
      %v3308 = vsel %vm3163, %v2716, 0.0
      %v3309 = vsel %vm3164, %v2717, 0.0
      %v3310 = vsel %vm3165, %v2718, 0.0
      %v3311 = vsel %vm3166, %v2719, 0.0
      %v3312 = vsel %vm3167, %v2720, 0.0
      %v3313 = vsel %vm3168, %v2721, 0.0
      %v3314 = vsel %vm3169, %v2722, 0.0
      %v3315 = vsel %vm3170, %v2723, 0.0
      %v3316 = vsel %vm3171, %v2724, 0.0
      %v3317 = vsel %vm3172, %v2725, 0.0
      %v3318 = vsel %vm3173, %v2726, 0.0
      %v3319 = vsel %vm3174, %v2727, 0.0
      %v3320 = vsel %vm3175, %v2728, 0.0
      %v3321 = vsel %vm3176, %v2729, 0.0
      %v3322 = vsel %vm3177, %v2730, 0.0
      %v3323 = vsel %vm3178, %v2731, 0.0
      %v3324 = vsel %vm3179, %v2732, 0.0
      %v3325 = vsel %vm3180, %v2733, 0.0
      %v3326 = vsel %vm3181, %v2734, 0.0
      %v3327 = vsel %vm3182, %v2735, 0.0
      %v3328 = vsel %vm3183, %v2736, 0.0
      %v3329 = vsel %vm3184, %v2737, 0.0
      %v3330 = vsel %vm3185, %v2738, 0.0
      %v3331 = vsel %vm3186, %v2739, 0.0
      %v3332 = vsel %vm3187, %v2740, 0.0
      %v3333 = vsel %vm3188, %v2741, 0.0
      %v3334 = vsel %vm3189, %v2742, 0.0
      %v3335 = vsel %vm3190, %v2743, 0.0
      %v3336 = vsel %vm3191, %v2744, 0.0
      %v3337 = vsel %vm3192, %v2745, 0.0
      %v3338 = vsel %vm3193, %v2746, 0.0
      %v3339 = vsel %vm3194, %v2747, 0.0
      %v3340 = vsel %vm3195, %v2748, 0.0
      %v3341 = vsel %vm3196, %v2749, 0.0
      %v3342 = vsel %vm3197, %v2750, 0.0
      %v3343 = vsel %vm3198, %v2751, 0.0
      %v3344 = vsel %vm3199, %v2752, 0.0
      %v3345 = vsel %vm3200, %v2753, 0.0
      %v3346 = vsel %vm3201, %v2754, 0.0
      %v3347 = vsel %vm3202, %v2755, 0.0
      %v3348 = vsel %vm3203, %v2756, 0.0
      %v3349 = vsel %vm3204, %v2757, 0.0
      %v3350 = vsel %vm3205, %v2758, 0.0
      %v3351 = vsel %vm3206, %v2759, 0.0
      %v3352 = vsel %vm3207, %v2760, 0.0
      %v3353 = vsel %vm3208, %v2761, 0.0
      %v3354 = vsel %vm3209, %v2762, 0.0
      %v3355 = vsel %vm3210, %v2763, 0.0
      %v3356 = vsel %vm3211, %v2764, 0.0
      %v3357 = vsel %vm3212, %v2765, 0.0
      %v3358 = vsel %vm3213, %v2766, 0.0
      %v3359 = vsel %vm3214, %v2767, 0.0
      %v3360 = vsel %vm3215, %v2768, 0.0
      %v3361 = vsel %vm3216, %v2769, 0.0
      %v3362 = vsel %vm3217, %v2770, 0.0
      %v3363 = vsel %vm3218, %v2771, 0.0
      %v3364 = vsel %vm3219, %v2772, 0.0
      %v3365 = vsel %vm3220, %v2773, 0.0
      %v3366 = vsel %vm3221, %v2774, 0.0
      %v3367 = vsel %vm3222, %v2775, 0.0
      %v3368 = vsel %vm3223, %v2776, 0.0
      %v3369 = vsel %vm3224, %v2777, 0.0
      %v3370 = vsel %vm3225, %v2778, 0.0
      %v3371 = vsel %vm3226, %v2779, 0.0
      %v3372 = vsel %vm3227, %v2780, 0.0
      %v3373 = vsel %vm3228, %v2781, 0.0
      %v3374 = vsel %vm3229, %v2782, 0.0
      %v3375 = vsel %vm3230, %v2783, 0.0
      %v3376 = vsel %vm3231, %v2784, 0.0
      %v3377 = vsel %vm3232, %v2785, 0.0
      %v3378 = vsel %vm3233, %v2786, 0.0
      %v3379 = vsel %vm3234, %v2787, 0.0
      %v3380 = vsel %vm3235, %v2788, 0.0
      %v3381 = vsel %vm3236, %v2789, 0.0
      %v3382 = vsel %vm3237, %v2790, 0.0
      %v3383 = vsel %vm3238, %v2791, 0.0
      %v3384 = vsel %vm3239, %v2792, 0.0
      %v3385 = vsel %vm3240, %v2793, 0.0
      %v3386 = vsel %vm3241, %v2794, 0.0
      %v3387 = vsel %vm3242, %v2795, 0.0
      %v3388 = vsel %vm3243, %v2796, 0.0
      %v3389 = vsel %vm3244, %v2797, 0.0
      %v3390 = vsel %vm3245, %v2798, 0.0
      %v3391 = vsel %vm3246, %v2799, 0.0
      %v3392 = vsel %vm3247, %v2800, 0.0
      %v3393 = vsel %vm3248, %v2801, 0.0
      %v3394 = vsel %vm3249, %v2802, 0.0
      %v3395 = vsel %vm3250, %v2803, 0.0
      %v3396 = vsel %vm3251, %v2804, 0.0
      %v3397 = vadd.f32 %v3253, %v3254
      %v3398 = vadd.f32 %v3397, %v3255
      %v3399 = vadd.f32 %v3398, %v3256
      %v3400 = vadd.f32 %v3399, %v3257
      %v3401 = vadd.f32 %v3400, %v3258
      %v3402 = vadd.f32 %v3401, %v3259
      %v3403 = vadd.f32 %v3402, %v3260
      %v3404 = vadd.f32 %v3403, %v3261
      %v3405 = vadd.f32 %v3404, %v3262
      %v3406 = vadd.f32 %v3405, %v3263
      %v3407 = vadd.f32 %v3406, %v3264
      %v3408 = vadd.f32 %v3407, %v3265
      %v3409 = vadd.f32 %v3408, %v3266
      %v3410 = vadd.f32 %v3409, %v3267
      %v3411 = vadd.f32 %v3410, %v3268
      %v3412 = vadd.f32 %v3411, %v3269
      %v3413 = vadd.f32 %v3412, %v3270
      %v3414 = vadd.f32 %v3413, %v3271
      %v3415 = vadd.f32 %v3414, %v3272
      %v3416 = vadd.f32 %v3415, %v3273
      %v3417 = vadd.f32 %v3416, %v3274
      %v3418 = vadd.f32 %v3417, %v3275
      %v3419 = vadd.f32 %v3418, %v3276
      %v3420 = vadd.f32 %v3419, %v3277
      %v3421 = vadd.f32 %v3420, %v3278
      %v3422 = vadd.f32 %v3421, %v3279
      %v3423 = vadd.f32 %v3422, %v3280
      %v3424 = vadd.f32 %v3423, %v3281
      %v3425 = vadd.f32 %v3424, %v3282
      %v3426 = vadd.f32 %v3425, %v3283
      %v3427 = vadd.f32 %v3426, %v3284
      %v3428 = vadd.f32 %v3427, %v3285
      %v3429 = vadd.f32 %v3428, %v3286
      %v3430 = vadd.f32 %v3429, %v3287
      %v3431 = vadd.f32 %v3430, %v3288
      %v3432 = vadd.f32 %v3431, %v3289
      %v3433 = vadd.f32 %v3432, %v3290
      %v3434 = vadd.f32 %v3433, %v3291
      %v3435 = vadd.f32 %v3434, %v3292
      %v3436 = vadd.f32 %v3435, %v3293
      %v3437 = vadd.f32 %v3436, %v3294
      %v3438 = vadd.f32 %v3437, %v3295
      %v3439 = vadd.f32 %v3438, %v3296
      %v3440 = vadd.f32 %v3439, %v3297
      %v3441 = vadd.f32 %v3440, %v3298
      %v3442 = vadd.f32 %v3441, %v3299
      %v3443 = vadd.f32 %v3442, %v3300
      %v3444 = vadd.f32 %v3443, %v3301
      %v3445 = vadd.f32 %v3444, %v3302
      %v3446 = vadd.f32 %v3445, %v3303
      %v3447 = vadd.f32 %v3446, %v3304
      %v3448 = vadd.f32 %v3447, %v3305
      %v3449 = vadd.f32 %v3448, %v3306
      %v3450 = vadd.f32 %v3449, %v3307
      %v3451 = vadd.f32 %v3450, %v3308
      %v3452 = vadd.f32 %v3451, %v3309
      %v3453 = vadd.f32 %v3452, %v3310
      %v3454 = vadd.f32 %v3453, %v3311
      %v3455 = vadd.f32 %v3454, %v3312
      %v3456 = vadd.f32 %v3455, %v3313
      %v3457 = vadd.f32 %v3456, %v3314
      %v3458 = vadd.f32 %v3457, %v3315
      %v3459 = vadd.f32 %v3458, %v3316
      %v3460 = vadd.f32 %v3459, %v3317
      %v3461 = vadd.f32 %v3460, %v3318
      %v3462 = vadd.f32 %v3461, %v3319
      %v3463 = vadd.f32 %v3462, %v3320
      %v3464 = vadd.f32 %v3463, %v3321
      %v3465 = vadd.f32 %v3464, %v3322
      %v3466 = vadd.f32 %v3465, %v3323
      %v3467 = vadd.f32 %v3466, %v3324
      %v3468 = vadd.f32 %v3467, %v3325
      %v3469 = vadd.f32 %v3468, %v3326
      %v3470 = vadd.f32 %v3469, %v3327
      %v3471 = vadd.f32 %v3470, %v3328
      %v3472 = vadd.f32 %v3471, %v3329
      %v3473 = vadd.f32 %v3472, %v3330
      %v3474 = vadd.f32 %v3473, %v3331
      %v3475 = vadd.f32 %v3474, %v3332
      %v3476 = vadd.f32 %v3475, %v3333
      %v3477 = vadd.f32 %v3476, %v3334
      %v3478 = vadd.f32 %v3477, %v3335
      %v3479 = vadd.f32 %v3478, %v3336
      %v3480 = vadd.f32 %v3479, %v3337
      %v3481 = vadd.f32 %v3480, %v3338
      %v3482 = vadd.f32 %v3481, %v3339
      %v3483 = vadd.f32 %v3482, %v3340
      %v3484 = vadd.f32 %v3483, %v3341
      %v3485 = vadd.f32 %v3484, %v3342
      %v3486 = vadd.f32 %v3485, %v3343
      %v3487 = vadd.f32 %v3486, %v3344
      %v3488 = vadd.f32 %v3487, %v3345
      %v3489 = vadd.f32 %v3488, %v3346
      %v3490 = vadd.f32 %v3489, %v3347
      %v3491 = vadd.f32 %v3490, %v3348
      %v3492 = vadd.f32 %v3491, %v3349
      %v3493 = vadd.f32 %v3492, %v3350
      %v3494 = vadd.f32 %v3493, %v3351
      %v3495 = vadd.f32 %v3494, %v3352
      %v3496 = vadd.f32 %v3495, %v3353
      %v3497 = vadd.f32 %v3496, %v3354
      %v3498 = vadd.f32 %v3497, %v3355
      %v3499 = vadd.f32 %v3498, %v3356
      %v3500 = vadd.f32 %v3499, %v3357
      %v3501 = vadd.f32 %v3500, %v3358
      %v3502 = vadd.f32 %v3501, %v3359
      %v3503 = vadd.f32 %v3502, %v3360
      %v3504 = vadd.f32 %v3503, %v3361
      %v3505 = vadd.f32 %v3504, %v3362
      %v3506 = vadd.f32 %v3505, %v3363
      %v3507 = vadd.f32 %v3506, %v3364
      %v3508 = vadd.f32 %v3507, %v3365
      %v3509 = vadd.f32 %v3508, %v3366
      %v3510 = vadd.f32 %v3509, %v3367
      %v3511 = vadd.f32 %v3510, %v3368
      %v3512 = vadd.f32 %v3511, %v3369
      %v3513 = vadd.f32 %v3512, %v3370
      %v3514 = vadd.f32 %v3513, %v3371
      %v3515 = vadd.f32 %v3514, %v3372
      %v3516 = vadd.f32 %v3515, %v3373
      %v3517 = vadd.f32 %v3516, %v3374
      %v3518 = vadd.f32 %v3517, %v3375
      %v3519 = vadd.f32 %v3518, %v3376
      %v3520 = vadd.f32 %v3519, %v3377
      %v3521 = vadd.f32 %v3520, %v3378
      %v3522 = vadd.f32 %v3521, %v3379
      %v3523 = vadd.f32 %v3522, %v3380
      %v3524 = vadd.f32 %v3523, %v3381
      %v3525 = vadd.f32 %v3524, %v3382
      %v3526 = vadd.f32 %v3525, %v3383
      %v3527 = vadd.f32 %v3526, %v3384
      %v3528 = vadd.f32 %v3527, %v3385
      %v3529 = vadd.f32 %v3528, %v3386
      %v3530 = vadd.f32 %v3529, %v3387
      %v3531 = vadd.f32 %v3530, %v3388
      %v3532 = vadd.f32 %v3531, %v3389
      %v3533 = vadd.f32 %v3532, %v3390
      %v3534 = vadd.f32 %v3533, %v3391
      %v3535 = vadd.f32 %v3534, %v3392
      %v3536 = vadd.f32 %v3535, %v3393
      %v3537 = vadd.f32 %v3536, %v3394
      %v3538 = vadd.f32 %v3537, %v3395
      %v3539 = vadd.f32 %v3538, %v3396
      %v3540 = vadd.f32 %v3252, %v3539
      %3541 = vst [vmem:[#allocation7] sm:$0xff] %v3540
    $region29: #{tpu_custom_call.1} parent=1 // pred_fallthru
      _
    // Predicated region
    $region30: #{tpu_custom_call.1} parent=1 // pred_check
      _
    $region31: #{tpu_custom_call.1} parent=1 // pred_check_branch
      %3543 = sbr.rel (0) target = $region33
    $region32: #{tpu_custom_call.1} parent=1 // pred_region
      %3545 = vsyncadd [#allocation4], 0
      %s3547 = sshll.u32 [#allocation7], 4
      %s3548 = int_to_ptr.vmem [resolvable:$true] %s3547
      %s3549 = sshll.u32 %s2, 4
      %s3550 = int_to_ptr.hbm [resolvable:$true] %s3549
      %3552 = dma.vmem_to_hbm [thread:$0]  %s3548, 128, %s3550, [#allocation4]
    $region33: #{tpu_custom_call.1} parent=1 // pred_fallthru
      _
    // Predicated region
    $region34: #{tpu_custom_call.1} parent=1 // pred_check
      _
    $region35: #{tpu_custom_call.1} parent=1 // pred_check_branch
      %3554 = sbr.rel (0) target = $region37
    $region36: #{tpu_custom_call.1} parent=1 // pred_region
      %3556 = dma.done [#allocation4], 128
    $region37: #{tpu_custom_call.1} parent=1 // pred_fallthru
      _
    %3557 = vsyncpa [#allocation3], 1
    %3558 = vsyncpa [#allocation6], 1
    %3559 = vsyncpa [#allocation4], 1

</llo_original>
